<compile_context>
chip_gen: v7x
topology: tpu7x:2x2x1
jax: 0.10.0
libtpu: 0.0.40
codegen_flags: <defaults>
</compile_context>

<pallas_src>
import math
from functools import partial

import jax
import jax.numpy as jnp
from jax import lax
from jax.experimental import pallas as pl
from jax.experimental.pallas import tpu as pltpu

EPS = 1e-5
LANE = 128


# --------------------------------------------------------------------------- #
# Kernel
# --------------------------------------------------------------------------- #
def _mlp_bn_kernel(x_ref, w1_ref, w2_ref, prm_ref, o_ref, a1_ref, a2_ref, *,
                   p_tile, batch, n1p, n2p):
    """One grid step = `p_tile` independent problems stacked along sublanes.

    x_ref  : (p_tile*batch, n_in)   f32   (cast to bf16 in-kernel)
    w1_ref : (n_in, n1p)            bf16
    w2_ref : (n1p, n2p)             bf16
    prm_ref: (1, 2*n1p+3*n2p+1)     f32   [g1 | be1 | g2 | be2 | w3 | b3]
    o_ref  : (1, p_tile*batch)      f32   lane-dense output row
    a1_ref : (p_tile*batch, n1p)    f32   VMEM scratch (layer-1 activations)
    a2_ref : (p_tile*batch, n2p)    f32   VMEM scratch (layer-2 activations)
    """
    inv_b = 1.0 / batch

    # Fused resident parameter row (all offsets are multiples of 128).
    g1 = prm_ref[:, pl.ds(0, n1p)]
    be1 = prm_ref[:, pl.ds(n1p, n1p)]
    g2 = prm_ref[:, pl.ds(2 * n1p, n2p)]
    be2 = prm_ref[:, pl.ds(2 * n1p + n2p, n2p)]
    w3 = prm_ref[:, pl.ds(2 * n1p + 2 * n2p, n2p)]
    b3 = prm_ref[:, pl.ds(2 * n1p + 3 * n2p, 1)]

    def bn_relu_inplace(act_ref, g, be):
        # Training-mode BatchNorm (+ReLU) applied in place, per problem.
        # Each problem owns `batch` consecutive rows (sublane-group aligned),
        # so batch statistics exactly match the per-call PyTorch semantics.
        # Single-pass moments; scale/shift folded so the (batch, n) tile is
        # touched once more on the VPU. rsqrt rides the EUP slot (free).
        for p in range(p_tile):               # static unroll: p_tile is small
            rows = pl.ds(p * batch, batch)
            h = act_ref[rows, :]
            m = jnp.sum(h, axis=0, keepdims=True) * inv_b
            ex2 = jnp.sum(h * h, axis=0, keepdims=True) * inv_b
            var = jnp.maximum(ex2 - m * m, 0.0)            # biased variance
            scale = g * lax.rsqrt(var + EPS)
            shift = be - m * scale
            act_ref[rows, :] = jnp.maximum(h * scale + shift, 0.0)

    # Layer 1: Linear (bias dropped -- cancelled exactly by BN mean) -> BN -> ReLU
    a1_ref[...] = jnp.dot(x_ref[...].astype(jnp.bfloat16), w1_ref[...],
                          preferred_element_type=jnp.float32)
    bn_relu_inplace(a1_ref, g1, be1)

    # Layer 2: Linear (bias dropped) -> BN -> ReLU
    a2_ref[...] = jnp.dot(a1_ref[...].astype(jnp.bfloat16), w2_ref[...],
                          preferred_element_type=jnp.float32)
    bn_relu_inplace(a2_ref, g2, be2)

    # Head Linear(n2 -> 1): w3 (1, n2p) contracted against h (M, n2p) on their
    # last axes (q@k^T idiom) -> result is already a lane-dense (1, M) row, so
    # the store is a single unmasked vst (no masked (M,1) store, no relayout).
    out = lax.dot_general(w3, a2_ref[...],
                          dimension_numbers=(((1,), (1,)), ((), ())),
                          preferred_element_type=jnp.float32) + b3
    o_ref[...] = out.astype(o_ref.dtype)


# --------------------------------------------------------------------------- #
# Wrappers
# --------------------------------------------------------------------------- #
def nn_3lbn_forward_stacked(xs, kparams, p_tile=16):
    """Run P independent NN_3lBN training-mode forwards in one pallas_call.

    xs: (P, B, n_inputs) f32.  `p_tile` problems are packed per grid step along
    the sublane (M) axis, so each MXU matmul sees M = p_tile*B rows (target
    128-256) while BN statistics stay per-problem.  Returns (P, B, 1) f32.
    """
    w1, w2, prm, (n1p, n2p) = kparams
    P, B, n_in = xs.shape

    p_tile = max(1, min(p_tile, P))
    n_steps = -(-P // p_tile)                      # cdiv
    p_pad = n_steps * p_tile
    if p_pad != P:                                 # pad with dummy problems
        xs = jnp.concatenate(
            [xs, jnp.zeros((p_pad - P, B, n_in), xs.dtype)], axis=0)
    m_tile = p_tile * B
    xs3 = xs.reshape(n_steps, m_tile, n_in)        # f32: bf16 cast is in-kernel

    kernel = partial(_mlp_bn_kernel, p_tile=p_tile, batch=B, n1p=n1p, n2p=n2p)

    def resident(arr):   # weights / fused BN params stay VMEM-resident
        return pl.BlockSpec(arr.shape, lambda g, nd=arr.ndim: (0,) * nd)

    out = pl.pallas_call(
        kernel,
        out_shape=jax.ShapeDtypeStruct((n_steps, 1, m_tile), jnp.float32),
        grid_spec=pltpu.PrefetchScalarGridSpec(
            num_scalar_prefetch=0,
            grid=(n_steps,),
            in_specs=[pl.BlockSpec((None, m_tile, n_in), lambda g: (g, 0, 0)),
                      resident(w1), resident(w2), resident(prm)],
            out_specs=pl.BlockSpec((None, 1, m_tile), lambda g: (g, 0, 0)),
            scratch_shapes=[pltpu.VMEM((m_tile, n1p), jnp.float32),
                            pltpu.VMEM((m_tile, n2p), jnp.float32)],
        ),
        compiler_params=pltpu.CompilerParams(
            # Grid steps are independent problems -> megacore / v7x-TC shardable.
            dimension_semantics=("parallel",),
        ),
    )(xs3, w1, w2, prm)

    return out.reshape(p_pad, B, 1)[:P]


def nn_3lbn_forward(x, kparams, p_tile=16):
    """Single-call forward: x (B, n_inputs) -> (B, 1)."""
    return nn_3lbn_forward_stacked(x[None], kparams, p_tile=p_tile)[0]


# --------------------------------------------------------------------------- #
# Parameters
# --------------------------------------------------------------------------- #
def init_params(key, n_inputs, n1, n2):
    """PyTorch-style parameters (uniform fan-in bounds)."""
    ks = jax.random.split(key, 6)

    def lin(kw, kb, fan_in, fan_out):
        bound = 1.0 / math.sqrt(fan_in)
        w = jax.random.uniform(kw, (fan_in, fan_out), jnp.float32, -bound, bound)
        b = jax.random.uniform(kb, (1, fan_out), jnp.float32, -bound, bound)
        return w, b

    w1, b1 = lin(ks[0], ks[1], n_inputs, n1)
    w2, b2 = lin(ks[2], ks[3], n1, n2)
    w3, b3 = lin(ks[4], ks[5], n2, 1)
    g1, be1 = jnp.ones((1, n1), jnp.float32), jnp.zeros((1, n1), jnp.float32)
    g2, be2 = jnp.ones((1, n2), jnp.float32), jnp.zeros((1, n2), jnp.float32)
    return (w1, b1, g1, be1, w2, b2, g2, be2, w3, b3)


def _round_up(n, m):
    return -(-n // m) * m


def prepare_kernel_params(params):
    """Module params -> kernel params.

    * drop pre-BN biases b1/b2 (cancelled exactly by training-mode BN mean),
    * zero-pad hidden widths n1/n2 up to multiples of 128 (padded lanes get
      gamma=beta=0 and w3=0, so results are exact),
    * bf16 MXU weights, f32 BN params,
    * fuse g1,be1,g2,be2,w3,b3 into one (1, K) resident row (fewer DMAs).
    """
    (w1, _b1, g1, be1, w2, _b2, g2, be2, w3, b3) = params
    n1 = w1.shape[1]
    n2 = w2.shape[1]
    n1p, n2p = _round_up(n1, LANE), _round_up(n2, LANE)

    def padc(a, cols):                      # zero-pad trailing feature axis
        return jnp.pad(a, ((0, 0), (0, cols - a.shape[1])))

    w1p = padc(w1, n1p).astype(jnp.bfloat16)                        # (n_in, n1p)
    w2p = jnp.pad(w2, ((0, n1p - n1), (0, n2p - n2))).astype(jnp.bfloat16)
    prm = jnp.concatenate(
        [padc(g1, n1p), padc(be1, n1p),
         padc(g2, n2p), padc(be2, n2p),
         padc(jnp.reshape(w3, (1, -1)), n2p),
         jnp.reshape(b3, (1, 1))], axis=1).astype(jnp.float32)
    return (w1p, w2p, prm, (n1p, n2p))


def _unpack_prm(prm, n1p, n2p):
    g1 = prm[:, :n1p]
    be1 = prm[:, n1p:2 * n1p]
    g2 = prm[:, 2 * n1p:2 * n1p + n2p]
    be2 = prm[:, 2 * n1p + n2p:2 * n1p + 2 * n2p]
    w3 = prm[:, 2 * n1p + 2 * n2p:2 * n1p + 3 * n2p]
    b3 = prm[:, 2 * n1p + 3 * n2p:2 * n1p + 3 * n2p + 1]
    return g1, be1, g2, be2, w3, b3


# --------------------------------------------------------------------------- #
# References
# --------------------------------------------------------------------------- #
def reference_forward_f32(x, params):
    """Plain-JAX f32 reference of the PyTorch training-mode forward."""
    (w1, b1, g1, be1, w2, b2, g2, be2, w3, b3) = params

    def bn(h, g, be):
        m = jnp.mean(h, axis=0, keepdims=True)
        v = jnp.mean((h - m) ** 2, axis=0, keepdims=True)
        return (h - m) / jnp.sqrt(v + EPS) * g + be

    h = jnp.maximum(bn(x @ w1 + b1, g1, be1), 0.0)
    h = jnp.maximum(bn(h @ w2 + b2, g2, be2), 0.0)
    return h @ w3 + b3


def reference_forward_kernel_numerics(x, kparams):
    """Reference mirroring the kernel's numerics (bf16 MXU operands, no pre-BN
    biases, folded scale/shift, single-pass moments, padded widths)."""
    w1p, w2p, prm, (n1p, n2p) = kparams
    g1, be1, g2, be2, w3, b3 = _unpack_prm(prm, n1p, n2p)

    def bn_relu(h, g, be):
        m = jnp.mean(h, axis=0, keepdims=True)
        var = jnp.maximum(jnp.mean(h * h, axis=0, keepdims=True) - m * m, 0.0)
        scale = g * lax.rsqrt(var + EPS)
        return jnp.maximum(h * scale + (be - m * scale), 0.0)

    h = bn_relu(jnp.dot(x.astype(jnp.bfloat16), w1p,
                        preferred_element_type=jnp.float32), g1, be1)
    h = bn_relu(jnp.dot(h.astype(jnp.bfloat16), w2p,
                        preferred_element_type=jnp.float32), g2, be2)
    return jnp.sum(h * w3, axis=1, keepdims=True) + b3


# --------------------------------------------------------------------------- #
# Demo / self-check
# --------------------------------------------------------------------------- #
if __name__ == "__main__":
    key = jax.random.PRNGKey(0)
    k_x, k_p = jax.random.split(key)

    # 32 independent small problems; p_tile=16 -> M = 16*8 = 128 rows per MXU
    # matmul and a 2-step "parallel" grid (both v7x TensorCores get work).
    P, B, n_inputs, n1, n2 = 32, 8, 32, 64, 32
    xs = jax.random.normal(k_x, (P, B, n_inputs), jnp.float32)

    params = init_params(k_p, n_inputs, n1, n2)   # PyTorch-style params
    kparams = prepare_kernel_params(params)       # padded / fused / bf16

    out = jax.block_until_ready(nn_3lbn_forward_stacked(xs, kparams, p_tile=16))
    assert out.shape == (P, B, 1)

    # Check vs. a reference that uses the kernel's numerics (bf16 MXU, folded BN).
    ref_tight = jax.vmap(
        lambda x: reference_forward_kernel_numerics(x, kparams))(xs)
    assert jnp.allclose(out, ref_tight, atol=2e-2, rtol=2e-2), \
        float(jnp.max(jnp.abs(out - ref_tight)))

    # Semantic check vs. the pure-f32 PyTorch training-mode forward
    # (looser tolerance accounts for bf16 MXU operands).
    ref_f32 = jax.vmap(lambda x: reference_forward_f32(x, params))(xs)
    assert jnp.allclose(out, ref_f32, atol=5e-2, rtol=5e-2), \
        float(jnp.max(jnp.abs(out - ref_f32)))

    # Single-call convenience path (P=1 -> one grid step, M = B rows).
    out1 = jax.block_until_ready(nn_3lbn_forward(xs[0], kparams))
    assert out1.shape == (B, 1)
    assert jnp.allclose(out1, ref_f32[0], atol=5e-2, rtol=5e-2)

    # P not divisible by p_tile: dummy zero problems are padded and discarded.
    out_ragged = jax.block_until_ready(
        nn_3lbn_forward_stacked(xs[:20], kparams, p_tile=16))
    assert out_ragged.shape == (20, B, 1)
    assert jnp.allclose(out_ragged, out[:20], atol=1e-5, rtol=1e-5)

    print("KERNEL_OK")
</pallas_src>

<mosaic_0001>
module attributes {stable_mosaic.version = 11 : i64} {
  func.func @_mlp_bn_kernel(%arg0: i32, %arg1: memref<1x128x32xf32, #tpu.memory_space<vmem>>, %arg2: memref<32x128xbf16, #tpu.memory_space<vmem>>, %arg3: memref<128x128xbf16, #tpu.memory_space<vmem>>, %arg4: memref<1x641xf32, #tpu.memory_space<vmem>>, %arg5: memref<1x1x128xf32, #tpu.memory_space<vmem>>, %arg6: memref<128x128xf32, #tpu.memory_space<vmem>>, %arg7: memref<128x128xf32, #tpu.memory_space<vmem>>) attributes {dimension_semantics = [#tpu.dimension_semantics<parallel>], iteration_bounds = array<i64: 2>, scalar_prefetch = 0 : i64, scratch_operands = 2 : i64, tpu.core_type = #tpu.core_type<tc>, window_params = [{transform_indices = @transform_0, window_bounds = array<i64: 1, 128, 32>}, {pipeline_mode = #tpu.pipeline_mode<synchronous>, transform_indices = @transform_1, window_bounds = array<i64: 32, 128>}, {pipeline_mode = #tpu.pipeline_mode<synchronous>, transform_indices = @transform_2, window_bounds = array<i64: 128, 128>}, {pipeline_mode = #tpu.pipeline_mode<synchronous>, transform_indices = @transform_3, window_bounds = array<i64: 1, 641>}, {transform_indices = @transform_4, window_bounds = array<i64: 1, 1, 128>}]} {
    %c0 = arith.constant 0 : index
    %c0_0 = arith.constant 0 : index
    %0 = vector.load %arg4[%c0, %c0_0] : memref<1x641xf32, #tpu.memory_space<vmem>>, vector<1x128xf32>
    %c0_1 = arith.constant 0 : index
    %c128 = arith.constant 128 : index
    %1 = vector.load %arg4[%c0_1, %c128] : memref<1x641xf32, #tpu.memory_space<vmem>>, vector<1x128xf32>
    %c0_2 = arith.constant 0 : index
    %c256 = arith.constant 256 : index
    %2 = vector.load %arg4[%c0_2, %c256] : memref<1x641xf32, #tpu.memory_space<vmem>>, vector<1x128xf32>
    %c0_3 = arith.constant 0 : index
    %c384 = arith.constant 384 : index
    %3 = vector.load %arg4[%c0_3, %c384] : memref<1x641xf32, #tpu.memory_space<vmem>>, vector<1x128xf32>
    %c0_4 = arith.constant 0 : index
    %c512 = arith.constant 512 : index
    %4 = vector.load %arg4[%c0_4, %c512] : memref<1x641xf32, #tpu.memory_space<vmem>>, vector<1x128xf32>
    %c0_5 = arith.constant 0 : index
    %c640 = arith.constant 640 : index
    %5 = vector.load %arg4[%c0_5, %c640] : memref<1x641xf32, #tpu.memory_space<vmem>>, vector<1x1xf32>
    %c0_6 = arith.constant 0 : index
    %c0_7 = arith.constant 0 : index
    %c0_8 = arith.constant 0 : index
    %6 = vector.load %arg1[%c0_6, %c0_7, %c0_8] : memref<1x128x32xf32, #tpu.memory_space<vmem>>, vector<1x128x32xf32>
    %7 = vector.shape_cast %6 : vector<1x128x32xf32> to vector<128x32xf32>
    %8 = arith.truncf %7 : vector<128x32xf32> to vector<128x32xbf16>
    %c0_9 = arith.constant 0 : index
    %c0_10 = arith.constant 0 : index
    %9 = vector.load %arg2[%c0_9, %c0_10] : memref<32x128xbf16, #tpu.memory_space<vmem>>, vector<32x128xbf16>
    %cst = arith.constant dense<0.000000e+00> : vector<128x128xf32>
    %10 = tpu.matmul %8, %9, %cst {dimension_numbers = #tpu.dot_dimension_numbers<[1], [0], [0], [1], [0, 0, 1, 1], [], []>} : vector<128x32xbf16>, vector<32x128xbf16>, vector<128x128xf32> -> vector<128x128xf32>
    %c0_11 = arith.constant 0 : index
    %c0_12 = arith.constant 0 : index
    %11 = vector.load %arg6[%c0_11, %c0_12] : memref<128x128xf32, #tpu.memory_space<vmem>>, vector<128x128xf32>
    tpu.vector_store %arg6[%c0_11, %c0_12], %10 {strides = array<i32>} : memref<128x128xf32, #tpu.memory_space<vmem>>, vector<128x128xf32>,
    %c0_13 = arith.constant 0 : index
    %c0_14 = arith.constant 0 : index
    %12 = vector.load %arg6[%c0_13, %c0_14] : memref<128x128xf32, #tpu.memory_space<vmem>>, vector<8x128xf32>
    %cst_15 = arith.constant dense<0.000000e+00> : vector<128xf32>
    %13 = vector.multi_reduction <add>, %12, %cst_15 [0] : vector<8x128xf32> to vector<128xf32>
    %14 = vector.shape_cast %13 : vector<128xf32> to vector<1x128xf32>
    %cst_16 = arith.constant 1.250000e-01 : f32
    %15 = vector.broadcast %cst_16 : f32 to vector<1x128xf32>
    %16 = arith.mulf %14, %15 : vector<1x128xf32>
    %17 = arith.mulf %12, %12 : vector<8x128xf32>
    %cst_17 = arith.constant dense<0.000000e+00> : vector<128xf32>
    %18 = vector.multi_reduction <add>, %17, %cst_17 [0] : vector<8x128xf32> to vector<128xf32>
    %19 = vector.shape_cast %18 : vector<128xf32> to vector<1x128xf32>
    %cst_18 = arith.constant 1.250000e-01 : f32
    %20 = vector.broadcast %cst_18 : f32 to vector<1x128xf32>
    %21 = arith.mulf %19, %20 : vector<1x128xf32>
    %22 = arith.mulf %16, %16 : vector<1x128xf32>
    %23 = arith.subf %21, %22 : vector<1x128xf32>
    %cst_19 = arith.constant 0.000000e+00 : f32
    %24 = vector.broadcast %cst_19 : f32 to vector<1x128xf32>
    %25 = arith.maximumf %23, %24 : vector<1x128xf32>
    %cst_20 = arith.constant 9.99999974E-6 : f32
    %26 = vector.broadcast %cst_20 : f32 to vector<1x128xf32>
    %27 = arith.addf %25, %26 : vector<1x128xf32>
    %28 = math.rsqrt %27 : vector<1x128xf32>
    %29 = arith.mulf %0, %28 : vector<1x128xf32>
    %30 = arith.mulf %16, %29 : vector<1x128xf32>
    %31 = arith.subf %1, %30 : vector<1x128xf32>
    %32 = vector.broadcast %29 : vector<1x128xf32> to vector<8x128xf32>
    %33 = arith.mulf %12, %32 : vector<8x128xf32>
    %34 = vector.broadcast %31 : vector<1x128xf32> to vector<8x128xf32>
    %35 = arith.addf %33, %34 : vector<8x128xf32>
    %cst_21 = arith.constant 0.000000e+00 : f32
    %36 = vector.broadcast %cst_21 : f32 to vector<8x128xf32>
    %37 = arith.maximumf %35, %36 : vector<8x128xf32>
    %c0_22 = arith.constant 0 : index
    %c0_23 = arith.constant 0 : index
    %38 = vector.load %arg6[%c0_22, %c0_23] : memref<128x128xf32, #tpu.memory_space<vmem>>, vector<8x128xf32>
    tpu.vector_store %arg6[%c0_22, %c0_23], %37 {strides = array<i32>} : memref<128x128xf32, #tpu.memory_space<vmem>>, vector<8x128xf32>,
    %c8 = arith.constant 8 : index
    %c0_24 = arith.constant 0 : index
    %39 = vector.load %arg6[%c8, %c0_24] : memref<128x128xf32, #tpu.memory_space<vmem>>, vector<8x128xf32>
    %cst_25 = arith.constant dense<0.000000e+00> : vector<128xf32>
    %40 = vector.multi_reduction <add>, %39, %cst_25 [0] : vector<8x128xf32> to vector<128xf32>
    %41 = vector.shape_cast %40 : vector<128xf32> to vector<1x128xf32>
    %cst_26 = arith.constant 1.250000e-01 : f32
    %42 = vector.broadcast %cst_26 : f32 to vector<1x128xf32>
    %43 = arith.mulf %41, %42 : vector<1x128xf32>
    %44 = arith.mulf %39, %39 : vector<8x128xf32>
    %cst_27 = arith.constant dense<0.000000e+00> : vector<128xf32>
    %45 = vector.multi_reduction <add>, %44, %cst_27 [0] : vector<8x128xf32> to vector<128xf32>
    %46 = vector.shape_cast %45 : vector<128xf32> to vector<1x128xf32>
    %cst_28 = arith.constant 1.250000e-01 : f32
    %47 = vector.broadcast %cst_28 : f32 to vector<1x128xf32>
    %48 = arith.mulf %46, %47 : vector<1x128xf32>
    %49 = arith.mulf %43, %43 : vector<1x128xf32>
    %50 = arith.subf %48, %49 : vector<1x128xf32>
    %cst_29 = arith.constant 0.000000e+00 : f32
    %51 = vector.broadcast %cst_29 : f32 to vector<1x128xf32>
    %52 = arith.maximumf %50, %51 : vector<1x128xf32>
    %cst_30 = arith.constant 9.99999974E-6 : f32
    %53 = vector.broadcast %cst_30 : f32 to vector<1x128xf32>
    %54 = arith.addf %52, %53 : vector<1x128xf32>
    %55 = math.rsqrt %54 : vector<1x128xf32>
    %56 = arith.mulf %0, %55 : vector<1x128xf32>
    %57 = arith.mulf %43, %56 : vector<1x128xf32>
    %58 = arith.subf %1, %57 : vector<1x128xf32>
    %59 = vector.broadcast %56 : vector<1x128xf32> to vector<8x128xf32>
    %60 = arith.mulf %39, %59 : vector<8x128xf32>
    %61 = vector.broadcast %58 : vector<1x128xf32> to vector<8x128xf32>
    %62 = arith.addf %60, %61 : vector<8x128xf32>
    %cst_31 = arith.constant 0.000000e+00 : f32
    %63 = vector.broadcast %cst_31 : f32 to vector<8x128xf32>
    %64 = arith.maximumf %62, %63 : vector<8x128xf32>
    %c8_32 = arith.constant 8 : index
    %c0_33 = arith.constant 0 : index
    %65 = vector.load %arg6[%c8_32, %c0_33] : memref<128x128xf32, #tpu.memory_space<vmem>>, vector<8x128xf32>
    tpu.vector_store %arg6[%c8_32, %c0_33], %64 {strides = array<i32>} : memref<128x128xf32, #tpu.memory_space<vmem>>, vector<8x128xf32>,
    %c16 = arith.constant 16 : index
    %c0_34 = arith.constant 0 : index
    %66 = vector.load %arg6[%c16, %c0_34] : memref<128x128xf32, #tpu.memory_space<vmem>>, vector<8x128xf32>
    %cst_35 = arith.constant dense<0.000000e+00> : vector<128xf32>
    %67 = vector.multi_reduction <add>, %66, %cst_35 [0] : vector<8x128xf32> to vector<128xf32>
    %68 = vector.shape_cast %67 : vector<128xf32> to vector<1x128xf32>
    %cst_36 = arith.constant 1.250000e-01 : f32
    %69 = vector.broadcast %cst_36 : f32 to vector<1x128xf32>
    %70 = arith.mulf %68, %69 : vector<1x128xf32>
    %71 = arith.mulf %66, %66 : vector<8x128xf32>
    %cst_37 = arith.constant dense<0.000000e+00> : vector<128xf32>
    %72 = vector.multi_reduction <add>, %71, %cst_37 [0] : vector<8x128xf32> to vector<128xf32>
    %73 = vector.shape_cast %72 : vector<128xf32> to vector<1x128xf32>
    %cst_38 = arith.constant 1.250000e-01 : f32
    %74 = vector.broadcast %cst_38 : f32 to vector<1x128xf32>
    %75 = arith.mulf %73, %74 : vector<1x128xf32>
    %76 = arith.mulf %70, %70 : vector<1x128xf32>
    %77 = arith.subf %75, %76 : vector<1x128xf32>
    %cst_39 = arith.constant 0.000000e+00 : f32
    %78 = vector.broadcast %cst_39 : f32 to vector<1x128xf32>
    %79 = arith.maximumf %77, %78 : vector<1x128xf32>
    %cst_40 = arith.constant 9.99999974E-6 : f32
    %80 = vector.broadcast %cst_40 : f32 to vector<1x128xf32>
    %81 = arith.addf %79, %80 : vector<1x128xf32>
    %82 = math.rsqrt %81 : vector<1x128xf32>
    %83 = arith.mulf %0, %82 : vector<1x128xf32>
    %84 = arith.mulf %70, %83 : vector<1x128xf32>
    %85 = arith.subf %1, %84 : vector<1x128xf32>
    %86 = vector.broadcast %83 : vector<1x128xf32> to vector<8x128xf32>
    %87 = arith.mulf %66, %86 : vector<8x128xf32>
    %88 = vector.broadcast %85 : vector<1x128xf32> to vector<8x128xf32>
    %89 = arith.addf %87, %88 : vector<8x128xf32>
    %cst_41 = arith.constant 0.000000e+00 : f32
    %90 = vector.broadcast %cst_41 : f32 to vector<8x128xf32>
    %91 = arith.maximumf %89, %90 : vector<8x128xf32>
    %c16_42 = arith.constant 16 : index
    %c0_43 = arith.constant 0 : index
    %92 = vector.load %arg6[%c16_42, %c0_43] : memref<128x128xf32, #tpu.memory_space<vmem>>, vector<8x128xf32>
    tpu.vector_store %arg6[%c16_42, %c0_43], %91 {strides = array<i32>} : memref<128x128xf32, #tpu.memory_space<vmem>>, vector<8x128xf32>,
    %c24 = arith.constant 24 : index
    %c0_44 = arith.constant 0 : index
    %93 = vector.load %arg6[%c24, %c0_44] : memref<128x128xf32, #tpu.memory_space<vmem>>, vector<8x128xf32>
    %cst_45 = arith.constant dense<0.000000e+00> : vector<128xf32>
    %94 = vector.multi_reduction <add>, %93, %cst_45 [0] : vector<8x128xf32> to vector<128xf32>
    %95 = vector.shape_cast %94 : vector<128xf32> to vector<1x128xf32>
    %cst_46 = arith.constant 1.250000e-01 : f32
    %96 = vector.broadcast %cst_46 : f32 to vector<1x128xf32>
    %97 = arith.mulf %95, %96 : vector<1x128xf32>
    %98 = arith.mulf %93, %93 : vector<8x128xf32>
    %cst_47 = arith.constant dense<0.000000e+00> : vector<128xf32>
    %99 = vector.multi_reduction <add>, %98, %cst_47 [0] : vector<8x128xf32> to vector<128xf32>
    %100 = vector.shape_cast %99 : vector<128xf32> to vector<1x128xf32>
    %cst_48 = arith.constant 1.250000e-01 : f32
    %101 = vector.broadcast %cst_48 : f32 to vector<1x128xf32>
    %102 = arith.mulf %100, %101 : vector<1x128xf32>
    %103 = arith.mulf %97, %97 : vector<1x128xf32>
    %104 = arith.subf %102, %103 : vector<1x128xf32>
    %cst_49 = arith.constant 0.000000e+00 : f32
    %105 = vector.broadcast %cst_49 : f32 to vector<1x128xf32>
    %106 = arith.maximumf %104, %105 : vector<1x128xf32>
    %cst_50 = arith.constant 9.99999974E-6 : f32
    %107 = vector.broadcast %cst_50 : f32 to vector<1x128xf32>
    %108 = arith.addf %106, %107 : vector<1x128xf32>
    %109 = math.rsqrt %108 : vector<1x128xf32>
    %110 = arith.mulf %0, %109 : vector<1x128xf32>
    %111 = arith.mulf %97, %110 : vector<1x128xf32>
    %112 = arith.subf %1, %111 : vector<1x128xf32>
    %113 = vector.broadcast %110 : vector<1x128xf32> to vector<8x128xf32>
    %114 = arith.mulf %93, %113 : vector<8x128xf32>
    %115 = vector.broadcast %112 : vector<1x128xf32> to vector<8x128xf32>
    %116 = arith.addf %114, %115 : vector<8x128xf32>
    %cst_51 = arith.constant 0.000000e+00 : f32
    %117 = vector.broadcast %cst_51 : f32 to vector<8x128xf32>
    %118 = arith.maximumf %116, %117 : vector<8x128xf32>
    %c24_52 = arith.constant 24 : index
    %c0_53 = arith.constant 0 : index
    %119 = vector.load %arg6[%c24_52, %c0_53] : memref<128x128xf32, #tpu.memory_space<vmem>>, vector<8x128xf32>
    tpu.vector_store %arg6[%c24_52, %c0_53], %118 {strides = array<i32>} : memref<128x128xf32, #tpu.memory_space<vmem>>, vector<8x128xf32>,
    %c32 = arith.constant 32 : index
    %c0_54 = arith.constant 0 : index
    %120 = vector.load %arg6[%c32, %c0_54] : memref<128x128xf32, #tpu.memory_space<vmem>>, vector<8x128xf32>
    %cst_55 = arith.constant dense<0.000000e+00> : vector<128xf32>
    %121 = vector.multi_reduction <add>, %120, %cst_55 [0] : vector<8x128xf32> to vector<128xf32>
    %122 = vector.shape_cast %121 : vector<128xf32> to vector<1x128xf32>
    %cst_56 = arith.constant 1.250000e-01 : f32
    %123 = vector.broadcast %cst_56 : f32 to vector<1x128xf32>
    %124 = arith.mulf %122, %123 : vector<1x128xf32>
    %125 = arith.mulf %120, %120 : vector<8x128xf32>
    %cst_57 = arith.constant dense<0.000000e+00> : vector<128xf32>
    %126 = vector.multi_reduction <add>, %125, %cst_57 [0] : vector<8x128xf32> to vector<128xf32>
    %127 = vector.shape_cast %126 : vector<128xf32> to vector<1x128xf32>
    %cst_58 = arith.constant 1.250000e-01 : f32
    %128 = vector.broadcast %cst_58 : f32 to vector<1x128xf32>
    %129 = arith.mulf %127, %128 : vector<1x128xf32>
    %130 = arith.mulf %124, %124 : vector<1x128xf32>
    %131 = arith.subf %129, %130 : vector<1x128xf32>
    %cst_59 = arith.constant 0.000000e+00 : f32
    %132 = vector.broadcast %cst_59 : f32 to vector<1x128xf32>
    %133 = arith.maximumf %131, %132 : vector<1x128xf32>
    %cst_60 = arith.constant 9.99999974E-6 : f32
    %134 = vector.broadcast %cst_60 : f32 to vector<1x128xf32>
    %135 = arith.addf %133, %134 : vector<1x128xf32>
    %136 = math.rsqrt %135 : vector<1x128xf32>
    %137 = arith.mulf %0, %136 : vector<1x128xf32>
    %138 = arith.mulf %124, %137 : vector<1x128xf32>
    %139 = arith.subf %1, %138 : vector<1x128xf32>
    %140 = vector.broadcast %137 : vector<1x128xf32> to vector<8x128xf32>
    %141 = arith.mulf %120, %140 : vector<8x128xf32>
    %142 = vector.broadcast %139 : vector<1x128xf32> to vector<8x128xf32>
    %143 = arith.addf %141, %142 : vector<8x128xf32>
    %cst_61 = arith.constant 0.000000e+00 : f32
    %144 = vector.broadcast %cst_61 : f32 to vector<8x128xf32>
    %145 = arith.maximumf %143, %144 : vector<8x128xf32>
    %c32_62 = arith.constant 32 : index
    %c0_63 = arith.constant 0 : index
    %146 = vector.load %arg6[%c32_62, %c0_63] : memref<128x128xf32, #tpu.memory_space<vmem>>, vector<8x128xf32>
    tpu.vector_store %arg6[%c32_62, %c0_63], %145 {strides = array<i32>} : memref<128x128xf32, #tpu.memory_space<vmem>>, vector<8x128xf32>,
    %c40 = arith.constant 40 : index
    %c0_64 = arith.constant 0 : index
    %147 = vector.load %arg6[%c40, %c0_64] : memref<128x128xf32, #tpu.memory_space<vmem>>, vector<8x128xf32>
    %cst_65 = arith.constant dense<0.000000e+00> : vector<128xf32>
    %148 = vector.multi_reduction <add>, %147, %cst_65 [0] : vector<8x128xf32> to vector<128xf32>
    %149 = vector.shape_cast %148 : vector<128xf32> to vector<1x128xf32>
    %cst_66 = arith.constant 1.250000e-01 : f32
    %150 = vector.broadcast %cst_66 : f32 to vector<1x128xf32>
    %151 = arith.mulf %149, %150 : vector<1x128xf32>
    %152 = arith.mulf %147, %147 : vector<8x128xf32>
    %cst_67 = arith.constant dense<0.000000e+00> : vector<128xf32>
    %153 = vector.multi_reduction <add>, %152, %cst_67 [0] : vector<8x128xf32> to vector<128xf32>
    %154 = vector.shape_cast %153 : vector<128xf32> to vector<1x128xf32>
    %cst_68 = arith.constant 1.250000e-01 : f32
    %155 = vector.broadcast %cst_68 : f32 to vector<1x128xf32>
    %156 = arith.mulf %154, %155 : vector<1x128xf32>
    %157 = arith.mulf %151, %151 : vector<1x128xf32>
    %158 = arith.subf %156, %157 : vector<1x128xf32>
    %cst_69 = arith.constant 0.000000e+00 : f32
    %159 = vector.broadcast %cst_69 : f32 to vector<1x128xf32>
    %160 = arith.maximumf %158, %159 : vector<1x128xf32>
    %cst_70 = arith.constant 9.99999974E-6 : f32
    %161 = vector.broadcast %cst_70 : f32 to vector<1x128xf32>
    %162 = arith.addf %160, %161 : vector<1x128xf32>
    %163 = math.rsqrt %162 : vector<1x128xf32>
    %164 = arith.mulf %0, %163 : vector<1x128xf32>
    %165 = arith.mulf %151, %164 : vector<1x128xf32>
    %166 = arith.subf %1, %165 : vector<1x128xf32>
    %167 = vector.broadcast %164 : vector<1x128xf32> to vector<8x128xf32>
    %168 = arith.mulf %147, %167 : vector<8x128xf32>
    %169 = vector.broadcast %166 : vector<1x128xf32> to vector<8x128xf32>
    %170 = arith.addf %168, %169 : vector<8x128xf32>
    %cst_71 = arith.constant 0.000000e+00 : f32
    %171 = vector.broadcast %cst_71 : f32 to vector<8x128xf32>
    %172 = arith.maximumf %170, %171 : vector<8x128xf32>
    %c40_72 = arith.constant 40 : index
    %c0_73 = arith.constant 0 : index
    %173 = vector.load %arg6[%c40_72, %c0_73] : memref<128x128xf32, #tpu.memory_space<vmem>>, vector<8x128xf32>
    tpu.vector_store %arg6[%c40_72, %c0_73], %172 {strides = array<i32>} : memref<128x128xf32, #tpu.memory_space<vmem>>, vector<8x128xf32>,
    %c48 = arith.constant 48 : index
    %c0_74 = arith.constant 0 : index
    %174 = vector.load %arg6[%c48, %c0_74] : memref<128x128xf32, #tpu.memory_space<vmem>>, vector<8x128xf32>
    %cst_75 = arith.constant dense<0.000000e+00> : vector<128xf32>
    %175 = vector.multi_reduction <add>, %174, %cst_75 [0] : vector<8x128xf32> to vector<128xf32>
    %176 = vector.shape_cast %175 : vector<128xf32> to vector<1x128xf32>
    %cst_76 = arith.constant 1.250000e-01 : f32
    %177 = vector.broadcast %cst_76 : f32 to vector<1x128xf32>
    %178 = arith.mulf %176, %177 : vector<1x128xf32>
    %179 = arith.mulf %174, %174 : vector<8x128xf32>
    %cst_77 = arith.constant dense<0.000000e+00> : vector<128xf32>
    %180 = vector.multi_reduction <add>, %179, %cst_77 [0] : vector<8x128xf32> to vector<128xf32>
    %181 = vector.shape_cast %180 : vector<128xf32> to vector<1x128xf32>
    %cst_78 = arith.constant 1.250000e-01 : f32
    %182 = vector.broadcast %cst_78 : f32 to vector<1x128xf32>
    %183 = arith.mulf %181, %182 : vector<1x128xf32>
    %184 = arith.mulf %178, %178 : vector<1x128xf32>
    %185 = arith.subf %183, %184 : vector<1x128xf32>
    %cst_79 = arith.constant 0.000000e+00 : f32
    %186 = vector.broadcast %cst_79 : f32 to vector<1x128xf32>
    %187 = arith.maximumf %185, %186 : vector<1x128xf32>
    %cst_80 = arith.constant 9.99999974E-6 : f32
    %188 = vector.broadcast %cst_80 : f32 to vector<1x128xf32>
    %189 = arith.addf %187, %188 : vector<1x128xf32>
    %190 = math.rsqrt %189 : vector<1x128xf32>
    %191 = arith.mulf %0, %190 : vector<1x128xf32>
    %192 = arith.mulf %178, %191 : vector<1x128xf32>
    %193 = arith.subf %1, %192 : vector<1x128xf32>
    %194 = vector.broadcast %191 : vector<1x128xf32> to vector<8x128xf32>
    %195 = arith.mulf %174, %194 : vector<8x128xf32>
    %196 = vector.broadcast %193 : vector<1x128xf32> to vector<8x128xf32>
    %197 = arith.addf %195, %196 : vector<8x128xf32>
    %cst_81 = arith.constant 0.000000e+00 : f32
    %198 = vector.broadcast %cst_81 : f32 to vector<8x128xf32>
    %199 = arith.maximumf %197, %198 : vector<8x128xf32>
    %c48_82 = arith.constant 48 : index
    %c0_83 = arith.constant 0 : index
    %200 = vector.load %arg6[%c48_82, %c0_83] : memref<128x128xf32, #tpu.memory_space<vmem>>, vector<8x128xf32>
    tpu.vector_store %arg6[%c48_82, %c0_83], %199 {strides = array<i32>} : memref<128x128xf32, #tpu.memory_space<vmem>>, vector<8x128xf32>,
    %c56 = arith.constant 56 : index
    %c0_84 = arith.constant 0 : index
    %201 = vector.load %arg6[%c56, %c0_84] : memref<128x128xf32, #tpu.memory_space<vmem>>, vector<8x128xf32>
    %cst_85 = arith.constant dense<0.000000e+00> : vector<128xf32>
    %202 = vector.multi_reduction <add>, %201, %cst_85 [0] : vector<8x128xf32> to vector<128xf32>
    %203 = vector.shape_cast %202 : vector<128xf32> to vector<1x128xf32>
    %cst_86 = arith.constant 1.250000e-01 : f32
    %204 = vector.broadcast %cst_86 : f32 to vector<1x128xf32>
    %205 = arith.mulf %203, %204 : vector<1x128xf32>
    %206 = arith.mulf %201, %201 : vector<8x128xf32>
    %cst_87 = arith.constant dense<0.000000e+00> : vector<128xf32>
    %207 = vector.multi_reduction <add>, %206, %cst_87 [0] : vector<8x128xf32> to vector<128xf32>
    %208 = vector.shape_cast %207 : vector<128xf32> to vector<1x128xf32>
    %cst_88 = arith.constant 1.250000e-01 : f32
    %209 = vector.broadcast %cst_88 : f32 to vector<1x128xf32>
    %210 = arith.mulf %208, %209 : vector<1x128xf32>
    %211 = arith.mulf %205, %205 : vector<1x128xf32>
    %212 = arith.subf %210, %211 : vector<1x128xf32>
    %cst_89 = arith.constant 0.000000e+00 : f32
    %213 = vector.broadcast %cst_89 : f32 to vector<1x128xf32>
    %214 = arith.maximumf %212, %213 : vector<1x128xf32>
    %cst_90 = arith.constant 9.99999974E-6 : f32
    %215 = vector.broadcast %cst_90 : f32 to vector<1x128xf32>
    %216 = arith.addf %214, %215 : vector<1x128xf32>
    %217 = math.rsqrt %216 : vector<1x128xf32>
    %218 = arith.mulf %0, %217 : vector<1x128xf32>
    %219 = arith.mulf %205, %218 : vector<1x128xf32>
    %220 = arith.subf %1, %219 : vector<1x128xf32>
    %221 = vector.broadcast %218 : vector<1x128xf32> to vector<8x128xf32>
    %222 = arith.mulf %201, %221 : vector<8x128xf32>
    %223 = vector.broadcast %220 : vector<1x128xf32> to vector<8x128xf32>
    %224 = arith.addf %222, %223 : vector<8x128xf32>
    %cst_91 = arith.constant 0.000000e+00 : f32
    %225 = vector.broadcast %cst_91 : f32 to vector<8x128xf32>
    %226 = arith.maximumf %224, %225 : vector<8x128xf32>
    %c56_92 = arith.constant 56 : index
    %c0_93 = arith.constant 0 : index
    %227 = vector.load %arg6[%c56_92, %c0_93] : memref<128x128xf32, #tpu.memory_space<vmem>>, vector<8x128xf32>
    tpu.vector_store %arg6[%c56_92, %c0_93], %226 {strides = array<i32>} : memref<128x128xf32, #tpu.memory_space<vmem>>, vector<8x128xf32>,
    %c64 = arith.constant 64 : index
    %c0_94 = arith.constant 0 : index
    %228 = vector.load %arg6[%c64, %c0_94] : memref<128x128xf32, #tpu.memory_space<vmem>>, vector<8x128xf32>
    %cst_95 = arith.constant dense<0.000000e+00> : vector<128xf32>
    %229 = vector.multi_reduction <add>, %228, %cst_95 [0] : vector<8x128xf32> to vector<128xf32>
    %230 = vector.shape_cast %229 : vector<128xf32> to vector<1x128xf32>
    %cst_96 = arith.constant 1.250000e-01 : f32
    %231 = vector.broadcast %cst_96 : f32 to vector<1x128xf32>
    %232 = arith.mulf %230, %231 : vector<1x128xf32>
    %233 = arith.mulf %228, %228 : vector<8x128xf32>
    %cst_97 = arith.constant dense<0.000000e+00> : vector<128xf32>
    %234 = vector.multi_reduction <add>, %233, %cst_97 [0] : vector<8x128xf32> to vector<128xf32>
    %235 = vector.shape_cast %234 : vector<128xf32> to vector<1x128xf32>
    %cst_98 = arith.constant 1.250000e-01 : f32
    %236 = vector.broadcast %cst_98 : f32 to vector<1x128xf32>
    %237 = arith.mulf %235, %236 : vector<1x128xf32>
    %238 = arith.mulf %232, %232 : vector<1x128xf32>
    %239 = arith.subf %237, %238 : vector<1x128xf32>
    %cst_99 = arith.constant 0.000000e+00 : f32
    %240 = vector.broadcast %cst_99 : f32 to vector<1x128xf32>
    %241 = arith.maximumf %239, %240 : vector<1x128xf32>
    %cst_100 = arith.constant 9.99999974E-6 : f32
    %242 = vector.broadcast %cst_100 : f32 to vector<1x128xf32>
    %243 = arith.addf %241, %242 : vector<1x128xf32>
    %244 = math.rsqrt %243 : vector<1x128xf32>
    %245 = arith.mulf %0, %244 : vector<1x128xf32>
    %246 = arith.mulf %232, %245 : vector<1x128xf32>
    %247 = arith.subf %1, %246 : vector<1x128xf32>
    %248 = vector.broadcast %245 : vector<1x128xf32> to vector<8x128xf32>
    %249 = arith.mulf %228, %248 : vector<8x128xf32>
    %250 = vector.broadcast %247 : vector<1x128xf32> to vector<8x128xf32>
    %251 = arith.addf %249, %250 : vector<8x128xf32>
    %cst_101 = arith.constant 0.000000e+00 : f32
    %252 = vector.broadcast %cst_101 : f32 to vector<8x128xf32>
    %253 = arith.maximumf %251, %252 : vector<8x128xf32>
    %c64_102 = arith.constant 64 : index
    %c0_103 = arith.constant 0 : index
    %254 = vector.load %arg6[%c64_102, %c0_103] : memref<128x128xf32, #tpu.memory_space<vmem>>, vector<8x128xf32>
    tpu.vector_store %arg6[%c64_102, %c0_103], %253 {strides = array<i32>} : memref<128x128xf32, #tpu.memory_space<vmem>>, vector<8x128xf32>,
    %c72 = arith.constant 72 : index
    %c0_104 = arith.constant 0 : index
    %255 = vector.load %arg6[%c72, %c0_104] : memref<128x128xf32, #tpu.memory_space<vmem>>, vector<8x128xf32>
    %cst_105 = arith.constant dense<0.000000e+00> : vector<128xf32>
    %256 = vector.multi_reduction <add>, %255, %cst_105 [0] : vector<8x128xf32> to vector<128xf32>
    %257 = vector.shape_cast %256 : vector<128xf32> to vector<1x128xf32>
    %cst_106 = arith.constant 1.250000e-01 : f32
    %258 = vector.broadcast %cst_106 : f32 to vector<1x128xf32>
    %259 = arith.mulf %257, %258 : vector<1x128xf32>
    %260 = arith.mulf %255, %255 : vector<8x128xf32>
    %cst_107 = arith.constant dense<0.000000e+00> : vector<128xf32>
    %261 = vector.multi_reduction <add>, %260, %cst_107 [0] : vector<8x128xf32> to vector<128xf32>
    %262 = vector.shape_cast %261 : vector<128xf32> to vector<1x128xf32>
    %cst_108 = arith.constant 1.250000e-01 : f32
    %263 = vector.broadcast %cst_108 : f32 to vector<1x128xf32>
    %264 = arith.mulf %262, %263 : vector<1x128xf32>
    %265 = arith.mulf %259, %259 : vector<1x128xf32>
    %266 = arith.subf %264, %265 : vector<1x128xf32>
    %cst_109 = arith.constant 0.000000e+00 : f32
    %267 = vector.broadcast %cst_109 : f32 to vector<1x128xf32>
    %268 = arith.maximumf %266, %267 : vector<1x128xf32>
    %cst_110 = arith.constant 9.99999974E-6 : f32
    %269 = vector.broadcast %cst_110 : f32 to vector<1x128xf32>
    %270 = arith.addf %268, %269 : vector<1x128xf32>
    %271 = math.rsqrt %270 : vector<1x128xf32>
    %272 = arith.mulf %0, %271 : vector<1x128xf32>
    %273 = arith.mulf %259, %272 : vector<1x128xf32>
    %274 = arith.subf %1, %273 : vector<1x128xf32>
    %275 = vector.broadcast %272 : vector<1x128xf32> to vector<8x128xf32>
    %276 = arith.mulf %255, %275 : vector<8x128xf32>
    %277 = vector.broadcast %274 : vector<1x128xf32> to vector<8x128xf32>
    %278 = arith.addf %276, %277 : vector<8x128xf32>
    %cst_111 = arith.constant 0.000000e+00 : f32
    %279 = vector.broadcast %cst_111 : f32 to vector<8x128xf32>
    %280 = arith.maximumf %278, %279 : vector<8x128xf32>
    %c72_112 = arith.constant 72 : index
    %c0_113 = arith.constant 0 : index
    %281 = vector.load %arg6[%c72_112, %c0_113] : memref<128x128xf32, #tpu.memory_space<vmem>>, vector<8x128xf32>
    tpu.vector_store %arg6[%c72_112, %c0_113], %280 {strides = array<i32>} : memref<128x128xf32, #tpu.memory_space<vmem>>, vector<8x128xf32>,
    %c80 = arith.constant 80 : index
    %c0_114 = arith.constant 0 : index
    %282 = vector.load %arg6[%c80, %c0_114] : memref<128x128xf32, #tpu.memory_space<vmem>>, vector<8x128xf32>
    %cst_115 = arith.constant dense<0.000000e+00> : vector<128xf32>
    %283 = vector.multi_reduction <add>, %282, %cst_115 [0] : vector<8x128xf32> to vector<128xf32>
    %284 = vector.shape_cast %283 : vector<128xf32> to vector<1x128xf32>
    %cst_116 = arith.constant 1.250000e-01 : f32
    %285 = vector.broadcast %cst_116 : f32 to vector<1x128xf32>
    %286 = arith.mulf %284, %285 : vector<1x128xf32>
    %287 = arith.mulf %282, %282 : vector<8x128xf32>
    %cst_117 = arith.constant dense<0.000000e+00> : vector<128xf32>
    %288 = vector.multi_reduction <add>, %287, %cst_117 [0] : vector<8x128xf32> to vector<128xf32>
    %289 = vector.shape_cast %288 : vector<128xf32> to vector<1x128xf32>
    %cst_118 = arith.constant 1.250000e-01 : f32
    %290 = vector.broadcast %cst_118 : f32 to vector<1x128xf32>
    %291 = arith.mulf %289, %290 : vector<1x128xf32>
    %292 = arith.mulf %286, %286 : vector<1x128xf32>
    %293 = arith.subf %291, %292 : vector<1x128xf32>
    %cst_119 = arith.constant 0.000000e+00 : f32
    %294 = vector.broadcast %cst_119 : f32 to vector<1x128xf32>
    %295 = arith.maximumf %293, %294 : vector<1x128xf32>
    %cst_120 = arith.constant 9.99999974E-6 : f32
    %296 = vector.broadcast %cst_120 : f32 to vector<1x128xf32>
    %297 = arith.addf %295, %296 : vector<1x128xf32>
    %298 = math.rsqrt %297 : vector<1x128xf32>
    %299 = arith.mulf %0, %298 : vector<1x128xf32>
    %300 = arith.mulf %286, %299 : vector<1x128xf32>
    %301 = arith.subf %1, %300 : vector<1x128xf32>
    %302 = vector.broadcast %299 : vector<1x128xf32> to vector<8x128xf32>
    %303 = arith.mulf %282, %302 : vector<8x128xf32>
    %304 = vector.broadcast %301 : vector<1x128xf32> to vector<8x128xf32>
    %305 = arith.addf %303, %304 : vector<8x128xf32>
    %cst_121 = arith.constant 0.000000e+00 : f32
    %306 = vector.broadcast %cst_121 : f32 to vector<8x128xf32>
    %307 = arith.maximumf %305, %306 : vector<8x128xf32>
    %c80_122 = arith.constant 80 : index
    %c0_123 = arith.constant 0 : index
    %308 = vector.load %arg6[%c80_122, %c0_123] : memref<128x128xf32, #tpu.memory_space<vmem>>, vector<8x128xf32>
    tpu.vector_store %arg6[%c80_122, %c0_123], %307 {strides = array<i32>} : memref<128x128xf32, #tpu.memory_space<vmem>>, vector<8x128xf32>,
    %c88 = arith.constant 88 : index
    %c0_124 = arith.constant 0 : index
    %309 = vector.load %arg6[%c88, %c0_124] : memref<128x128xf32, #tpu.memory_space<vmem>>, vector<8x128xf32>
    %cst_125 = arith.constant dense<0.000000e+00> : vector<128xf32>
    %310 = vector.multi_reduction <add>, %309, %cst_125 [0] : vector<8x128xf32> to vector<128xf32>
    %311 = vector.shape_cast %310 : vector<128xf32> to vector<1x128xf32>
    %cst_126 = arith.constant 1.250000e-01 : f32
    %312 = vector.broadcast %cst_126 : f32 to vector<1x128xf32>
    %313 = arith.mulf %311, %312 : vector<1x128xf32>
    %314 = arith.mulf %309, %309 : vector<8x128xf32>
    %cst_127 = arith.constant dense<0.000000e+00> : vector<128xf32>
    %315 = vector.multi_reduction <add>, %314, %cst_127 [0] : vector<8x128xf32> to vector<128xf32>
    %316 = vector.shape_cast %315 : vector<128xf32> to vector<1x128xf32>
    %cst_128 = arith.constant 1.250000e-01 : f32
    %317 = vector.broadcast %cst_128 : f32 to vector<1x128xf32>
    %318 = arith.mulf %316, %317 : vector<1x128xf32>
    %319 = arith.mulf %313, %313 : vector<1x128xf32>
    %320 = arith.subf %318, %319 : vector<1x128xf32>
    %cst_129 = arith.constant 0.000000e+00 : f32
    %321 = vector.broadcast %cst_129 : f32 to vector<1x128xf32>
    %322 = arith.maximumf %320, %321 : vector<1x128xf32>
    %cst_130 = arith.constant 9.99999974E-6 : f32
    %323 = vector.broadcast %cst_130 : f32 to vector<1x128xf32>
    %324 = arith.addf %322, %323 : vector<1x128xf32>
    %325 = math.rsqrt %324 : vector<1x128xf32>
    %326 = arith.mulf %0, %325 : vector<1x128xf32>
    %327 = arith.mulf %313, %326 : vector<1x128xf32>
    %328 = arith.subf %1, %327 : vector<1x128xf32>
    %329 = vector.broadcast %326 : vector<1x128xf32> to vector<8x128xf32>
    %330 = arith.mulf %309, %329 : vector<8x128xf32>
    %331 = vector.broadcast %328 : vector<1x128xf32> to vector<8x128xf32>
    %332 = arith.addf %330, %331 : vector<8x128xf32>
    %cst_131 = arith.constant 0.000000e+00 : f32
    %333 = vector.broadcast %cst_131 : f32 to vector<8x128xf32>
    %334 = arith.maximumf %332, %333 : vector<8x128xf32>
    %c88_132 = arith.constant 88 : index
    %c0_133 = arith.constant 0 : index
    %335 = vector.load %arg6[%c88_132, %c0_133] : memref<128x128xf32, #tpu.memory_space<vmem>>, vector<8x128xf32>
    tpu.vector_store %arg6[%c88_132, %c0_133], %334 {strides = array<i32>} : memref<128x128xf32, #tpu.memory_space<vmem>>, vector<8x128xf32>,
    %c96 = arith.constant 96 : index
    %c0_134 = arith.constant 0 : index
    %336 = vector.load %arg6[%c96, %c0_134] : memref<128x128xf32, #tpu.memory_space<vmem>>, vector<8x128xf32>
    %cst_135 = arith.constant dense<0.000000e+00> : vector<128xf32>
    %337 = vector.multi_reduction <add>, %336, %cst_135 [0] : vector<8x128xf32> to vector<128xf32>
    %338 = vector.shape_cast %337 : vector<128xf32> to vector<1x128xf32>
    %cst_136 = arith.constant 1.250000e-01 : f32
    %339 = vector.broadcast %cst_136 : f32 to vector<1x128xf32>
    %340 = arith.mulf %338, %339 : vector<1x128xf32>
    %341 = arith.mulf %336, %336 : vector<8x128xf32>
    %cst_137 = arith.constant dense<0.000000e+00> : vector<128xf32>
    %342 = vector.multi_reduction <add>, %341, %cst_137 [0] : vector<8x128xf32> to vector<128xf32>
    %343 = vector.shape_cast %342 : vector<128xf32> to vector<1x128xf32>
    %cst_138 = arith.constant 1.250000e-01 : f32
    %344 = vector.broadcast %cst_138 : f32 to vector<1x128xf32>
    %345 = arith.mulf %343, %344 : vector<1x128xf32>
    %346 = arith.mulf %340, %340 : vector<1x128xf32>
    %347 = arith.subf %345, %346 : vector<1x128xf32>
    %cst_139 = arith.constant 0.000000e+00 : f32
    %348 = vector.broadcast %cst_139 : f32 to vector<1x128xf32>
    %349 = arith.maximumf %347, %348 : vector<1x128xf32>
    %cst_140 = arith.constant 9.99999974E-6 : f32
    %350 = vector.broadcast %cst_140 : f32 to vector<1x128xf32>
    %351 = arith.addf %349, %350 : vector<1x128xf32>
    %352 = math.rsqrt %351 : vector<1x128xf32>
    %353 = arith.mulf %0, %352 : vector<1x128xf32>
    %354 = arith.mulf %340, %353 : vector<1x128xf32>
    %355 = arith.subf %1, %354 : vector<1x128xf32>
    %356 = vector.broadcast %353 : vector<1x128xf32> to vector<8x128xf32>
    %357 = arith.mulf %336, %356 : vector<8x128xf32>
    %358 = vector.broadcast %355 : vector<1x128xf32> to vector<8x128xf32>
    %359 = arith.addf %357, %358 : vector<8x128xf32>
    %cst_141 = arith.constant 0.000000e+00 : f32
    %360 = vector.broadcast %cst_141 : f32 to vector<8x128xf32>
    %361 = arith.maximumf %359, %360 : vector<8x128xf32>
    %c96_142 = arith.constant 96 : index
    %c0_143 = arith.constant 0 : index
    %362 = vector.load %arg6[%c96_142, %c0_143] : memref<128x128xf32, #tpu.memory_space<vmem>>, vector<8x128xf32>
    tpu.vector_store %arg6[%c96_142, %c0_143], %361 {strides = array<i32>} : memref<128x128xf32, #tpu.memory_space<vmem>>, vector<8x128xf32>,
    %c104 = arith.constant 104 : index
    %c0_144 = arith.constant 0 : index
    %363 = vector.load %arg6[%c104, %c0_144] : memref<128x128xf32, #tpu.memory_space<vmem>>, vector<8x128xf32>
    %cst_145 = arith.constant dense<0.000000e+00> : vector<128xf32>
    %364 = vector.multi_reduction <add>, %363, %cst_145 [0] : vector<8x128xf32> to vector<128xf32>
    %365 = vector.shape_cast %364 : vector<128xf32> to vector<1x128xf32>
    %cst_146 = arith.constant 1.250000e-01 : f32
    %366 = vector.broadcast %cst_146 : f32 to vector<1x128xf32>
    %367 = arith.mulf %365, %366 : vector<1x128xf32>
    %368 = arith.mulf %363, %363 : vector<8x128xf32>
    %cst_147 = arith.constant dense<0.000000e+00> : vector<128xf32>
    %369 = vector.multi_reduction <add>, %368, %cst_147 [0] : vector<8x128xf32> to vector<128xf32>
    %370 = vector.shape_cast %369 : vector<128xf32> to vector<1x128xf32>
    %cst_148 = arith.constant 1.250000e-01 : f32
    %371 = vector.broadcast %cst_148 : f32 to vector<1x128xf32>
    %372 = arith.mulf %370, %371 : vector<1x128xf32>
    %373 = arith.mulf %367, %367 : vector<1x128xf32>
    %374 = arith.subf %372, %373 : vector<1x128xf32>
    %cst_149 = arith.constant 0.000000e+00 : f32
    %375 = vector.broadcast %cst_149 : f32 to vector<1x128xf32>
    %376 = arith.maximumf %374, %375 : vector<1x128xf32>
    %cst_150 = arith.constant 9.99999974E-6 : f32
    %377 = vector.broadcast %cst_150 : f32 to vector<1x128xf32>
    %378 = arith.addf %376, %377 : vector<1x128xf32>
    %379 = math.rsqrt %378 : vector<1x128xf32>
    %380 = arith.mulf %0, %379 : vector<1x128xf32>
    %381 = arith.mulf %367, %380 : vector<1x128xf32>
    %382 = arith.subf %1, %381 : vector<1x128xf32>
    %383 = vector.broadcast %380 : vector<1x128xf32> to vector<8x128xf32>
    %384 = arith.mulf %363, %383 : vector<8x128xf32>
    %385 = vector.broadcast %382 : vector<1x128xf32> to vector<8x128xf32>
    %386 = arith.addf %384, %385 : vector<8x128xf32>
    %cst_151 = arith.constant 0.000000e+00 : f32
    %387 = vector.broadcast %cst_151 : f32 to vector<8x128xf32>
    %388 = arith.maximumf %386, %387 : vector<8x128xf32>
    %c104_152 = arith.constant 104 : index
    %c0_153 = arith.constant 0 : index
    %389 = vector.load %arg6[%c104_152, %c0_153] : memref<128x128xf32, #tpu.memory_space<vmem>>, vector<8x128xf32>
    tpu.vector_store %arg6[%c104_152, %c0_153], %388 {strides = array<i32>} : memref<128x128xf32, #tpu.memory_space<vmem>>, vector<8x128xf32>,
    %c112 = arith.constant 112 : index
    %c0_154 = arith.constant 0 : index
    %390 = vector.load %arg6[%c112, %c0_154] : memref<128x128xf32, #tpu.memory_space<vmem>>, vector<8x128xf32>
    %cst_155 = arith.constant dense<0.000000e+00> : vector<128xf32>
    %391 = vector.multi_reduction <add>, %390, %cst_155 [0] : vector<8x128xf32> to vector<128xf32>
    %392 = vector.shape_cast %391 : vector<128xf32> to vector<1x128xf32>
    %cst_156 = arith.constant 1.250000e-01 : f32
    %393 = vector.broadcast %cst_156 : f32 to vector<1x128xf32>
    %394 = arith.mulf %392, %393 : vector<1x128xf32>
    %395 = arith.mulf %390, %390 : vector<8x128xf32>
    %cst_157 = arith.constant dense<0.000000e+00> : vector<128xf32>
    %396 = vector.multi_reduction <add>, %395, %cst_157 [0] : vector<8x128xf32> to vector<128xf32>
    %397 = vector.shape_cast %396 : vector<128xf32> to vector<1x128xf32>
    %cst_158 = arith.constant 1.250000e-01 : f32
    %398 = vector.broadcast %cst_158 : f32 to vector<1x128xf32>
    %399 = arith.mulf %397, %398 : vector<1x128xf32>
    %400 = arith.mulf %394, %394 : vector<1x128xf32>
    %401 = arith.subf %399, %400 : vector<1x128xf32>
    %cst_159 = arith.constant 0.000000e+00 : f32
    %402 = vector.broadcast %cst_159 : f32 to vector<1x128xf32>
    %403 = arith.maximumf %401, %402 : vector<1x128xf32>
    %cst_160 = arith.constant 9.99999974E-6 : f32
    %404 = vector.broadcast %cst_160 : f32 to vector<1x128xf32>
    %405 = arith.addf %403, %404 : vector<1x128xf32>
    %406 = math.rsqrt %405 : vector<1x128xf32>
    %407 = arith.mulf %0, %406 : vector<1x128xf32>
    %408 = arith.mulf %394, %407 : vector<1x128xf32>
    %409 = arith.subf %1, %408 : vector<1x128xf32>
    %410 = vector.broadcast %407 : vector<1x128xf32> to vector<8x128xf32>
    %411 = arith.mulf %390, %410 : vector<8x128xf32>
    %412 = vector.broadcast %409 : vector<1x128xf32> to vector<8x128xf32>
    %413 = arith.addf %411, %412 : vector<8x128xf32>
    %cst_161 = arith.constant 0.000000e+00 : f32
    %414 = vector.broadcast %cst_161 : f32 to vector<8x128xf32>
    %415 = arith.maximumf %413, %414 : vector<8x128xf32>
    %c112_162 = arith.constant 112 : index
    %c0_163 = arith.constant 0 : index
    %416 = vector.load %arg6[%c112_162, %c0_163] : memref<128x128xf32, #tpu.memory_space<vmem>>, vector<8x128xf32>
    tpu.vector_store %arg6[%c112_162, %c0_163], %415 {strides = array<i32>} : memref<128x128xf32, #tpu.memory_space<vmem>>, vector<8x128xf32>,
    %c120 = arith.constant 120 : index
    %c0_164 = arith.constant 0 : index
    %417 = vector.load %arg6[%c120, %c0_164] : memref<128x128xf32, #tpu.memory_space<vmem>>, vector<8x128xf32>
    %cst_165 = arith.constant dense<0.000000e+00> : vector<128xf32>
    %418 = vector.multi_reduction <add>, %417, %cst_165 [0] : vector<8x128xf32> to vector<128xf32>
    %419 = vector.shape_cast %418 : vector<128xf32> to vector<1x128xf32>
    %cst_166 = arith.constant 1.250000e-01 : f32
    %420 = vector.broadcast %cst_166 : f32 to vector<1x128xf32>
    %421 = arith.mulf %419, %420 : vector<1x128xf32>
    %422 = arith.mulf %417, %417 : vector<8x128xf32>
    %cst_167 = arith.constant dense<0.000000e+00> : vector<128xf32>
    %423 = vector.multi_reduction <add>, %422, %cst_167 [0] : vector<8x128xf32> to vector<128xf32>
    %424 = vector.shape_cast %423 : vector<128xf32> to vector<1x128xf32>
    %cst_168 = arith.constant 1.250000e-01 : f32
    %425 = vector.broadcast %cst_168 : f32 to vector<1x128xf32>
    %426 = arith.mulf %424, %425 : vector<1x128xf32>
    %427 = arith.mulf %421, %421 : vector<1x128xf32>
    %428 = arith.subf %426, %427 : vector<1x128xf32>
    %cst_169 = arith.constant 0.000000e+00 : f32
    %429 = vector.broadcast %cst_169 : f32 to vector<1x128xf32>
    %430 = arith.maximumf %428, %429 : vector<1x128xf32>
    %cst_170 = arith.constant 9.99999974E-6 : f32
    %431 = vector.broadcast %cst_170 : f32 to vector<1x128xf32>
    %432 = arith.addf %430, %431 : vector<1x128xf32>
    %433 = math.rsqrt %432 : vector<1x128xf32>
    %434 = arith.mulf %0, %433 : vector<1x128xf32>
    %435 = arith.mulf %421, %434 : vector<1x128xf32>
    %436 = arith.subf %1, %435 : vector<1x128xf32>
    %437 = vector.broadcast %434 : vector<1x128xf32> to vector<8x128xf32>
    %438 = arith.mulf %417, %437 : vector<8x128xf32>
    %439 = vector.broadcast %436 : vector<1x128xf32> to vector<8x128xf32>
    %440 = arith.addf %438, %439 : vector<8x128xf32>
    %cst_171 = arith.constant 0.000000e+00 : f32
    %441 = vector.broadcast %cst_171 : f32 to vector<8x128xf32>
    %442 = arith.maximumf %440, %441 : vector<8x128xf32>
    %c120_172 = arith.constant 120 : index
    %c0_173 = arith.constant 0 : index
    %443 = vector.load %arg6[%c120_172, %c0_173] : memref<128x128xf32, #tpu.memory_space<vmem>>, vector<8x128xf32>
    tpu.vector_store %arg6[%c120_172, %c0_173], %442 {strides = array<i32>} : memref<128x128xf32, #tpu.memory_space<vmem>>, vector<8x128xf32>,
    %c0_174 = arith.constant 0 : index
    %c0_175 = arith.constant 0 : index
    %444 = vector.load %arg6[%c0_174, %c0_175] : memref<128x128xf32, #tpu.memory_space<vmem>>, vector<128x128xf32>
    %445 = arith.truncf %444 : vector<128x128xf32> to vector<128x128xbf16>
    %c0_176 = arith.constant 0 : index
    %c0_177 = arith.constant 0 : index
    %446 = vector.load %arg3[%c0_176, %c0_177] : memref<128x128xbf16, #tpu.memory_space<vmem>>, vector<128x128xbf16>
    %cst_178 = arith.constant dense<0.000000e+00> : vector<128x128xf32>
    %447 = tpu.matmul %445, %446, %cst_178 {dimension_numbers = #tpu.dot_dimension_numbers<[1], [0], [0], [1], [0, 0, 1, 1], [], []>} : vector<128x128xbf16>, vector<128x128xbf16>, vector<128x128xf32> -> vector<128x128xf32>
    %c0_179 = arith.constant 0 : index
    %c0_180 = arith.constant 0 : index
    %448 = vector.load %arg7[%c0_179, %c0_180] : memref<128x128xf32, #tpu.memory_space<vmem>>, vector<128x128xf32>
    tpu.vector_store %arg7[%c0_179, %c0_180], %447 {strides = array<i32>} : memref<128x128xf32, #tpu.memory_space<vmem>>, vector<128x128xf32>,
    %c0_181 = arith.constant 0 : index
    %c0_182 = arith.constant 0 : index
    %449 = vector.load %arg7[%c0_181, %c0_182] : memref<128x128xf32, #tpu.memory_space<vmem>>, vector<8x128xf32>
    %cst_183 = arith.constant dense<0.000000e+00> : vector<128xf32>
    %450 = vector.multi_reduction <add>, %449, %cst_183 [0] : vector<8x128xf32> to vector<128xf32>
    %451 = vector.shape_cast %450 : vector<128xf32> to vector<1x128xf32>
    %cst_184 = arith.constant 1.250000e-01 : f32
    %452 = vector.broadcast %cst_184 : f32 to vector<1x128xf32>
    %453 = arith.mulf %451, %452 : vector<1x128xf32>
    %454 = arith.mulf %449, %449 : vector<8x128xf32>
    %cst_185 = arith.constant dense<0.000000e+00> : vector<128xf32>
    %455 = vector.multi_reduction <add>, %454, %cst_185 [0] : vector<8x128xf32> to vector<128xf32>
    %456 = vector.shape_cast %455 : vector<128xf32> to vector<1x128xf32>
    %cst_186 = arith.constant 1.250000e-01 : f32
    %457 = vector.broadcast %cst_186 : f32 to vector<1x128xf32>
    %458 = arith.mulf %456, %457 : vector<1x128xf32>
    %459 = arith.mulf %453, %453 : vector<1x128xf32>
    %460 = arith.subf %458, %459 : vector<1x128xf32>
    %cst_187 = arith.constant 0.000000e+00 : f32
    %461 = vector.broadcast %cst_187 : f32 to vector<1x128xf32>
    %462 = arith.maximumf %460, %461 : vector<1x128xf32>
    %cst_188 = arith.constant 9.99999974E-6 : f32
    %463 = vector.broadcast %cst_188 : f32 to vector<1x128xf32>
    %464 = arith.addf %462, %463 : vector<1x128xf32>
    %465 = math.rsqrt %464 : vector<1x128xf32>
    %466 = arith.mulf %2, %465 : vector<1x128xf32>
    %467 = arith.mulf %453, %466 : vector<1x128xf32>
    %468 = arith.subf %3, %467 : vector<1x128xf32>
    %469 = vector.broadcast %466 : vector<1x128xf32> to vector<8x128xf32>
    %470 = arith.mulf %449, %469 : vector<8x128xf32>
    %471 = vector.broadcast %468 : vector<1x128xf32> to vector<8x128xf32>
    %472 = arith.addf %470, %471 : vector<8x128xf32>
    %cst_189 = arith.constant 0.000000e+00 : f32
    %473 = vector.broadcast %cst_189 : f32 to vector<8x128xf32>
    %474 = arith.maximumf %472, %473 : vector<8x128xf32>
    %c0_190 = arith.constant 0 : index
    %c0_191 = arith.constant 0 : index
    %475 = vector.load %arg7[%c0_190, %c0_191] : memref<128x128xf32, #tpu.memory_space<vmem>>, vector<8x128xf32>
    tpu.vector_store %arg7[%c0_190, %c0_191], %474 {strides = array<i32>} : memref<128x128xf32, #tpu.memory_space<vmem>>, vector<8x128xf32>,
    %c8_192 = arith.constant 8 : index
    %c0_193 = arith.constant 0 : index
    %476 = vector.load %arg7[%c8_192, %c0_193] : memref<128x128xf32, #tpu.memory_space<vmem>>, vector<8x128xf32>
    %cst_194 = arith.constant dense<0.000000e+00> : vector<128xf32>
    %477 = vector.multi_reduction <add>, %476, %cst_194 [0] : vector<8x128xf32> to vector<128xf32>
    %478 = vector.shape_cast %477 : vector<128xf32> to vector<1x128xf32>
    %cst_195 = arith.constant 1.250000e-01 : f32
    %479 = vector.broadcast %cst_195 : f32 to vector<1x128xf32>
    %480 = arith.mulf %478, %479 : vector<1x128xf32>
    %481 = arith.mulf %476, %476 : vector<8x128xf32>
    %cst_196 = arith.constant dense<0.000000e+00> : vector<128xf32>
    %482 = vector.multi_reduction <add>, %481, %cst_196 [0] : vector<8x128xf32> to vector<128xf32>
    %483 = vector.shape_cast %482 : vector<128xf32> to vector<1x128xf32>
    %cst_197 = arith.constant 1.250000e-01 : f32
    %484 = vector.broadcast %cst_197 : f32 to vector<1x128xf32>
    %485 = arith.mulf %483, %484 : vector<1x128xf32>
    %486 = arith.mulf %480, %480 : vector<1x128xf32>
    %487 = arith.subf %485, %486 : vector<1x128xf32>
    %cst_198 = arith.constant 0.000000e+00 : f32
    %488 = vector.broadcast %cst_198 : f32 to vector<1x128xf32>
    %489 = arith.maximumf %487, %488 : vector<1x128xf32>
    %cst_199 = arith.constant 9.99999974E-6 : f32
    %490 = vector.broadcast %cst_199 : f32 to vector<1x128xf32>
    %491 = arith.addf %489, %490 : vector<1x128xf32>
    %492 = math.rsqrt %491 : vector<1x128xf32>
    %493 = arith.mulf %2, %492 : vector<1x128xf32>
    %494 = arith.mulf %480, %493 : vector<1x128xf32>
    %495 = arith.subf %3, %494 : vector<1x128xf32>
    %496 = vector.broadcast %493 : vector<1x128xf32> to vector<8x128xf32>
    %497 = arith.mulf %476, %496 : vector<8x128xf32>
    %498 = vector.broadcast %495 : vector<1x128xf32> to vector<8x128xf32>
    %499 = arith.addf %497, %498 : vector<8x128xf32>
    %cst_200 = arith.constant 0.000000e+00 : f32
    %500 = vector.broadcast %cst_200 : f32 to vector<8x128xf32>
    %501 = arith.maximumf %499, %500 : vector<8x128xf32>
    %c8_201 = arith.constant 8 : index
    %c0_202 = arith.constant 0 : index
    %502 = vector.load %arg7[%c8_201, %c0_202] : memref<128x128xf32, #tpu.memory_space<vmem>>, vector<8x128xf32>
    tpu.vector_store %arg7[%c8_201, %c0_202], %501 {strides = array<i32>} : memref<128x128xf32, #tpu.memory_space<vmem>>, vector<8x128xf32>,
    %c16_203 = arith.constant 16 : index
    %c0_204 = arith.constant 0 : index
    %503 = vector.load %arg7[%c16_203, %c0_204] : memref<128x128xf32, #tpu.memory_space<vmem>>, vector<8x128xf32>
    %cst_205 = arith.constant dense<0.000000e+00> : vector<128xf32>
    %504 = vector.multi_reduction <add>, %503, %cst_205 [0] : vector<8x128xf32> to vector<128xf32>
    %505 = vector.shape_cast %504 : vector<128xf32> to vector<1x128xf32>
    %cst_206 = arith.constant 1.250000e-01 : f32
    %506 = vector.broadcast %cst_206 : f32 to vector<1x128xf32>
    %507 = arith.mulf %505, %506 : vector<1x128xf32>
    %508 = arith.mulf %503, %503 : vector<8x128xf32>
    %cst_207 = arith.constant dense<0.000000e+00> : vector<128xf32>
    %509 = vector.multi_reduction <add>, %508, %cst_207 [0] : vector<8x128xf32> to vector<128xf32>
    %510 = vector.shape_cast %509 : vector<128xf32> to vector<1x128xf32>
    %cst_208 = arith.constant 1.250000e-01 : f32
    %511 = vector.broadcast %cst_208 : f32 to vector<1x128xf32>
    %512 = arith.mulf %510, %511 : vector<1x128xf32>
    %513 = arith.mulf %507, %507 : vector<1x128xf32>
    %514 = arith.subf %512, %513 : vector<1x128xf32>
    %cst_209 = arith.constant 0.000000e+00 : f32
    %515 = vector.broadcast %cst_209 : f32 to vector<1x128xf32>
    %516 = arith.maximumf %514, %515 : vector<1x128xf32>
    %cst_210 = arith.constant 9.99999974E-6 : f32
    %517 = vector.broadcast %cst_210 : f32 to vector<1x128xf32>
    %518 = arith.addf %516, %517 : vector<1x128xf32>
    %519 = math.rsqrt %518 : vector<1x128xf32>
    %520 = arith.mulf %2, %519 : vector<1x128xf32>
    %521 = arith.mulf %507, %520 : vector<1x128xf32>
    %522 = arith.subf %3, %521 : vector<1x128xf32>
    %523 = vector.broadcast %520 : vector<1x128xf32> to vector<8x128xf32>
    %524 = arith.mulf %503, %523 : vector<8x128xf32>
    %525 = vector.broadcast %522 : vector<1x128xf32> to vector<8x128xf32>
    %526 = arith.addf %524, %525 : vector<8x128xf32>
    %cst_211 = arith.constant 0.000000e+00 : f32
    %527 = vector.broadcast %cst_211 : f32 to vector<8x128xf32>
    %528 = arith.maximumf %526, %527 : vector<8x128xf32>
    %c16_212 = arith.constant 16 : index
    %c0_213 = arith.constant 0 : index
    %529 = vector.load %arg7[%c16_212, %c0_213] : memref<128x128xf32, #tpu.memory_space<vmem>>, vector<8x128xf32>
    tpu.vector_store %arg7[%c16_212, %c0_213], %528 {strides = array<i32>} : memref<128x128xf32, #tpu.memory_space<vmem>>, vector<8x128xf32>,
    %c24_214 = arith.constant 24 : index
    %c0_215 = arith.constant 0 : index
    %530 = vector.load %arg7[%c24_214, %c0_215] : memref<128x128xf32, #tpu.memory_space<vmem>>, vector<8x128xf32>
    %cst_216 = arith.constant dense<0.000000e+00> : vector<128xf32>
    %531 = vector.multi_reduction <add>, %530, %cst_216 [0] : vector<8x128xf32> to vector<128xf32>
    %532 = vector.shape_cast %531 : vector<128xf32> to vector<1x128xf32>
    %cst_217 = arith.constant 1.250000e-01 : f32
    %533 = vector.broadcast %cst_217 : f32 to vector<1x128xf32>
    %534 = arith.mulf %532, %533 : vector<1x128xf32>
    %535 = arith.mulf %530, %530 : vector<8x128xf32>
    %cst_218 = arith.constant dense<0.000000e+00> : vector<128xf32>
    %536 = vector.multi_reduction <add>, %535, %cst_218 [0] : vector<8x128xf32> to vector<128xf32>
    %537 = vector.shape_cast %536 : vector<128xf32> to vector<1x128xf32>
    %cst_219 = arith.constant 1.250000e-01 : f32
    %538 = vector.broadcast %cst_219 : f32 to vector<1x128xf32>
    %539 = arith.mulf %537, %538 : vector<1x128xf32>
    %540 = arith.mulf %534, %534 : vector<1x128xf32>
    %541 = arith.subf %539, %540 : vector<1x128xf32>
    %cst_220 = arith.constant 0.000000e+00 : f32
    %542 = vector.broadcast %cst_220 : f32 to vector<1x128xf32>
    %543 = arith.maximumf %541, %542 : vector<1x128xf32>
    %cst_221 = arith.constant 9.99999974E-6 : f32
    %544 = vector.broadcast %cst_221 : f32 to vector<1x128xf32>
    %545 = arith.addf %543, %544 : vector<1x128xf32>
    %546 = math.rsqrt %545 : vector<1x128xf32>
    %547 = arith.mulf %2, %546 : vector<1x128xf32>
    %548 = arith.mulf %534, %547 : vector<1x128xf32>
    %549 = arith.subf %3, %548 : vector<1x128xf32>
    %550 = vector.broadcast %547 : vector<1x128xf32> to vector<8x128xf32>
    %551 = arith.mulf %530, %550 : vector<8x128xf32>
    %552 = vector.broadcast %549 : vector<1x128xf32> to vector<8x128xf32>
    %553 = arith.addf %551, %552 : vector<8x128xf32>
    %cst_222 = arith.constant 0.000000e+00 : f32
    %554 = vector.broadcast %cst_222 : f32 to vector<8x128xf32>
    %555 = arith.maximumf %553, %554 : vector<8x128xf32>
    %c24_223 = arith.constant 24 : index
    %c0_224 = arith.constant 0 : index
    %556 = vector.load %arg7[%c24_223, %c0_224] : memref<128x128xf32, #tpu.memory_space<vmem>>, vector<8x128xf32>
    tpu.vector_store %arg7[%c24_223, %c0_224], %555 {strides = array<i32>} : memref<128x128xf32, #tpu.memory_space<vmem>>, vector<8x128xf32>,
    %c32_225 = arith.constant 32 : index
    %c0_226 = arith.constant 0 : index
    %557 = vector.load %arg7[%c32_225, %c0_226] : memref<128x128xf32, #tpu.memory_space<vmem>>, vector<8x128xf32>
    %cst_227 = arith.constant dense<0.000000e+00> : vector<128xf32>
    %558 = vector.multi_reduction <add>, %557, %cst_227 [0] : vector<8x128xf32> to vector<128xf32>
    %559 = vector.shape_cast %558 : vector<128xf32> to vector<1x128xf32>
    %cst_228 = arith.constant 1.250000e-01 : f32
    %560 = vector.broadcast %cst_228 : f32 to vector<1x128xf32>
    %561 = arith.mulf %559, %560 : vector<1x128xf32>
    %562 = arith.mulf %557, %557 : vector<8x128xf32>
    %cst_229 = arith.constant dense<0.000000e+00> : vector<128xf32>
    %563 = vector.multi_reduction <add>, %562, %cst_229 [0] : vector<8x128xf32> to vector<128xf32>
    %564 = vector.shape_cast %563 : vector<128xf32> to vector<1x128xf32>
    %cst_230 = arith.constant 1.250000e-01 : f32
    %565 = vector.broadcast %cst_230 : f32 to vector<1x128xf32>
    %566 = arith.mulf %564, %565 : vector<1x128xf32>
    %567 = arith.mulf %561, %561 : vector<1x128xf32>
    %568 = arith.subf %566, %567 : vector<1x128xf32>
    %cst_231 = arith.constant 0.000000e+00 : f32
    %569 = vector.broadcast %cst_231 : f32 to vector<1x128xf32>
    %570 = arith.maximumf %568, %569 : vector<1x128xf32>
    %cst_232 = arith.constant 9.99999974E-6 : f32
    %571 = vector.broadcast %cst_232 : f32 to vector<1x128xf32>
    %572 = arith.addf %570, %571 : vector<1x128xf32>
    %573 = math.rsqrt %572 : vector<1x128xf32>
    %574 = arith.mulf %2, %573 : vector<1x128xf32>
    %575 = arith.mulf %561, %574 : vector<1x128xf32>
    %576 = arith.subf %3, %575 : vector<1x128xf32>
    %577 = vector.broadcast %574 : vector<1x128xf32> to vector<8x128xf32>
    %578 = arith.mulf %557, %577 : vector<8x128xf32>
    %579 = vector.broadcast %576 : vector<1x128xf32> to vector<8x128xf32>
    %580 = arith.addf %578, %579 : vector<8x128xf32>
    %cst_233 = arith.constant 0.000000e+00 : f32
    %581 = vector.broadcast %cst_233 : f32 to vector<8x128xf32>
    %582 = arith.maximumf %580, %581 : vector<8x128xf32>
    %c32_234 = arith.constant 32 : index
    %c0_235 = arith.constant 0 : index
    %583 = vector.load %arg7[%c32_234, %c0_235] : memref<128x128xf32, #tpu.memory_space<vmem>>, vector<8x128xf32>
    tpu.vector_store %arg7[%c32_234, %c0_235], %582 {strides = array<i32>} : memref<128x128xf32, #tpu.memory_space<vmem>>, vector<8x128xf32>,
    %c40_236 = arith.constant 40 : index
    %c0_237 = arith.constant 0 : index
    %584 = vector.load %arg7[%c40_236, %c0_237] : memref<128x128xf32, #tpu.memory_space<vmem>>, vector<8x128xf32>
    %cst_238 = arith.constant dense<0.000000e+00> : vector<128xf32>
    %585 = vector.multi_reduction <add>, %584, %cst_238 [0] : vector<8x128xf32> to vector<128xf32>
    %586 = vector.shape_cast %585 : vector<128xf32> to vector<1x128xf32>
    %cst_239 = arith.constant 1.250000e-01 : f32
    %587 = vector.broadcast %cst_239 : f32 to vector<1x128xf32>
    %588 = arith.mulf %586, %587 : vector<1x128xf32>
    %589 = arith.mulf %584, %584 : vector<8x128xf32>
    %cst_240 = arith.constant dense<0.000000e+00> : vector<128xf32>
    %590 = vector.multi_reduction <add>, %589, %cst_240 [0] : vector<8x128xf32> to vector<128xf32>
    %591 = vector.shape_cast %590 : vector<128xf32> to vector<1x128xf32>
    %cst_241 = arith.constant 1.250000e-01 : f32
    %592 = vector.broadcast %cst_241 : f32 to vector<1x128xf32>
    %593 = arith.mulf %591, %592 : vector<1x128xf32>
    %594 = arith.mulf %588, %588 : vector<1x128xf32>
    %595 = arith.subf %593, %594 : vector<1x128xf32>
    %cst_242 = arith.constant 0.000000e+00 : f32
    %596 = vector.broadcast %cst_242 : f32 to vector<1x128xf32>
    %597 = arith.maximumf %595, %596 : vector<1x128xf32>
    %cst_243 = arith.constant 9.99999974E-6 : f32
    %598 = vector.broadcast %cst_243 : f32 to vector<1x128xf32>
    %599 = arith.addf %597, %598 : vector<1x128xf32>
    %600 = math.rsqrt %599 : vector<1x128xf32>
    %601 = arith.mulf %2, %600 : vector<1x128xf32>
    %602 = arith.mulf %588, %601 : vector<1x128xf32>
    %603 = arith.subf %3, %602 : vector<1x128xf32>
    %604 = vector.broadcast %601 : vector<1x128xf32> to vector<8x128xf32>
    %605 = arith.mulf %584, %604 : vector<8x128xf32>
    %606 = vector.broadcast %603 : vector<1x128xf32> to vector<8x128xf32>
    %607 = arith.addf %605, %606 : vector<8x128xf32>
    %cst_244 = arith.constant 0.000000e+00 : f32
    %608 = vector.broadcast %cst_244 : f32 to vector<8x128xf32>
    %609 = arith.maximumf %607, %608 : vector<8x128xf32>
    %c40_245 = arith.constant 40 : index
    %c0_246 = arith.constant 0 : index
    %610 = vector.load %arg7[%c40_245, %c0_246] : memref<128x128xf32, #tpu.memory_space<vmem>>, vector<8x128xf32>
    tpu.vector_store %arg7[%c40_245, %c0_246], %609 {strides = array<i32>} : memref<128x128xf32, #tpu.memory_space<vmem>>, vector<8x128xf32>,
    %c48_247 = arith.constant 48 : index
    %c0_248 = arith.constant 0 : index
    %611 = vector.load %arg7[%c48_247, %c0_248] : memref<128x128xf32, #tpu.memory_space<vmem>>, vector<8x128xf32>
    %cst_249 = arith.constant dense<0.000000e+00> : vector<128xf32>
    %612 = vector.multi_reduction <add>, %611, %cst_249 [0] : vector<8x128xf32> to vector<128xf32>
    %613 = vector.shape_cast %612 : vector<128xf32> to vector<1x128xf32>
    %cst_250 = arith.constant 1.250000e-01 : f32
    %614 = vector.broadcast %cst_250 : f32 to vector<1x128xf32>
    %615 = arith.mulf %613, %614 : vector<1x128xf32>
    %616 = arith.mulf %611, %611 : vector<8x128xf32>
    %cst_251 = arith.constant dense<0.000000e+00> : vector<128xf32>
    %617 = vector.multi_reduction <add>, %616, %cst_251 [0] : vector<8x128xf32> to vector<128xf32>
    %618 = vector.shape_cast %617 : vector<128xf32> to vector<1x128xf32>
    %cst_252 = arith.constant 1.250000e-01 : f32
    %619 = vector.broadcast %cst_252 : f32 to vector<1x128xf32>
    %620 = arith.mulf %618, %619 : vector<1x128xf32>
    %621 = arith.mulf %615, %615 : vector<1x128xf32>
    %622 = arith.subf %620, %621 : vector<1x128xf32>
    %cst_253 = arith.constant 0.000000e+00 : f32
    %623 = vector.broadcast %cst_253 : f32 to vector<1x128xf32>
    %624 = arith.maximumf %622, %623 : vector<1x128xf32>
    %cst_254 = arith.constant 9.99999974E-6 : f32
    %625 = vector.broadcast %cst_254 : f32 to vector<1x128xf32>
    %626 = arith.addf %624, %625 : vector<1x128xf32>
    %627 = math.rsqrt %626 : vector<1x128xf32>
    %628 = arith.mulf %2, %627 : vector<1x128xf32>
    %629 = arith.mulf %615, %628 : vector<1x128xf32>
    %630 = arith.subf %3, %629 : vector<1x128xf32>
    %631 = vector.broadcast %628 : vector<1x128xf32> to vector<8x128xf32>
    %632 = arith.mulf %611, %631 : vector<8x128xf32>
    %633 = vector.broadcast %630 : vector<1x128xf32> to vector<8x128xf32>
    %634 = arith.addf %632, %633 : vector<8x128xf32>
    %cst_255 = arith.constant 0.000000e+00 : f32
    %635 = vector.broadcast %cst_255 : f32 to vector<8x128xf32>
    %636 = arith.maximumf %634, %635 : vector<8x128xf32>
    %c48_256 = arith.constant 48 : index
    %c0_257 = arith.constant 0 : index
    %637 = vector.load %arg7[%c48_256, %c0_257] : memref<128x128xf32, #tpu.memory_space<vmem>>, vector<8x128xf32>
    tpu.vector_store %arg7[%c48_256, %c0_257], %636 {strides = array<i32>} : memref<128x128xf32, #tpu.memory_space<vmem>>, vector<8x128xf32>,
    %c56_258 = arith.constant 56 : index
    %c0_259 = arith.constant 0 : index
    %638 = vector.load %arg7[%c56_258, %c0_259] : memref<128x128xf32, #tpu.memory_space<vmem>>, vector<8x128xf32>
    %cst_260 = arith.constant dense<0.000000e+00> : vector<128xf32>
    %639 = vector.multi_reduction <add>, %638, %cst_260 [0] : vector<8x128xf32> to vector<128xf32>
    %640 = vector.shape_cast %639 : vector<128xf32> to vector<1x128xf32>
    %cst_261 = arith.constant 1.250000e-01 : f32
    %641 = vector.broadcast %cst_261 : f32 to vector<1x128xf32>
    %642 = arith.mulf %640, %641 : vector<1x128xf32>
    %643 = arith.mulf %638, %638 : vector<8x128xf32>
    %cst_262 = arith.constant dense<0.000000e+00> : vector<128xf32>
    %644 = vector.multi_reduction <add>, %643, %cst_262 [0] : vector<8x128xf32> to vector<128xf32>
    %645 = vector.shape_cast %644 : vector<128xf32> to vector<1x128xf32>
    %cst_263 = arith.constant 1.250000e-01 : f32
    %646 = vector.broadcast %cst_263 : f32 to vector<1x128xf32>
    %647 = arith.mulf %645, %646 : vector<1x128xf32>
    %648 = arith.mulf %642, %642 : vector<1x128xf32>
    %649 = arith.subf %647, %648 : vector<1x128xf32>
    %cst_264 = arith.constant 0.000000e+00 : f32
    %650 = vector.broadcast %cst_264 : f32 to vector<1x128xf32>
    %651 = arith.maximumf %649, %650 : vector<1x128xf32>
    %cst_265 = arith.constant 9.99999974E-6 : f32
    %652 = vector.broadcast %cst_265 : f32 to vector<1x128xf32>
    %653 = arith.addf %651, %652 : vector<1x128xf32>
    %654 = math.rsqrt %653 : vector<1x128xf32>
    %655 = arith.mulf %2, %654 : vector<1x128xf32>
    %656 = arith.mulf %642, %655 : vector<1x128xf32>
    %657 = arith.subf %3, %656 : vector<1x128xf32>
    %658 = vector.broadcast %655 : vector<1x128xf32> to vector<8x128xf32>
    %659 = arith.mulf %638, %658 : vector<8x128xf32>
    %660 = vector.broadcast %657 : vector<1x128xf32> to vector<8x128xf32>
    %661 = arith.addf %659, %660 : vector<8x128xf32>
    %cst_266 = arith.constant 0.000000e+00 : f32
    %662 = vector.broadcast %cst_266 : f32 to vector<8x128xf32>
    %663 = arith.maximumf %661, %662 : vector<8x128xf32>
    %c56_267 = arith.constant 56 : index
    %c0_268 = arith.constant 0 : index
    %664 = vector.load %arg7[%c56_267, %c0_268] : memref<128x128xf32, #tpu.memory_space<vmem>>, vector<8x128xf32>
    tpu.vector_store %arg7[%c56_267, %c0_268], %663 {strides = array<i32>} : memref<128x128xf32, #tpu.memory_space<vmem>>, vector<8x128xf32>,
    %c64_269 = arith.constant 64 : index
    %c0_270 = arith.constant 0 : index
    %665 = vector.load %arg7[%c64_269, %c0_270] : memref<128x128xf32, #tpu.memory_space<vmem>>, vector<8x128xf32>
    %cst_271 = arith.constant dense<0.000000e+00> : vector<128xf32>
    %666 = vector.multi_reduction <add>, %665, %cst_271 [0] : vector<8x128xf32> to vector<128xf32>
    %667 = vector.shape_cast %666 : vector<128xf32> to vector<1x128xf32>
    %cst_272 = arith.constant 1.250000e-01 : f32
    %668 = vector.broadcast %cst_272 : f32 to vector<1x128xf32>
    %669 = arith.mulf %667, %668 : vector<1x128xf32>
    %670 = arith.mulf %665, %665 : vector<8x128xf32>
    %cst_273 = arith.constant dense<0.000000e+00> : vector<128xf32>
    %671 = vector.multi_reduction <add>, %670, %cst_273 [0] : vector<8x128xf32> to vector<128xf32>
    %672 = vector.shape_cast %671 : vector<128xf32> to vector<1x128xf32>
    %cst_274 = arith.constant 1.250000e-01 : f32
    %673 = vector.broadcast %cst_274 : f32 to vector<1x128xf32>
    %674 = arith.mulf %672, %673 : vector<1x128xf32>
    %675 = arith.mulf %669, %669 : vector<1x128xf32>
    %676 = arith.subf %674, %675 : vector<1x128xf32>
    %cst_275 = arith.constant 0.000000e+00 : f32
    %677 = vector.broadcast %cst_275 : f32 to vector<1x128xf32>
    %678 = arith.maximumf %676, %677 : vector<1x128xf32>
    %cst_276 = arith.constant 9.99999974E-6 : f32
    %679 = vector.broadcast %cst_276 : f32 to vector<1x128xf32>
    %680 = arith.addf %678, %679 : vector<1x128xf32>
    %681 = math.rsqrt %680 : vector<1x128xf32>
    %682 = arith.mulf %2, %681 : vector<1x128xf32>
    %683 = arith.mulf %669, %682 : vector<1x128xf32>
    %684 = arith.subf %3, %683 : vector<1x128xf32>
    %685 = vector.broadcast %682 : vector<1x128xf32> to vector<8x128xf32>
    %686 = arith.mulf %665, %685 : vector<8x128xf32>
    %687 = vector.broadcast %684 : vector<1x128xf32> to vector<8x128xf32>
    %688 = arith.addf %686, %687 : vector<8x128xf32>
    %cst_277 = arith.constant 0.000000e+00 : f32
    %689 = vector.broadcast %cst_277 : f32 to vector<8x128xf32>
    %690 = arith.maximumf %688, %689 : vector<8x128xf32>
    %c64_278 = arith.constant 64 : index
    %c0_279 = arith.constant 0 : index
    %691 = vector.load %arg7[%c64_278, %c0_279] : memref<128x128xf32, #tpu.memory_space<vmem>>, vector<8x128xf32>
    tpu.vector_store %arg7[%c64_278, %c0_279], %690 {strides = array<i32>} : memref<128x128xf32, #tpu.memory_space<vmem>>, vector<8x128xf32>,
    %c72_280 = arith.constant 72 : index
    %c0_281 = arith.constant 0 : index
    %692 = vector.load %arg7[%c72_280, %c0_281] : memref<128x128xf32, #tpu.memory_space<vmem>>, vector<8x128xf32>
    %cst_282 = arith.constant dense<0.000000e+00> : vector<128xf32>
    %693 = vector.multi_reduction <add>, %692, %cst_282 [0] : vector<8x128xf32> to vector<128xf32>
    %694 = vector.shape_cast %693 : vector<128xf32> to vector<1x128xf32>
    %cst_283 = arith.constant 1.250000e-01 : f32
    %695 = vector.broadcast %cst_283 : f32 to vector<1x128xf32>
    %696 = arith.mulf %694, %695 : vector<1x128xf32>
    %697 = arith.mulf %692, %692 : vector<8x128xf32>
    %cst_284 = arith.constant dense<0.000000e+00> : vector<128xf32>
    %698 = vector.multi_reduction <add>, %697, %cst_284 [0] : vector<8x128xf32> to vector<128xf32>
    %699 = vector.shape_cast %698 : vector<128xf32> to vector<1x128xf32>
    %cst_285 = arith.constant 1.250000e-01 : f32
    %700 = vector.broadcast %cst_285 : f32 to vector<1x128xf32>
    %701 = arith.mulf %699, %700 : vector<1x128xf32>
    %702 = arith.mulf %696, %696 : vector<1x128xf32>
    %703 = arith.subf %701, %702 : vector<1x128xf32>
    %cst_286 = arith.constant 0.000000e+00 : f32
    %704 = vector.broadcast %cst_286 : f32 to vector<1x128xf32>
    %705 = arith.maximumf %703, %704 : vector<1x128xf32>
    %cst_287 = arith.constant 9.99999974E-6 : f32
    %706 = vector.broadcast %cst_287 : f32 to vector<1x128xf32>
    %707 = arith.addf %705, %706 : vector<1x128xf32>
    %708 = math.rsqrt %707 : vector<1x128xf32>
    %709 = arith.mulf %2, %708 : vector<1x128xf32>
    %710 = arith.mulf %696, %709 : vector<1x128xf32>
    %711 = arith.subf %3, %710 : vector<1x128xf32>
    %712 = vector.broadcast %709 : vector<1x128xf32> to vector<8x128xf32>
    %713 = arith.mulf %692, %712 : vector<8x128xf32>
    %714 = vector.broadcast %711 : vector<1x128xf32> to vector<8x128xf32>
    %715 = arith.addf %713, %714 : vector<8x128xf32>
    %cst_288 = arith.constant 0.000000e+00 : f32
    %716 = vector.broadcast %cst_288 : f32 to vector<8x128xf32>
    %717 = arith.maximumf %715, %716 : vector<8x128xf32>
    %c72_289 = arith.constant 72 : index
    %c0_290 = arith.constant 0 : index
    %718 = vector.load %arg7[%c72_289, %c0_290] : memref<128x128xf32, #tpu.memory_space<vmem>>, vector<8x128xf32>
    tpu.vector_store %arg7[%c72_289, %c0_290], %717 {strides = array<i32>} : memref<128x128xf32, #tpu.memory_space<vmem>>, vector<8x128xf32>,
    %c80_291 = arith.constant 80 : index
    %c0_292 = arith.constant 0 : index
    %719 = vector.load %arg7[%c80_291, %c0_292] : memref<128x128xf32, #tpu.memory_space<vmem>>, vector<8x128xf32>
    %cst_293 = arith.constant dense<0.000000e+00> : vector<128xf32>
    %720 = vector.multi_reduction <add>, %719, %cst_293 [0] : vector<8x128xf32> to vector<128xf32>
    %721 = vector.shape_cast %720 : vector<128xf32> to vector<1x128xf32>
    %cst_294 = arith.constant 1.250000e-01 : f32
    %722 = vector.broadcast %cst_294 : f32 to vector<1x128xf32>
    %723 = arith.mulf %721, %722 : vector<1x128xf32>
    %724 = arith.mulf %719, %719 : vector<8x128xf32>
    %cst_295 = arith.constant dense<0.000000e+00> : vector<128xf32>
    %725 = vector.multi_reduction <add>, %724, %cst_295 [0] : vector<8x128xf32> to vector<128xf32>
    %726 = vector.shape_cast %725 : vector<128xf32> to vector<1x128xf32>
    %cst_296 = arith.constant 1.250000e-01 : f32
    %727 = vector.broadcast %cst_296 : f32 to vector<1x128xf32>
    %728 = arith.mulf %726, %727 : vector<1x128xf32>
    %729 = arith.mulf %723, %723 : vector<1x128xf32>
    %730 = arith.subf %728, %729 : vector<1x128xf32>
    %cst_297 = arith.constant 0.000000e+00 : f32
    %731 = vector.broadcast %cst_297 : f32 to vector<1x128xf32>
    %732 = arith.maximumf %730, %731 : vector<1x128xf32>
    %cst_298 = arith.constant 9.99999974E-6 : f32
    %733 = vector.broadcast %cst_298 : f32 to vector<1x128xf32>
    %734 = arith.addf %732, %733 : vector<1x128xf32>
    %735 = math.rsqrt %734 : vector<1x128xf32>
    %736 = arith.mulf %2, %735 : vector<1x128xf32>
    %737 = arith.mulf %723, %736 : vector<1x128xf32>
    %738 = arith.subf %3, %737 : vector<1x128xf32>
    %739 = vector.broadcast %736 : vector<1x128xf32> to vector<8x128xf32>
    %740 = arith.mulf %719, %739 : vector<8x128xf32>
    %741 = vector.broadcast %738 : vector<1x128xf32> to vector<8x128xf32>
    %742 = arith.addf %740, %741 : vector<8x128xf32>
    %cst_299 = arith.constant 0.000000e+00 : f32
    %743 = vector.broadcast %cst_299 : f32 to vector<8x128xf32>
    %744 = arith.maximumf %742, %743 : vector<8x128xf32>
    %c80_300 = arith.constant 80 : index
    %c0_301 = arith.constant 0 : index
    %745 = vector.load %arg7[%c80_300, %c0_301] : memref<128x128xf32, #tpu.memory_space<vmem>>, vector<8x128xf32>
    tpu.vector_store %arg7[%c80_300, %c0_301], %744 {strides = array<i32>} : memref<128x128xf32, #tpu.memory_space<vmem>>, vector<8x128xf32>,
    %c88_302 = arith.constant 88 : index
    %c0_303 = arith.constant 0 : index
    %746 = vector.load %arg7[%c88_302, %c0_303] : memref<128x128xf32, #tpu.memory_space<vmem>>, vector<8x128xf32>
    %cst_304 = arith.constant dense<0.000000e+00> : vector<128xf32>
    %747 = vector.multi_reduction <add>, %746, %cst_304 [0] : vector<8x128xf32> to vector<128xf32>
    %748 = vector.shape_cast %747 : vector<128xf32> to vector<1x128xf32>
    %cst_305 = arith.constant 1.250000e-01 : f32
    %749 = vector.broadcast %cst_305 : f32 to vector<1x128xf32>
    %750 = arith.mulf %748, %749 : vector<1x128xf32>
    %751 = arith.mulf %746, %746 : vector<8x128xf32>
    %cst_306 = arith.constant dense<0.000000e+00> : vector<128xf32>
    %752 = vector.multi_reduction <add>, %751, %cst_306 [0] : vector<8x128xf32> to vector<128xf32>
    %753 = vector.shape_cast %752 : vector<128xf32> to vector<1x128xf32>
    %cst_307 = arith.constant 1.250000e-01 : f32
    %754 = vector.broadcast %cst_307 : f32 to vector<1x128xf32>
    %755 = arith.mulf %753, %754 : vector<1x128xf32>
    %756 = arith.mulf %750, %750 : vector<1x128xf32>
    %757 = arith.subf %755, %756 : vector<1x128xf32>
    %cst_308 = arith.constant 0.000000e+00 : f32
    %758 = vector.broadcast %cst_308 : f32 to vector<1x128xf32>
    %759 = arith.maximumf %757, %758 : vector<1x128xf32>
    %cst_309 = arith.constant 9.99999974E-6 : f32
    %760 = vector.broadcast %cst_309 : f32 to vector<1x128xf32>
    %761 = arith.addf %759, %760 : vector<1x128xf32>
    %762 = math.rsqrt %761 : vector<1x128xf32>
    %763 = arith.mulf %2, %762 : vector<1x128xf32>
    %764 = arith.mulf %750, %763 : vector<1x128xf32>
    %765 = arith.subf %3, %764 : vector<1x128xf32>
    %766 = vector.broadcast %763 : vector<1x128xf32> to vector<8x128xf32>
    %767 = arith.mulf %746, %766 : vector<8x128xf32>
    %768 = vector.broadcast %765 : vector<1x128xf32> to vector<8x128xf32>
    %769 = arith.addf %767, %768 : vector<8x128xf32>
    %cst_310 = arith.constant 0.000000e+00 : f32
    %770 = vector.broadcast %cst_310 : f32 to vector<8x128xf32>
    %771 = arith.maximumf %769, %770 : vector<8x128xf32>
    %c88_311 = arith.constant 88 : index
    %c0_312 = arith.constant 0 : index
    %772 = vector.load %arg7[%c88_311, %c0_312] : memref<128x128xf32, #tpu.memory_space<vmem>>, vector<8x128xf32>
    tpu.vector_store %arg7[%c88_311, %c0_312], %771 {strides = array<i32>} : memref<128x128xf32, #tpu.memory_space<vmem>>, vector<8x128xf32>,
    %c96_313 = arith.constant 96 : index
    %c0_314 = arith.constant 0 : index
    %773 = vector.load %arg7[%c96_313, %c0_314] : memref<128x128xf32, #tpu.memory_space<vmem>>, vector<8x128xf32>
    %cst_315 = arith.constant dense<0.000000e+00> : vector<128xf32>
    %774 = vector.multi_reduction <add>, %773, %cst_315 [0] : vector<8x128xf32> to vector<128xf32>
    %775 = vector.shape_cast %774 : vector<128xf32> to vector<1x128xf32>
    %cst_316 = arith.constant 1.250000e-01 : f32
    %776 = vector.broadcast %cst_316 : f32 to vector<1x128xf32>
    %777 = arith.mulf %775, %776 : vector<1x128xf32>
    %778 = arith.mulf %773, %773 : vector<8x128xf32>
    %cst_317 = arith.constant dense<0.000000e+00> : vector<128xf32>
    %779 = vector.multi_reduction <add>, %778, %cst_317 [0] : vector<8x128xf32> to vector<128xf32>
    %780 = vector.shape_cast %779 : vector<128xf32> to vector<1x128xf32>
    %cst_318 = arith.constant 1.250000e-01 : f32
    %781 = vector.broadcast %cst_318 : f32 to vector<1x128xf32>
    %782 = arith.mulf %780, %781 : vector<1x128xf32>
    %783 = arith.mulf %777, %777 : vector<1x128xf32>
    %784 = arith.subf %782, %783 : vector<1x128xf32>
    %cst_319 = arith.constant 0.000000e+00 : f32
    %785 = vector.broadcast %cst_319 : f32 to vector<1x128xf32>
    %786 = arith.maximumf %784, %785 : vector<1x128xf32>
    %cst_320 = arith.constant 9.99999974E-6 : f32
    %787 = vector.broadcast %cst_320 : f32 to vector<1x128xf32>
    %788 = arith.addf %786, %787 : vector<1x128xf32>
    %789 = math.rsqrt %788 : vector<1x128xf32>
    %790 = arith.mulf %2, %789 : vector<1x128xf32>
    %791 = arith.mulf %777, %790 : vector<1x128xf32>
    %792 = arith.subf %3, %791 : vector<1x128xf32>
    %793 = vector.broadcast %790 : vector<1x128xf32> to vector<8x128xf32>
    %794 = arith.mulf %773, %793 : vector<8x128xf32>
    %795 = vector.broadcast %792 : vector<1x128xf32> to vector<8x128xf32>
    %796 = arith.addf %794, %795 : vector<8x128xf32>
    %cst_321 = arith.constant 0.000000e+00 : f32
    %797 = vector.broadcast %cst_321 : f32 to vector<8x128xf32>
    %798 = arith.maximumf %796, %797 : vector<8x128xf32>
    %c96_322 = arith.constant 96 : index
    %c0_323 = arith.constant 0 : index
    %799 = vector.load %arg7[%c96_322, %c0_323] : memref<128x128xf32, #tpu.memory_space<vmem>>, vector<8x128xf32>
    tpu.vector_store %arg7[%c96_322, %c0_323], %798 {strides = array<i32>} : memref<128x128xf32, #tpu.memory_space<vmem>>, vector<8x128xf32>,
    %c104_324 = arith.constant 104 : index
    %c0_325 = arith.constant 0 : index
    %800 = vector.load %arg7[%c104_324, %c0_325] : memref<128x128xf32, #tpu.memory_space<vmem>>, vector<8x128xf32>
    %cst_326 = arith.constant dense<0.000000e+00> : vector<128xf32>
    %801 = vector.multi_reduction <add>, %800, %cst_326 [0] : vector<8x128xf32> to vector<128xf32>
    %802 = vector.shape_cast %801 : vector<128xf32> to vector<1x128xf32>
    %cst_327 = arith.constant 1.250000e-01 : f32
    %803 = vector.broadcast %cst_327 : f32 to vector<1x128xf32>
    %804 = arith.mulf %802, %803 : vector<1x128xf32>
    %805 = arith.mulf %800, %800 : vector<8x128xf32>
    %cst_328 = arith.constant dense<0.000000e+00> : vector<128xf32>
    %806 = vector.multi_reduction <add>, %805, %cst_328 [0] : vector<8x128xf32> to vector<128xf32>
    %807 = vector.shape_cast %806 : vector<128xf32> to vector<1x128xf32>
    %cst_329 = arith.constant 1.250000e-01 : f32
    %808 = vector.broadcast %cst_329 : f32 to vector<1x128xf32>
    %809 = arith.mulf %807, %808 : vector<1x128xf32>
    %810 = arith.mulf %804, %804 : vector<1x128xf32>
    %811 = arith.subf %809, %810 : vector<1x128xf32>
    %cst_330 = arith.constant 0.000000e+00 : f32
    %812 = vector.broadcast %cst_330 : f32 to vector<1x128xf32>
    %813 = arith.maximumf %811, %812 : vector<1x128xf32>
    %cst_331 = arith.constant 9.99999974E-6 : f32
    %814 = vector.broadcast %cst_331 : f32 to vector<1x128xf32>
    %815 = arith.addf %813, %814 : vector<1x128xf32>
    %816 = math.rsqrt %815 : vector<1x128xf32>
    %817 = arith.mulf %2, %816 : vector<1x128xf32>
    %818 = arith.mulf %804, %817 : vector<1x128xf32>
    %819 = arith.subf %3, %818 : vector<1x128xf32>
    %820 = vector.broadcast %817 : vector<1x128xf32> to vector<8x128xf32>
    %821 = arith.mulf %800, %820 : vector<8x128xf32>
    %822 = vector.broadcast %819 : vector<1x128xf32> to vector<8x128xf32>
    %823 = arith.addf %821, %822 : vector<8x128xf32>
    %cst_332 = arith.constant 0.000000e+00 : f32
    %824 = vector.broadcast %cst_332 : f32 to vector<8x128xf32>
    %825 = arith.maximumf %823, %824 : vector<8x128xf32>
    %c104_333 = arith.constant 104 : index
    %c0_334 = arith.constant 0 : index
    %826 = vector.load %arg7[%c104_333, %c0_334] : memref<128x128xf32, #tpu.memory_space<vmem>>, vector<8x128xf32>
    tpu.vector_store %arg7[%c104_333, %c0_334], %825 {strides = array<i32>} : memref<128x128xf32, #tpu.memory_space<vmem>>, vector<8x128xf32>,
    %c112_335 = arith.constant 112 : index
    %c0_336 = arith.constant 0 : index
    %827 = vector.load %arg7[%c112_335, %c0_336] : memref<128x128xf32, #tpu.memory_space<vmem>>, vector<8x128xf32>
    %cst_337 = arith.constant dense<0.000000e+00> : vector<128xf32>
    %828 = vector.multi_reduction <add>, %827, %cst_337 [0] : vector<8x128xf32> to vector<128xf32>
    %829 = vector.shape_cast %828 : vector<128xf32> to vector<1x128xf32>
    %cst_338 = arith.constant 1.250000e-01 : f32
    %830 = vector.broadcast %cst_338 : f32 to vector<1x128xf32>
    %831 = arith.mulf %829, %830 : vector<1x128xf32>
    %832 = arith.mulf %827, %827 : vector<8x128xf32>
    %cst_339 = arith.constant dense<0.000000e+00> : vector<128xf32>
    %833 = vector.multi_reduction <add>, %832, %cst_339 [0] : vector<8x128xf32> to vector<128xf32>
    %834 = vector.shape_cast %833 : vector<128xf32> to vector<1x128xf32>
    %cst_340 = arith.constant 1.250000e-01 : f32
    %835 = vector.broadcast %cst_340 : f32 to vector<1x128xf32>
    %836 = arith.mulf %834, %835 : vector<1x128xf32>
    %837 = arith.mulf %831, %831 : vector<1x128xf32>
    %838 = arith.subf %836, %837 : vector<1x128xf32>
    %cst_341 = arith.constant 0.000000e+00 : f32
    %839 = vector.broadcast %cst_341 : f32 to vector<1x128xf32>
    %840 = arith.maximumf %838, %839 : vector<1x128xf32>
    %cst_342 = arith.constant 9.99999974E-6 : f32
    %841 = vector.broadcast %cst_342 : f32 to vector<1x128xf32>
    %842 = arith.addf %840, %841 : vector<1x128xf32>
    %843 = math.rsqrt %842 : vector<1x128xf32>
    %844 = arith.mulf %2, %843 : vector<1x128xf32>
    %845 = arith.mulf %831, %844 : vector<1x128xf32>
    %846 = arith.subf %3, %845 : vector<1x128xf32>
    %847 = vector.broadcast %844 : vector<1x128xf32> to vector<8x128xf32>
    %848 = arith.mulf %827, %847 : vector<8x128xf32>
    %849 = vector.broadcast %846 : vector<1x128xf32> to vector<8x128xf32>
    %850 = arith.addf %848, %849 : vector<8x128xf32>
    %cst_343 = arith.constant 0.000000e+00 : f32
    %851 = vector.broadcast %cst_343 : f32 to vector<8x128xf32>
    %852 = arith.maximumf %850, %851 : vector<8x128xf32>
    %c112_344 = arith.constant 112 : index
    %c0_345 = arith.constant 0 : index
    %853 = vector.load %arg7[%c112_344, %c0_345] : memref<128x128xf32, #tpu.memory_space<vmem>>, vector<8x128xf32>
    tpu.vector_store %arg7[%c112_344, %c0_345], %852 {strides = array<i32>} : memref<128x128xf32, #tpu.memory_space<vmem>>, vector<8x128xf32>,
    %c120_346 = arith.constant 120 : index
    %c0_347 = arith.constant 0 : index
    %854 = vector.load %arg7[%c120_346, %c0_347] : memref<128x128xf32, #tpu.memory_space<vmem>>, vector<8x128xf32>
    %cst_348 = arith.constant dense<0.000000e+00> : vector<128xf32>
    %855 = vector.multi_reduction <add>, %854, %cst_348 [0] : vector<8x128xf32> to vector<128xf32>
    %856 = vector.shape_cast %855 : vector<128xf32> to vector<1x128xf32>
    %cst_349 = arith.constant 1.250000e-01 : f32
    %857 = vector.broadcast %cst_349 : f32 to vector<1x128xf32>
    %858 = arith.mulf %856, %857 : vector<1x128xf32>
    %859 = arith.mulf %854, %854 : vector<8x128xf32>
    %cst_350 = arith.constant dense<0.000000e+00> : vector<128xf32>
    %860 = vector.multi_reduction <add>, %859, %cst_350 [0] : vector<8x128xf32> to vector<128xf32>
    %861 = vector.shape_cast %860 : vector<128xf32> to vector<1x128xf32>
    %cst_351 = arith.constant 1.250000e-01 : f32
    %862 = vector.broadcast %cst_351 : f32 to vector<1x128xf32>
    %863 = arith.mulf %861, %862 : vector<1x128xf32>
    %864 = arith.mulf %858, %858 : vector<1x128xf32>
    %865 = arith.subf %863, %864 : vector<1x128xf32>
    %cst_352 = arith.constant 0.000000e+00 : f32
    %866 = vector.broadcast %cst_352 : f32 to vector<1x128xf32>
    %867 = arith.maximumf %865, %866 : vector<1x128xf32>
    %cst_353 = arith.constant 9.99999974E-6 : f32
    %868 = vector.broadcast %cst_353 : f32 to vector<1x128xf32>
    %869 = arith.addf %867, %868 : vector<1x128xf32>
    %870 = math.rsqrt %869 : vector<1x128xf32>
    %871 = arith.mulf %2, %870 : vector<1x128xf32>
    %872 = arith.mulf %858, %871 : vector<1x128xf32>
    %873 = arith.subf %3, %872 : vector<1x128xf32>
    %874 = vector.broadcast %871 : vector<1x128xf32> to vector<8x128xf32>
    %875 = arith.mulf %854, %874 : vector<8x128xf32>
    %876 = vector.broadcast %873 : vector<1x128xf32> to vector<8x128xf32>
    %877 = arith.addf %875, %876 : vector<8x128xf32>
    %cst_354 = arith.constant 0.000000e+00 : f32
    %878 = vector.broadcast %cst_354 : f32 to vector<8x128xf32>
    %879 = arith.maximumf %877, %878 : vector<8x128xf32>
    %c120_355 = arith.constant 120 : index
    %c0_356 = arith.constant 0 : index
    %880 = vector.load %arg7[%c120_355, %c0_356] : memref<128x128xf32, #tpu.memory_space<vmem>>, vector<8x128xf32>
    tpu.vector_store %arg7[%c120_355, %c0_356], %879 {strides = array<i32>} : memref<128x128xf32, #tpu.memory_space<vmem>>, vector<8x128xf32>,
    %c0_357 = arith.constant 0 : index
    %c0_358 = arith.constant 0 : index
    %881 = vector.load %arg7[%c0_357, %c0_358] : memref<128x128xf32, #tpu.memory_space<vmem>>, vector<128x128xf32>
    %cst_359 = arith.constant dense<0.000000e+00> : vector<1x128xf32>
    %882 = tpu.matmul %4, %881, %cst_359 {dimension_numbers = #tpu.dot_dimension_numbers<[1], [1], [0], [0], [0, 0, 1, 0], [], []>} : vector<1x128xf32>, vector<128x128xf32>, vector<1x128xf32> -> vector<1x128xf32>
    %883 = vector.broadcast %5 : vector<1x1xf32> to vector<1x128xf32>
    %884 = arith.addf %882, %883 : vector<1x128xf32>
    %c0_360 = arith.constant 0 : index
    %c0_361 = arith.constant 0 : index
    %c0_362 = arith.constant 0 : index
    %885 = vector.load %arg5[%c0_360, %c0_361, %c0_362] : memref<1x1x128xf32, #tpu.memory_space<vmem>>, vector<1x1x128xf32>
    %886 = vector.shape_cast %885 : vector<1x1x128xf32> to vector<1x128xf32>
    %887 = vector.shape_cast %884 : vector<1x128xf32> to vector<1x1x128xf32>
    tpu.vector_store %arg5[%c0_360, %c0_361, %c0_362], %887 {strides = array<i32>} : memref<1x1x128xf32, #tpu.memory_space<vmem>>, vector<1x1x128xf32>,
    return
  }
  func.func @transform_0(%arg0: i32) -> (i32, i32, i32) {
    %c0_i32 = arith.constant 0 : i32
    %c0_i32_0 = arith.constant 0 : i32
    %c0_i32_1 = arith.constant 0 : i32
    return %arg0, %c0_i32, %c0_i32_0 : i32, i32, i32
  }
  func.func @transform_1(%arg0: i32) -> (i32, i32) {
    %c0_i32 = arith.constant 0 : i32
    %c0_i32_0 = arith.constant 0 : i32
    %c0_i32_1 = arith.constant 0 : i32
    return %c0_i32, %c0_i32_0 : i32, i32
  }
  func.func @transform_2(%arg0: i32) -> (i32, i32) {
    %c0_i32 = arith.constant 0 : i32
    %c0_i32_0 = arith.constant 0 : i32
    %c0_i32_1 = arith.constant 0 : i32
    return %c0_i32, %c0_i32_0 : i32, i32
  }
  func.func @transform_3(%arg0: i32) -> (i32, i32) {
    %c0_i32 = arith.constant 0 : i32
    %c0_i32_0 = arith.constant 0 : i32
    %c0_i32_1 = arith.constant 0 : i32
    return %c0_i32, %c0_i32_0 : i32, i32
  }
  func.func @transform_4(%arg0: i32) -> (i32, i32, i32) {
    %c0_i32 = arith.constant 0 : i32
    %c0_i32_0 = arith.constant 0 : i32
    %c0_i32_1 = arith.constant 0 : i32
    return %arg0, %c0_i32, %c0_i32_0 : i32, i32, i32
  }
}

</mosaic_0001>

<llo_original>
// kernel: tpu_custom_call.1
$region0: #{tpu_custom_call.1}
  #allocation0 [shape = 'u32[]', space=smem, size = 0x4, offset = 0x4, fixed_abs, tag = 'smem constant byte address 0x4 - core index']
  #allocation1 [shape = 'u32[144,128]{1,0:T(1,128)}', space=vmem, size = 0x12000, scoped, tag = 'internal scratch']
  #allocation2 [shape = 'f32[128,128]{1,0:T(8,128)}', space=vmem, size = 0x10000, scoped, tag = 'scratch operand']
  #allocation3 [shape = 'f32[128,128]{1,0:T(8,128)}', space=vmem, size = 0x10000, scoped, tag = 'scratch operand']
  %s0 = inlined_call_operand.vmem [shape: f32[2,128,32], index: 0, kind: input, shape index: {}]
  %s1 = inlined_call_operand.vmem [shape: bf16[32,128], index: 1, kind: input, shape index: {}]
  %s2 = inlined_call_operand.vmem [shape: bf16[128,128], index: 2, kind: input, shape index: {}]
  %s3 = inlined_call_operand.vmem [shape: f32[1,641], index: 3, kind: input, shape index: {}]
  %s4 = inlined_call_operand.hbm [shape: f32[2,1,128], index: 4, kind: output, shape index: {}]
  %s5 = sld [smem:[#allocation0]]
  $region49: #{tpu_custom_call.1} parent=0
    _
  %s7 = ssub.s32 1, %s5
  %s8 = scalar_select 0, %s7, %s5
  $region1: #{tpu_custom_call.1} parent=0
    #allocation4 [shape = 'u8[1024]{0}', space=vmem, size = 0x400, scoped, tag = 'output window, operand 0']
    #allocation5 [shape = 's32[2]{0}', space=sflag, size = 0x8, scoped, tag = 'scoped memory for tpu_custom_call.1']
    %9 = vsyncpa [#allocation5], 0
    %s10 = scalar_lea.sflag [#allocation5], 1
    %11 = vsyncpa %s10, 0
    loop: start=0, step=1, limit=4
    $region2: #{tpu_custom_call.1} parent=1 // loop_pre_header
      _
    $region3: #{tpu_custom_call.1} parent=1 // loop_header
      %s13 = sphi 0, %s17
      %p14 = scmp.ge.s32.totalorder %s13, 4
      %s23 = sphi 0, %s25
      %s26 = sphi 0, %s23
      %s27 = sphi 0, %s26
      %s43 = sphi 0, %s27
      %s47 = sphi 0, %s47
      %s49 = sphi 0, %s47
      %s50 = sphi 0, %s49
      %s64 = sphi 0, %s50
      %s68 = sphi 0, %s68
      %s70 = sphi 0, %s68
      %s71 = sphi 0, %s70
      %s85 = sphi 0, %s71
      %s89 = sphi 0, %s89
      %s91 = sphi 0, %s89
      %s92 = sphi 0, %s91
      %s106 = sphi 0, %s92
      %s112 = sphi 0, %s114
      %s115 = sphi 0, %s112
      %s116 = sphi 0, %s115
      %s132 = sphi 0, %s116
    $region4: #{tpu_custom_call.1} parent=1 // loop_header_branch
      %16 = sbr.rel (%p14) target = $region8
    $region5: #{tpu_custom_call.1} parent=1 // loop_body
      %s18 = ssub.s32 %s13, 1
      %s19 = ssub.s32 %s13, 2
      %s20 = sadd.s32 %s13, 1
      %s21 = ssub.s32 %s13, %s20
      %p22 = scmp.eq.s32.totalorder %s21, 0
      %s24 = sadd.s32 %s23, 1
      %s25 = scalar_select %p22, %s23, %s24
      %p28 = pneg %p22
      %p29 = scmp.eq.s32.totalorder %s13, 1
      %p30 = por %p28, %p29
      %p31 = scmp.ne.s32.totalorder %s23, %s26
      %p32 = scmp.eq.s32.totalorder %s13, 0
      %p33 = por %p31, %p32
      %p34 = scmp.ne.s32.totalorder %s23, %s26
      %p35 = scmp.eq.s32.totalorder %s18, 1
      %p36 = por %p34, %p35
      %p37 = scmp.ne.s32.totalorder %s26, %s27
      %p38 = scmp.eq.s32.totalorder %s18, 0
      %p39 = por %p37, %p38
      %p40 = scmp.ne.s32.totalorder %s26, %s27
      %p41 = scmp.eq.s32.totalorder %s19, 1
      %p42 = por %p40, %p41
      %p44 = scmp.ne.s32.totalorder %s27, %s43
      %p45 = scmp.eq.s32.totalorder %s19, 0
      %p46 = por %p44, %p45
      %s48 = sadd.s32 %s47, 1
      %p51 = scmp.eq.s32.totalorder %s13, 1
      %p52 = scmp.ne.s32.totalorder %s47, %s49
      %p53 = scmp.eq.s32.totalorder %s13, 0
      %p54 = por %p52, %p53
      %p55 = scmp.ne.s32.totalorder %s47, %s49
      %p56 = scmp.eq.s32.totalorder %s18, 1
      %p57 = por %p55, %p56
      %p58 = scmp.ne.s32.totalorder %s49, %s50
      %p59 = scmp.eq.s32.totalorder %s18, 0
      %p60 = por %p58, %p59
      %p61 = scmp.ne.s32.totalorder %s49, %s50
      %p62 = scmp.eq.s32.totalorder %s19, 1
      %p63 = por %p61, %p62
      %p65 = scmp.ne.s32.totalorder %s50, %s64
      %p66 = scmp.eq.s32.totalorder %s19, 0
      %p67 = por %p65, %p66
      %s69 = sadd.s32 %s68, 1
      %p72 = scmp.eq.s32.totalorder %s13, 1
      %p73 = scmp.ne.s32.totalorder %s68, %s70
      %p74 = scmp.eq.s32.totalorder %s13, 0
      %p75 = por %p73, %p74
      %p76 = scmp.ne.s32.totalorder %s68, %s70
      %p77 = scmp.eq.s32.totalorder %s18, 1
      %p78 = por %p76, %p77
      %p79 = scmp.ne.s32.totalorder %s70, %s71
      %p80 = scmp.eq.s32.totalorder %s18, 0
      %p81 = por %p79, %p80
      %p82 = scmp.ne.s32.totalorder %s70, %s71
      %p83 = scmp.eq.s32.totalorder %s19, 1
      %p84 = por %p82, %p83
      %p86 = scmp.ne.s32.totalorder %s71, %s85
      %p87 = scmp.eq.s32.totalorder %s19, 0
      %p88 = por %p86, %p87
      %s90 = sadd.s32 %s89, 1
      %p93 = scmp.eq.s32.totalorder %s13, 1
      %p94 = scmp.ne.s32.totalorder %s89, %s91
      %p95 = scmp.eq.s32.totalorder %s13, 0
      %p96 = por %p94, %p95
      %p97 = scmp.ne.s32.totalorder %s89, %s91
      %p98 = scmp.eq.s32.totalorder %s18, 1
      %p99 = por %p97, %p98
      %p100 = scmp.ne.s32.totalorder %s91, %s92
      %p101 = scmp.eq.s32.totalorder %s18, 0
      %p102 = por %p100, %p101
      %p103 = scmp.ne.s32.totalorder %s91, %s92
      %p104 = scmp.eq.s32.totalorder %s19, 1
      %p105 = por %p103, %p104
      %p107 = scmp.ne.s32.totalorder %s92, %s106
      %p108 = scmp.eq.s32.totalorder %s19, 0
      %p109 = por %p107, %p108
      %s110 = ssub.s32 %s13, %s20
      %p111 = scmp.eq.s32.totalorder %s110, 0
      %s113 = sadd.s32 %s112, 1
      %s114 = scalar_select %p111, %s112, %s113
      %p117 = pneg %p111
      %p118 = scmp.eq.s32.totalorder %s13, 1
      %p119 = por %p117, %p118
      %p120 = scmp.ne.s32.totalorder %s112, %s115
      %p121 = scmp.eq.s32.totalorder %s13, 0
      %p122 = por %p120, %p121
      %p123 = scmp.ne.s32.totalorder %s112, %s115
      %p124 = scmp.eq.s32.totalorder %s18, 1
      %p125 = por %p123, %p124
      %p126 = scmp.ne.s32.totalorder %s115, %s116
      %p127 = scmp.eq.s32.totalorder %s18, 0
      %p128 = por %p126, %p127
      %p129 = scmp.ne.s32.totalorder %s115, %s116
      %p130 = scmp.eq.s32.totalorder %s19, 1
      %p131 = por %p129, %p130
      %p133 = scmp.ne.s32.totalorder %s116, %s132
      %p134 = scmp.eq.s32.totalorder %s19, 0
      %p135 = por %p133, %p134
      %p136 = scmp.le.s32.totalorder 1, %s13
      %p137 = scmp.lt.s32.totalorder %s13, 3
      %p138 = pnand %p136, %p137
      %p139 = pneg %p138
      // Predicated region
      $region9: #{tpu_custom_call.1} parent=5 // pred_check
        _
      $region10: #{tpu_custom_call.1} parent=5 // pred_check_branch
        %141 = sbr.rel (%p138) target = $region12
      $region11: #{tpu_custom_call.1} parent=5 // pred_region
        %s142 = ssub.s32 %s13, 1
        // Predicated region
        $region13: #{tpu_custom_call.1} parent=11 // pred_check
          %p143 = pneg %p60
        $region14: #{tpu_custom_call.1} parent=11 // pred_check_branch
          %145 = sbr.rel (%p143) target = $region16
        $region15: #{tpu_custom_call.1} parent=11 // pred_region
          _
        $region16: #{tpu_custom_call.1} parent=11 // pred_fallthru
          _
        // Predicated region
        $region17: #{tpu_custom_call.1} parent=11 // pred_check
          %p146 = pneg %p81
        $region18: #{tpu_custom_call.1} parent=11 // pred_check_branch
          %148 = sbr.rel (%p146) target = $region20
        $region19: #{tpu_custom_call.1} parent=11 // pred_region
          _
        $region20: #{tpu_custom_call.1} parent=11 // pred_fallthru
          _
        // Predicated region
        $region21: #{tpu_custom_call.1} parent=11 // pred_check
          %p149 = pneg %p102
        $region22: #{tpu_custom_call.1} parent=11 // pred_check_branch
          %151 = sbr.rel (%p149) target = $region24
        $region23: #{tpu_custom_call.1} parent=11 // pred_region
          _
        $region24: #{tpu_custom_call.1} parent=11 // pred_fallthru
          _
      $region12: #{tpu_custom_call.1} parent=5 // pred_fallthru
        _
      %p152 = scmp.lt.s32.totalorder %s13, 2
      // Predicated region
      $region25: #{tpu_custom_call.1} parent=5 // pred_check
        %p153 = pneg %p152
      $region26: #{tpu_custom_call.1} parent=5 // pred_check_branch
        %155 = sbr.rel (%p153) target = $region28
      $region27: #{tpu_custom_call.1} parent=5 // pred_region
        // Predicated region
        $region29: #{tpu_custom_call.1} parent=27 // pred_check
          %p156 = pneg %p33
        $region30: #{tpu_custom_call.1} parent=27 // pred_check_branch
          %158 = sbr.rel (%p156) target = $region32
        $region31: #{tpu_custom_call.1} parent=27 // pred_region
          %p159 = scmp.lt.s32.totalorder %s13, 1
          %s160 = scalar_select %p159, %s13, 1
          %s161 = smul.addr %s160, 16
          %s162 = smul.addr %s161, 8
          %s163 = scalar_lea.vmem %s0, %s162
        $region32: #{tpu_custom_call.1} parent=27 // pred_fallthru
          _
      $region28: #{tpu_custom_call.1} parent=5 // pred_fallthru
        _
      %p164 = scmp.le.s32.totalorder 1, %s13
      %p165 = scmp.lt.s32.totalorder %s13, 3
      %p166 = pnand %p164, %p165
      %p167 = pneg %p166
      // Predicated region
      $region33: #{tpu_custom_call.1} parent=5 // pred_check
        _
      $region34: #{tpu_custom_call.1} parent=5 // pred_check_branch
        %169 = sbr.rel (%p166) target = $region36
      $region35: #{tpu_custom_call.1} parent=5 // pred_region
        %s170 = ssub.s32 %s13, 1
        %p171 = scmp.lt.s32.totalorder %s18, 1
        %s172 = scalar_select %p171, %s18, 1
        %s173 = smul.addr %s172, 16
        %s174 = smul.addr %s173, 8
        %s175 = scalar_lea.vmem %s0, %s174
        %p176 = pneg %p39
        %p177 = pneg %p36
        %p178 = pneg %p60
        %p179 = pneg %p57
        %p180 = pneg %p81
        %p181 = pneg %p78
        %p182 = pneg %p102
        %p183 = pneg %p99
        %p184 = pneg %p128
        %p185 = pneg %p125
        %s186 = sand.u32 %s115, 1
        %s187 = scalar_lea.sflag [#allocation5], %s186
        %s188 = sand.u32 %s115, 1
        %s189 = scalar_lea.vmem [#allocation4], %s188
        %p190 = scmp.lt.s32.totalorder %s18, 1
        %s191 = scalar_select %p190, %s18, 1
        %s192 = smul.addr %s191, 16
        %s193 = smul.addr %s192, 8
        %s194 = scalar_lea.vmem %s0, %s193
        %v196 = vld [vmem:[%s3] sm:$0x1]
        %v197 = vld [vmem:[%s3 + $0x1] sm:$0x1]
        %v198 = vld [vmem:[%s3 + $0x2] sm:$0x1]
        %v199 = vld [vmem:[%s3 + $0x3] sm:$0x1]
        %v200 = vld [vmem:[%s3 + $0x4] sm:$0x1]
        %v201 = vld [vmem:[%s3 + $0x5] sm:$0x1]
        %v202 = vld [vmem:[%s194] sm:$0xff]
        %v203 = vld [vmem:[%s194 + $0x8] sm:$0xff]
        %v204 = vld [vmem:[%s194 + $0x10] sm:$0xff]
        %v205 = vld [vmem:[%s194 + $0x18] sm:$0xff]
        %v206 = vld [vmem:[%s194 + $0x20] sm:$0xff]
        %v207 = vld [vmem:[%s194 + $0x28] sm:$0xff]
        %v208 = vld [vmem:[%s194 + $0x30] sm:$0xff]
        %v209 = vld [vmem:[%s194 + $0x38] sm:$0xff]
        %v210 = vld [vmem:[%s194 + $0x40] sm:$0xff]
        %v211 = vld [vmem:[%s194 + $0x48] sm:$0xff]
        %v212 = vld [vmem:[%s194 + $0x50] sm:$0xff]
        %v213 = vld [vmem:[%s194 + $0x58] sm:$0xff]
        %v214 = vld [vmem:[%s194 + $0x60] sm:$0xff]
        %v215 = vld [vmem:[%s194 + $0x68] sm:$0xff]
        %v216 = vld [vmem:[%s194 + $0x70] sm:$0xff]
        %v217 = vld [vmem:[%s194 + $0x78] sm:$0xff]
        %v218 = vpack.c.bf16 %v203, %v202
        %v219 = vpack.c.bf16 %v205, %v204
        %v220 = vpack.c.bf16 %v207, %v206
        %v221 = vpack.c.bf16 %v209, %v208
        %v222 = vpack.c.bf16 %v211, %v210
        %v223 = vpack.c.bf16 %v213, %v212
        %v224 = vpack.c.bf16 %v215, %v214
        %v225 = vpack.c.bf16 %v217, %v216
        %v226 = vld [vmem:[%s1] sm:$0xf]
        %v227 = vld [vmem:[%s1 + $0x4] sm:$0xf]
        %v228 = vld [vmem:[%s1 + $0x8] sm:$0xf]
        %v229 = vld [vmem:[%s1 + $0xc] sm:$0xf]
        %v234 = vunpack.c.l.b16 %v226
        %v235 = vunpack.c.l.b16 %v227
        %v236 = vunpack.c.l.b16 %v228
        %v237 = vunpack.c.l.b16 %v229
        %v238 = vpack.c.b16 %v235, %v234
        %v239 = vpack.c.b16 %v237, %v236
        %vm242 = vcmask 261120
        %v244 = vsel %vm242, %v218, 0
        %v247 = vsel %vm242, %v219, 0
        %v250 = vsel %vm242, %v220, 0
        %v253 = vsel %vm242, %v221, 0
        %v256 = vsel %vm242, %v222, 0
        %v259 = vsel %vm242, %v223, 0
        %v262 = vsel %vm242, %v224, 0
        %v265 = vsel %vm242, %v225, 0
        %267 = vmatprep.subr.bf16.mxu0 0
        %268 = vmatpush1.bf16.msra.mxu0 %v238
        %269 = vmatprep.subr.bf16.mxu0 0
        %270 = vmatpush1.bf16.msra.mxu0 %v239
        %271 = vmatprep.subr.bf16.mxu0 0
        %272 = vmatpush1.bf16.msra.mxu0 0
        %273 = vmatprep.subr.bf16.mxu0 0
        %274 = vmatpush1.bf16.msra.mxu0 0
        %275 = vmatprep.subr.bf16.mxu0 0
        %276 = vmatpush1.bf16.msra.mxu0 0
        %277 = vmatprep.subr.bf16.mxu0 0
        %278 = vmatpush1.bf16.msra.mxu0 0
        %279 = vmatprep.subr.bf16.mxu0 0
        %280 = vmatpush1.bf16.msra.mxu0 0
        %281 = vmatprep.subr.bf16.mxu0 0
        %282 = vmatpush1.bf16.msra.mxu0 0
        %283 = vmatprep.subr.bf16.mxu0 0
        %284 = vmatpush1.bf16.msra.mxu0 0
        %285 = vmatprep.subr.bf16.mxu0 0
        %286 = vmatpush1.bf16.msra.mxu0 0
        %287 = vmatprep.subr.bf16.mxu0 0
        %288 = vmatpush1.bf16.msra.mxu0 0
        %289 = vmatprep.subr.bf16.mxu0 0
        %290 = vmatpush1.bf16.msra.mxu0 0
        %291 = vmatprep.subr.bf16.mxu0 0
        %292 = vmatpush1.bf16.msra.mxu0 0
        %293 = vmatprep.subr.bf16.mxu0 0
        %294 = vmatpush1.bf16.msra.mxu0 0
        %295 = vmatprep.subr.bf16.mxu0 0
        %296 = vmatpush1.bf16.msra.mxu0 0
        %297 = vmatprep.subr.bf16.mxu0 0
        %298 = vmatpush1.bf16.msra.mxu0 0
        %299 = vmatprep.mubr.bf16.mxu0 0
        %300 = vmatmul.mubr.bf16.gmra.mrb[0].mxu0 %v244
        %v301 = vpop.f32.mrb[0].mxu0
        %v302 = vadd.f32 0.0, %v301
        %v303 = vpop.f32.mrb[0].mxu0
        %v304 = vpop.f32.mrb[0].mxu0
        %v305 = vadd.f32 0.0, %v304
        %v306 = vpop.f32.mrb[0].mxu0
        %307 = vmatprep.mubr.bf16.mxu0 0
        %308 = vmatmul.mubr.bf16.gmra.mrb[0].mxu0 %v247
        %v309 = vpop.f32.mrb[0].mxu0
        %v310 = vadd.f32 0.0, %v309
        %v311 = vpop.f32.mrb[0].mxu0
        %v312 = vpop.f32.mrb[0].mxu0
        %v313 = vadd.f32 0.0, %v312
        %v314 = vpop.f32.mrb[0].mxu0
        %315 = vmatprep.mubr.bf16.mxu0 0
        %316 = vmatmul.mubr.bf16.gmra.mrb[0].mxu0 %v250
        %v317 = vpop.f32.mrb[0].mxu0
        %v318 = vadd.f32 0.0, %v317
        %v319 = vpop.f32.mrb[0].mxu0
        %v320 = vpop.f32.mrb[0].mxu0
        %v321 = vadd.f32 0.0, %v320
        %v322 = vpop.f32.mrb[0].mxu0
        %323 = vmatprep.mubr.bf16.mxu0 0
        %324 = vmatmul.mubr.bf16.gmra.mrb[0].mxu0 %v253
        %v325 = vpop.f32.mrb[0].mxu0
        %v326 = vadd.f32 0.0, %v325
        %v327 = vpop.f32.mrb[0].mxu0
        %v328 = vpop.f32.mrb[0].mxu0
        %v329 = vadd.f32 0.0, %v328
        %v330 = vpop.f32.mrb[0].mxu0
        %331 = vmatprep.mubr.bf16.mxu0 0
        %332 = vmatmul.mubr.bf16.gmra.mrb[0].mxu0 %v256
        %v333 = vpop.f32.mrb[0].mxu0
        %v334 = vadd.f32 0.0, %v333
        %v335 = vpop.f32.mrb[0].mxu0
        %v336 = vpop.f32.mrb[0].mxu0
        %v337 = vadd.f32 0.0, %v336
        %v338 = vpop.f32.mrb[0].mxu0
        %339 = vmatprep.mubr.bf16.mxu0 0
        %340 = vmatmul.mubr.bf16.gmra.mrb[0].mxu0 %v259
        %v341 = vpop.f32.mrb[0].mxu0
        %v342 = vadd.f32 0.0, %v341
        %v343 = vpop.f32.mrb[0].mxu0
        %v344 = vpop.f32.mrb[0].mxu0
        %v345 = vadd.f32 0.0, %v344
        %v346 = vpop.f32.mrb[0].mxu0
        %347 = vmatprep.mubr.bf16.mxu0 0
        %348 = vmatmul.mubr.bf16.gmra.mrb[0].mxu0 %v262
        %v349 = vpop.f32.mrb[0].mxu0
        %v350 = vadd.f32 0.0, %v349
        %v351 = vpop.f32.mrb[0].mxu0
        %v352 = vpop.f32.mrb[0].mxu0
        %v353 = vadd.f32 0.0, %v352
        %v354 = vpop.f32.mrb[0].mxu0
        %355 = vmatprep.mubr.bf16.mxu0 0
        %356 = vmatmul.mubr.bf16.gmra.mrb[0].mxu0 %v265
        %v357 = vpop.f32.mrb[0].mxu0
        %v358 = vadd.f32 0.0, %v357
        %v359 = vpop.f32.mrb[0].mxu0
        %v360 = vpop.f32.mrb[0].mxu0
        %v361 = vadd.f32 0.0, %v360
        %v362 = vpop.f32.mrb[0].mxu0
        %363 = vdwg.mxu0
        %364 = vst [vmem:[#allocation2] sm:$0xff] %v302
        %365 = vst [vmem:[#allocation2 + $0x8] sm:$0xff] %v305
        %366 = vst [vmem:[#allocation2 + $0x10] sm:$0xff] %v310
        %367 = vst [vmem:[#allocation2 + $0x18] sm:$0xff] %v313
        %368 = vst [vmem:[#allocation2 + $0x20] sm:$0xff] %v318
        %369 = vst [vmem:[#allocation2 + $0x28] sm:$0xff] %v321
        %370 = vst [vmem:[#allocation2 + $0x30] sm:$0xff] %v326
        %371 = vst [vmem:[#allocation2 + $0x38] sm:$0xff] %v329
        %372 = vst [vmem:[#allocation2 + $0x40] sm:$0xff] %v334
        %373 = vst [vmem:[#allocation2 + $0x48] sm:$0xff] %v337
        %374 = vst [vmem:[#allocation2 + $0x50] sm:$0xff] %v342
        %375 = vst [vmem:[#allocation2 + $0x58] sm:$0xff] %v345
        %376 = vst [vmem:[#allocation2 + $0x60] sm:$0xff] %v350
        %377 = vst [vmem:[#allocation2 + $0x68] sm:$0xff] %v353
        %378 = vst [vmem:[#allocation2 + $0x70] sm:$0xff] %v358
        %379 = vst [vmem:[#allocation2 + $0x78] sm:$0xff] %v361
        %v380 = vld [vmem:[#allocation2] sm:$0xff]
        %v381 = vrot.slane %v380, 4
        %v382 = vadd.f32 %v380, %v381
        %v383 = vrot.slane %v382, 2
        %v384 = vadd.f32 %v382, %v383
        %v385 = vrot.slane %v384, 1
        %v386 = vadd.f32 %v384, %v385
        %v387 = vmul.f32 %v386, 0.125
        %v388 = vmul.f32 %v380, %v380
        %v389 = vrot.slane %v388, 4
        %v390 = vadd.f32 %v388, %v389
        %v391 = vrot.slane %v390, 2
        %v392 = vadd.f32 %v390, %v391
        %v393 = vrot.slane %v392, 1
        %v394 = vadd.f32 %v392, %v393
        %v395 = vmul.f32 %v394, 0.125
        %v396 = vmul.f32 %v387, %v387
        %v397 = vsub.f32 %v395, %v396
        %v398 = vmax.f32 %v397, 0.0
        %v399 = vadd.f32 %v398, 1e-05
        %v400 = vrsqrt.pop %v399
        %v401 = vmul.f32 %v196, %v400
        %v402 = vmul.f32 %v387, %v401
        %v403 = vsub.f32 %v197, %v402
        %v405 = vlaneseq
        %v406 = vshrl.u32 %v405, 7
        %v407 = vsub.s32 0, %v406
        %v408 = vrot.slane %v401, %v407
        %v410 = vmul.f32 %v380, %v408
        %v412 = vlaneseq
        %v413 = vshrl.u32 %v412, 7
        %v414 = vsub.s32 0, %v413
        %v415 = vrot.slane %v403, %v414
        %v417 = vadd.f32 %v410, %v415
        %v418 = vmax.f32 %v417, 0.0
        %419 = vst [vmem:[#allocation2] sm:$0xff] %v418
        %v420 = vld [vmem:[#allocation2 + $0x8] sm:$0xff]
        %v421 = vrot.slane %v420, 4
        %v422 = vadd.f32 %v420, %v421
        %v423 = vrot.slane %v422, 2
        %v424 = vadd.f32 %v422, %v423
        %v425 = vrot.slane %v424, 1
        %v426 = vadd.f32 %v424, %v425
        %v427 = vmul.f32 %v426, 0.125
        %v428 = vmul.f32 %v420, %v420
        %v429 = vrot.slane %v428, 4
        %v430 = vadd.f32 %v428, %v429
        %v431 = vrot.slane %v430, 2
        %v432 = vadd.f32 %v430, %v431
        %v433 = vrot.slane %v432, 1
        %v434 = vadd.f32 %v432, %v433
        %v435 = vmul.f32 %v434, 0.125
        %v436 = vmul.f32 %v427, %v427
        %v437 = vsub.f32 %v435, %v436
        %v438 = vmax.f32 %v437, 0.0
        %v439 = vadd.f32 %v438, 1e-05
        %v440 = vrsqrt.pop %v439
        %v441 = vmul.f32 %v196, %v440
        %v442 = vmul.f32 %v427, %v441
        %v443 = vsub.f32 %v197, %v442
        %v445 = vlaneseq
        %v446 = vshrl.u32 %v445, 7
        %v447 = vsub.s32 0, %v446
        %v448 = vrot.slane %v441, %v447
        %v450 = vmul.f32 %v420, %v448
        %v452 = vlaneseq
        %v453 = vshrl.u32 %v452, 7
        %v454 = vsub.s32 0, %v453
        %v455 = vrot.slane %v443, %v454
        %v457 = vadd.f32 %v450, %v455
        %v458 = vmax.f32 %v457, 0.0
        %459 = vst [vmem:[#allocation2 + $0x8] sm:$0xff] %v458
        %v460 = vld [vmem:[#allocation2 + $0x10] sm:$0xff]
        %v461 = vrot.slane %v460, 4
        %v462 = vadd.f32 %v460, %v461
        %v463 = vrot.slane %v462, 2
        %v464 = vadd.f32 %v462, %v463
        %v465 = vrot.slane %v464, 1
        %v466 = vadd.f32 %v464, %v465
        %v467 = vmul.f32 %v466, 0.125
        %v468 = vmul.f32 %v460, %v460
        %v469 = vrot.slane %v468, 4
        %v470 = vadd.f32 %v468, %v469
        %v471 = vrot.slane %v470, 2
        %v472 = vadd.f32 %v470, %v471
        %v473 = vrot.slane %v472, 1
        %v474 = vadd.f32 %v472, %v473
        %v475 = vmul.f32 %v474, 0.125
        %v476 = vmul.f32 %v467, %v467
        %v477 = vsub.f32 %v475, %v476
        %v478 = vmax.f32 %v477, 0.0
        %v479 = vadd.f32 %v478, 1e-05
        %v480 = vrsqrt.pop %v479
        %v481 = vmul.f32 %v196, %v480
        %v482 = vmul.f32 %v467, %v481
        %v483 = vsub.f32 %v197, %v482
        %v485 = vlaneseq
        %v486 = vshrl.u32 %v485, 7
        %v487 = vsub.s32 0, %v486
        %v488 = vrot.slane %v481, %v487
        %v490 = vmul.f32 %v460, %v488
        %v492 = vlaneseq
        %v493 = vshrl.u32 %v492, 7
        %v494 = vsub.s32 0, %v493
        %v495 = vrot.slane %v483, %v494
        %v497 = vadd.f32 %v490, %v495
        %v498 = vmax.f32 %v497, 0.0
        %499 = vst [vmem:[#allocation2 + $0x10] sm:$0xff] %v498
        %v500 = vld [vmem:[#allocation2 + $0x18] sm:$0xff]
        %v501 = vrot.slane %v500, 4
        %v502 = vadd.f32 %v500, %v501
        %v503 = vrot.slane %v502, 2
        %v504 = vadd.f32 %v502, %v503
        %v505 = vrot.slane %v504, 1
        %v506 = vadd.f32 %v504, %v505
        %v507 = vmul.f32 %v506, 0.125
        %v508 = vmul.f32 %v500, %v500
        %v509 = vrot.slane %v508, 4
        %v510 = vadd.f32 %v508, %v509
        %v511 = vrot.slane %v510, 2
        %v512 = vadd.f32 %v510, %v511
        %v513 = vrot.slane %v512, 1
        %v514 = vadd.f32 %v512, %v513
        %v515 = vmul.f32 %v514, 0.125
        %v516 = vmul.f32 %v507, %v507
        %v517 = vsub.f32 %v515, %v516
        %v518 = vmax.f32 %v517, 0.0
        %v519 = vadd.f32 %v518, 1e-05
        %v520 = vrsqrt.pop %v519
        %v521 = vmul.f32 %v196, %v520
        %v522 = vmul.f32 %v507, %v521
        %v523 = vsub.f32 %v197, %v522
        %v525 = vlaneseq
        %v526 = vshrl.u32 %v525, 7
        %v527 = vsub.s32 0, %v526
        %v528 = vrot.slane %v521, %v527
        %v530 = vmul.f32 %v500, %v528
        %v532 = vlaneseq
        %v533 = vshrl.u32 %v532, 7
        %v534 = vsub.s32 0, %v533
        %v535 = vrot.slane %v523, %v534
        %v537 = vadd.f32 %v530, %v535
        %v538 = vmax.f32 %v537, 0.0
        %539 = vst [vmem:[#allocation2 + $0x18] sm:$0xff] %v538
        %v540 = vld [vmem:[#allocation2 + $0x20] sm:$0xff]
        %v541 = vrot.slane %v540, 4
        %v542 = vadd.f32 %v540, %v541
        %v543 = vrot.slane %v542, 2
        %v544 = vadd.f32 %v542, %v543
        %v545 = vrot.slane %v544, 1
        %v546 = vadd.f32 %v544, %v545
        %v547 = vmul.f32 %v546, 0.125
        %v548 = vmul.f32 %v540, %v540
        %v549 = vrot.slane %v548, 4
        %v550 = vadd.f32 %v548, %v549
        %v551 = vrot.slane %v550, 2
        %v552 = vadd.f32 %v550, %v551
        %v553 = vrot.slane %v552, 1
        %v554 = vadd.f32 %v552, %v553
        %v555 = vmul.f32 %v554, 0.125
        %v556 = vmul.f32 %v547, %v547
        %v557 = vsub.f32 %v555, %v556
        %v558 = vmax.f32 %v557, 0.0
        %v559 = vadd.f32 %v558, 1e-05
        %v560 = vrsqrt.pop %v559
        %v561 = vmul.f32 %v196, %v560
        %v562 = vmul.f32 %v547, %v561
        %v563 = vsub.f32 %v197, %v562
        %v565 = vlaneseq
        %v566 = vshrl.u32 %v565, 7
        %v567 = vsub.s32 0, %v566
        %v568 = vrot.slane %v561, %v567
        %v570 = vmul.f32 %v540, %v568
        %v572 = vlaneseq
        %v573 = vshrl.u32 %v572, 7
        %v574 = vsub.s32 0, %v573
        %v575 = vrot.slane %v563, %v574
        %v577 = vadd.f32 %v570, %v575
        %v578 = vmax.f32 %v577, 0.0
        %579 = vst [vmem:[#allocation2 + $0x20] sm:$0xff] %v578
        %v580 = vld [vmem:[#allocation2 + $0x28] sm:$0xff]
        %v581 = vrot.slane %v580, 4
        %v582 = vadd.f32 %v580, %v581
        %v583 = vrot.slane %v582, 2
        %v584 = vadd.f32 %v582, %v583
        %v585 = vrot.slane %v584, 1
        %v586 = vadd.f32 %v584, %v585
        %v587 = vmul.f32 %v586, 0.125
        %v588 = vmul.f32 %v580, %v580
        %v589 = vrot.slane %v588, 4
        %v590 = vadd.f32 %v588, %v589
        %v591 = vrot.slane %v590, 2
        %v592 = vadd.f32 %v590, %v591
        %v593 = vrot.slane %v592, 1
        %v594 = vadd.f32 %v592, %v593
        %v595 = vmul.f32 %v594, 0.125
        %v596 = vmul.f32 %v587, %v587
        %v597 = vsub.f32 %v595, %v596
        %v598 = vmax.f32 %v597, 0.0
        %v599 = vadd.f32 %v598, 1e-05
        %v600 = vrsqrt.pop %v599
        %v601 = vmul.f32 %v196, %v600
        %v602 = vmul.f32 %v587, %v601
        %v603 = vsub.f32 %v197, %v602
        %v605 = vlaneseq
        %v606 = vshrl.u32 %v605, 7
        %v607 = vsub.s32 0, %v606
        %v608 = vrot.slane %v601, %v607
        %v610 = vmul.f32 %v580, %v608
        %v612 = vlaneseq
        %v613 = vshrl.u32 %v612, 7
        %v614 = vsub.s32 0, %v613
        %v615 = vrot.slane %v603, %v614
        %v617 = vadd.f32 %v610, %v615
        %v618 = vmax.f32 %v617, 0.0
        %619 = vst [vmem:[#allocation2 + $0x28] sm:$0xff] %v618
        %v620 = vld [vmem:[#allocation2 + $0x30] sm:$0xff]
        %v621 = vrot.slane %v620, 4
        %v622 = vadd.f32 %v620, %v621
        %v623 = vrot.slane %v622, 2
        %v624 = vadd.f32 %v622, %v623
        %v625 = vrot.slane %v624, 1
        %v626 = vadd.f32 %v624, %v625
        %v627 = vmul.f32 %v626, 0.125
        %v628 = vmul.f32 %v620, %v620
        %v629 = vrot.slane %v628, 4
        %v630 = vadd.f32 %v628, %v629
        %v631 = vrot.slane %v630, 2
        %v632 = vadd.f32 %v630, %v631
        %v633 = vrot.slane %v632, 1
        %v634 = vadd.f32 %v632, %v633
        %v635 = vmul.f32 %v634, 0.125
        %v636 = vmul.f32 %v627, %v627
        %v637 = vsub.f32 %v635, %v636
        %v638 = vmax.f32 %v637, 0.0
        %v639 = vadd.f32 %v638, 1e-05
        %v640 = vrsqrt.pop %v639
        %v641 = vmul.f32 %v196, %v640
        %v642 = vmul.f32 %v627, %v641
        %v643 = vsub.f32 %v197, %v642
        %v645 = vlaneseq
        %v646 = vshrl.u32 %v645, 7
        %v647 = vsub.s32 0, %v646
        %v648 = vrot.slane %v641, %v647
        %v650 = vmul.f32 %v620, %v648
        %v652 = vlaneseq
        %v653 = vshrl.u32 %v652, 7
        %v654 = vsub.s32 0, %v653
        %v655 = vrot.slane %v643, %v654
        %v657 = vadd.f32 %v650, %v655
        %v658 = vmax.f32 %v657, 0.0
        %659 = vst [vmem:[#allocation2 + $0x30] sm:$0xff] %v658
        %v660 = vld [vmem:[#allocation2 + $0x38] sm:$0xff]
        %v661 = vrot.slane %v660, 4
        %v662 = vadd.f32 %v660, %v661
        %v663 = vrot.slane %v662, 2
        %v664 = vadd.f32 %v662, %v663
        %v665 = vrot.slane %v664, 1
        %v666 = vadd.f32 %v664, %v665
        %v667 = vmul.f32 %v666, 0.125
        %v668 = vmul.f32 %v660, %v660
        %v669 = vrot.slane %v668, 4
        %v670 = vadd.f32 %v668, %v669
        %v671 = vrot.slane %v670, 2
        %v672 = vadd.f32 %v670, %v671
        %v673 = vrot.slane %v672, 1
        %v674 = vadd.f32 %v672, %v673
        %v675 = vmul.f32 %v674, 0.125
        %v676 = vmul.f32 %v667, %v667
        %v677 = vsub.f32 %v675, %v676
        %v678 = vmax.f32 %v677, 0.0
        %v679 = vadd.f32 %v678, 1e-05
        %v680 = vrsqrt.pop %v679
        %v681 = vmul.f32 %v196, %v680
        %v682 = vmul.f32 %v667, %v681
        %v683 = vsub.f32 %v197, %v682
        %v685 = vlaneseq
        %v686 = vshrl.u32 %v685, 7
        %v687 = vsub.s32 0, %v686
        %v688 = vrot.slane %v681, %v687
        %v690 = vmul.f32 %v660, %v688
        %v692 = vlaneseq
        %v693 = vshrl.u32 %v692, 7
        %v694 = vsub.s32 0, %v693
        %v695 = vrot.slane %v683, %v694
        %v697 = vadd.f32 %v690, %v695
        %v698 = vmax.f32 %v697, 0.0
        %699 = vst [vmem:[#allocation2 + $0x38] sm:$0xff] %v698
        %v700 = vld [vmem:[#allocation2 + $0x40] sm:$0xff]
        %v701 = vrot.slane %v700, 4
        %v702 = vadd.f32 %v700, %v701
        %v703 = vrot.slane %v702, 2
        %v704 = vadd.f32 %v702, %v703
        %v705 = vrot.slane %v704, 1
        %v706 = vadd.f32 %v704, %v705
        %v707 = vmul.f32 %v706, 0.125
        %v708 = vmul.f32 %v700, %v700
        %v709 = vrot.slane %v708, 4
        %v710 = vadd.f32 %v708, %v709
        %v711 = vrot.slane %v710, 2
        %v712 = vadd.f32 %v710, %v711
        %v713 = vrot.slane %v712, 1
        %v714 = vadd.f32 %v712, %v713
        %v715 = vmul.f32 %v714, 0.125
        %v716 = vmul.f32 %v707, %v707
        %v717 = vsub.f32 %v715, %v716
        %v718 = vmax.f32 %v717, 0.0
        %v719 = vadd.f32 %v718, 1e-05
        %v720 = vrsqrt.pop %v719
        %v721 = vmul.f32 %v196, %v720
        %v722 = vmul.f32 %v707, %v721
        %v723 = vsub.f32 %v197, %v722
        %v725 = vlaneseq
        %v726 = vshrl.u32 %v725, 7
        %v727 = vsub.s32 0, %v726
        %v728 = vrot.slane %v721, %v727
        %v730 = vmul.f32 %v700, %v728
        %v732 = vlaneseq
        %v733 = vshrl.u32 %v732, 7
        %v734 = vsub.s32 0, %v733
        %v735 = vrot.slane %v723, %v734
        %v737 = vadd.f32 %v730, %v735
        %v738 = vmax.f32 %v737, 0.0
        %739 = vst [vmem:[#allocation2 + $0x40] sm:$0xff] %v738
        %v740 = vld [vmem:[#allocation2 + $0x48] sm:$0xff]
        %v741 = vrot.slane %v740, 4
        %v742 = vadd.f32 %v740, %v741
        %v743 = vrot.slane %v742, 2
        %v744 = vadd.f32 %v742, %v743
        %v745 = vrot.slane %v744, 1
        %v746 = vadd.f32 %v744, %v745
        %v747 = vmul.f32 %v746, 0.125
        %v748 = vmul.f32 %v740, %v740
        %v749 = vrot.slane %v748, 4
        %v750 = vadd.f32 %v748, %v749
        %v751 = vrot.slane %v750, 2
        %v752 = vadd.f32 %v750, %v751
        %v753 = vrot.slane %v752, 1
        %v754 = vadd.f32 %v752, %v753
        %v755 = vmul.f32 %v754, 0.125
        %v756 = vmul.f32 %v747, %v747
        %v757 = vsub.f32 %v755, %v756
        %v758 = vmax.f32 %v757, 0.0
        %v759 = vadd.f32 %v758, 1e-05
        %v760 = vrsqrt.pop %v759
        %v761 = vmul.f32 %v196, %v760
        %v762 = vmul.f32 %v747, %v761
        %v763 = vsub.f32 %v197, %v762
        %v765 = vlaneseq
        %v766 = vshrl.u32 %v765, 7
        %v767 = vsub.s32 0, %v766
        %v768 = vrot.slane %v761, %v767
        %v770 = vmul.f32 %v740, %v768
        %v772 = vlaneseq
        %v773 = vshrl.u32 %v772, 7
        %v774 = vsub.s32 0, %v773
        %v775 = vrot.slane %v763, %v774
        %v777 = vadd.f32 %v770, %v775
        %v778 = vmax.f32 %v777, 0.0
        %779 = vst [vmem:[#allocation2 + $0x48] sm:$0xff] %v778
        %v780 = vld [vmem:[#allocation2 + $0x50] sm:$0xff]
        %v781 = vrot.slane %v780, 4
        %v782 = vadd.f32 %v780, %v781
        %v783 = vrot.slane %v782, 2
        %v784 = vadd.f32 %v782, %v783
        %v785 = vrot.slane %v784, 1
        %v786 = vadd.f32 %v784, %v785
        %v787 = vmul.f32 %v786, 0.125
        %v788 = vmul.f32 %v780, %v780
        %v789 = vrot.slane %v788, 4
        %v790 = vadd.f32 %v788, %v789
        %v791 = vrot.slane %v790, 2
        %v792 = vadd.f32 %v790, %v791
        %v793 = vrot.slane %v792, 1
        %v794 = vadd.f32 %v792, %v793
        %v795 = vmul.f32 %v794, 0.125
        %v796 = vmul.f32 %v787, %v787
        %v797 = vsub.f32 %v795, %v796
        %v798 = vmax.f32 %v797, 0.0
        %v799 = vadd.f32 %v798, 1e-05
        %v800 = vrsqrt.pop %v799
        %v801 = vmul.f32 %v196, %v800
        %v802 = vmul.f32 %v787, %v801
        %v803 = vsub.f32 %v197, %v802
        %v805 = vlaneseq
        %v806 = vshrl.u32 %v805, 7
        %v807 = vsub.s32 0, %v806
        %v808 = vrot.slane %v801, %v807
        %v810 = vmul.f32 %v780, %v808
        %v812 = vlaneseq
        %v813 = vshrl.u32 %v812, 7
        %v814 = vsub.s32 0, %v813
        %v815 = vrot.slane %v803, %v814
        %v817 = vadd.f32 %v810, %v815
        %v818 = vmax.f32 %v817, 0.0
        %819 = vst [vmem:[#allocation2 + $0x50] sm:$0xff] %v818
        %v820 = vld [vmem:[#allocation2 + $0x58] sm:$0xff]
        %v821 = vrot.slane %v820, 4
        %v822 = vadd.f32 %v820, %v821
        %v823 = vrot.slane %v822, 2
        %v824 = vadd.f32 %v822, %v823
        %v825 = vrot.slane %v824, 1
        %v826 = vadd.f32 %v824, %v825
        %v827 = vmul.f32 %v826, 0.125
        %v828 = vmul.f32 %v820, %v820
        %v829 = vrot.slane %v828, 4
        %v830 = vadd.f32 %v828, %v829
        %v831 = vrot.slane %v830, 2
        %v832 = vadd.f32 %v830, %v831
        %v833 = vrot.slane %v832, 1
        %v834 = vadd.f32 %v832, %v833
        %v835 = vmul.f32 %v834, 0.125
        %v836 = vmul.f32 %v827, %v827
        %v837 = vsub.f32 %v835, %v836
        %v838 = vmax.f32 %v837, 0.0
        %v839 = vadd.f32 %v838, 1e-05
        %v840 = vrsqrt.pop %v839
        %v841 = vmul.f32 %v196, %v840
        %v842 = vmul.f32 %v827, %v841
        %v843 = vsub.f32 %v197, %v842
        %v845 = vlaneseq
        %v846 = vshrl.u32 %v845, 7
        %v847 = vsub.s32 0, %v846
        %v848 = vrot.slane %v841, %v847
        %v850 = vmul.f32 %v820, %v848
        %v852 = vlaneseq
        %v853 = vshrl.u32 %v852, 7
        %v854 = vsub.s32 0, %v853
        %v855 = vrot.slane %v843, %v854
        %v857 = vadd.f32 %v850, %v855
        %v858 = vmax.f32 %v857, 0.0
        %859 = vst [vmem:[#allocation2 + $0x58] sm:$0xff] %v858
        %v860 = vld [vmem:[#allocation2 + $0x60] sm:$0xff]
        %v861 = vrot.slane %v860, 4
        %v862 = vadd.f32 %v860, %v861
        %v863 = vrot.slane %v862, 2
        %v864 = vadd.f32 %v862, %v863
        %v865 = vrot.slane %v864, 1
        %v866 = vadd.f32 %v864, %v865
        %v867 = vmul.f32 %v866, 0.125
        %v868 = vmul.f32 %v860, %v860
        %v869 = vrot.slane %v868, 4
        %v870 = vadd.f32 %v868, %v869
        %v871 = vrot.slane %v870, 2
        %v872 = vadd.f32 %v870, %v871
        %v873 = vrot.slane %v872, 1
        %v874 = vadd.f32 %v872, %v873
        %v875 = vmul.f32 %v874, 0.125
        %v876 = vmul.f32 %v867, %v867
        %v877 = vsub.f32 %v875, %v876
        %v878 = vmax.f32 %v877, 0.0
        %v879 = vadd.f32 %v878, 1e-05
        %v880 = vrsqrt.pop %v879
        %v881 = vmul.f32 %v196, %v880
        %v882 = vmul.f32 %v867, %v881
        %v883 = vsub.f32 %v197, %v882
        %v885 = vlaneseq
        %v886 = vshrl.u32 %v885, 7
        %v887 = vsub.s32 0, %v886
        %v888 = vrot.slane %v881, %v887
        %v890 = vmul.f32 %v860, %v888
        %v892 = vlaneseq
        %v893 = vshrl.u32 %v892, 7
        %v894 = vsub.s32 0, %v893
        %v895 = vrot.slane %v883, %v894
        %v897 = vadd.f32 %v890, %v895
        %v898 = vmax.f32 %v897, 0.0
        %899 = vst [vmem:[#allocation2 + $0x60] sm:$0xff] %v898
        %v900 = vld [vmem:[#allocation2 + $0x68] sm:$0xff]
        %v901 = vrot.slane %v900, 4
        %v902 = vadd.f32 %v900, %v901
        %v903 = vrot.slane %v902, 2
        %v904 = vadd.f32 %v902, %v903
        %v905 = vrot.slane %v904, 1
        %v906 = vadd.f32 %v904, %v905
        %v907 = vmul.f32 %v906, 0.125
        %v908 = vmul.f32 %v900, %v900
        %v909 = vrot.slane %v908, 4
        %v910 = vadd.f32 %v908, %v909
        %v911 = vrot.slane %v910, 2
        %v912 = vadd.f32 %v910, %v911
        %v913 = vrot.slane %v912, 1
        %v914 = vadd.f32 %v912, %v913
        %v915 = vmul.f32 %v914, 0.125
        %v916 = vmul.f32 %v907, %v907
        %v917 = vsub.f32 %v915, %v916
        %v918 = vmax.f32 %v917, 0.0
        %v919 = vadd.f32 %v918, 1e-05
        %v920 = vrsqrt.pop %v919
        %v921 = vmul.f32 %v196, %v920
        %v922 = vmul.f32 %v907, %v921
        %v923 = vsub.f32 %v197, %v922
        %v925 = vlaneseq
        %v926 = vshrl.u32 %v925, 7
        %v927 = vsub.s32 0, %v926
        %v928 = vrot.slane %v921, %v927
        %v930 = vmul.f32 %v900, %v928
        %v932 = vlaneseq
        %v933 = vshrl.u32 %v932, 7
        %v934 = vsub.s32 0, %v933
        %v935 = vrot.slane %v923, %v934
        %v937 = vadd.f32 %v930, %v935
        %v938 = vmax.f32 %v937, 0.0
        %939 = vst [vmem:[#allocation2 + $0x68] sm:$0xff] %v938
        %v940 = vld [vmem:[#allocation2 + $0x70] sm:$0xff]
        %v941 = vrot.slane %v940, 4
        %v942 = vadd.f32 %v940, %v941
        %v943 = vrot.slane %v942, 2
        %v944 = vadd.f32 %v942, %v943
        %v945 = vrot.slane %v944, 1
        %v946 = vadd.f32 %v944, %v945
        %v947 = vmul.f32 %v946, 0.125
        %v948 = vmul.f32 %v940, %v940
        %v949 = vrot.slane %v948, 4
        %v950 = vadd.f32 %v948, %v949
        %v951 = vrot.slane %v950, 2
        %v952 = vadd.f32 %v950, %v951
        %v953 = vrot.slane %v952, 1
        %v954 = vadd.f32 %v952, %v953
        %v955 = vmul.f32 %v954, 0.125
        %v956 = vmul.f32 %v947, %v947
        %v957 = vsub.f32 %v955, %v956
        %v958 = vmax.f32 %v957, 0.0
        %v959 = vadd.f32 %v958, 1e-05
        %v960 = vrsqrt.pop %v959
        %v961 = vmul.f32 %v196, %v960
        %v962 = vmul.f32 %v947, %v961
        %v963 = vsub.f32 %v197, %v962
        %v965 = vlaneseq
        %v966 = vshrl.u32 %v965, 7
        %v967 = vsub.s32 0, %v966
        %v968 = vrot.slane %v961, %v967
        %v970 = vmul.f32 %v940, %v968
        %v972 = vlaneseq
        %v973 = vshrl.u32 %v972, 7
        %v974 = vsub.s32 0, %v973
        %v975 = vrot.slane %v963, %v974
        %v977 = vadd.f32 %v970, %v975
        %v978 = vmax.f32 %v977, 0.0
        %979 = vst [vmem:[#allocation2 + $0x70] sm:$0xff] %v978
        %v980 = vld [vmem:[#allocation2 + $0x78] sm:$0xff]
        %v981 = vrot.slane %v980, 4
        %v982 = vadd.f32 %v980, %v981
        %v983 = vrot.slane %v982, 2
        %v984 = vadd.f32 %v982, %v983
        %v985 = vrot.slane %v984, 1
        %v986 = vadd.f32 %v984, %v985
        %v987 = vmul.f32 %v986, 0.125
        %v988 = vmul.f32 %v980, %v980
        %v989 = vrot.slane %v988, 4
        %v990 = vadd.f32 %v988, %v989
        %v991 = vrot.slane %v990, 2
        %v992 = vadd.f32 %v990, %v991
        %v993 = vrot.slane %v992, 1
        %v994 = vadd.f32 %v992, %v993
        %v995 = vmul.f32 %v994, 0.125
        %v996 = vmul.f32 %v987, %v987
        %v997 = vsub.f32 %v995, %v996
        %v998 = vmax.f32 %v997, 0.0
        %v999 = vadd.f32 %v998, 1e-05
        %v1000 = vrsqrt.pop %v999
        %v1001 = vmul.f32 %v196, %v1000
        %v1002 = vmul.f32 %v987, %v1001
        %v1003 = vsub.f32 %v197, %v1002
        %v1005 = vlaneseq
        %v1006 = vshrl.u32 %v1005, 7
        %v1007 = vsub.s32 0, %v1006
        %v1008 = vrot.slane %v1001, %v1007
        %v1010 = vmul.f32 %v980, %v1008
        %v1012 = vlaneseq
        %v1013 = vshrl.u32 %v1012, 7
        %v1014 = vsub.s32 0, %v1013
        %v1015 = vrot.slane %v1003, %v1014
        %v1017 = vadd.f32 %v1010, %v1015
        %v1018 = vmax.f32 %v1017, 0.0
        %1019 = vst [vmem:[#allocation2 + $0x78] sm:$0xff] %v1018
        %v1020 = vld [vmem:[#allocation2] sm:$0xff]
        %v1021 = vld [vmem:[#allocation2 + $0x8] sm:$0xff]
        %v1022 = vld [vmem:[#allocation2 + $0x10] sm:$0xff]
        %v1023 = vld [vmem:[#allocation2 + $0x18] sm:$0xff]
        %v1024 = vld [vmem:[#allocation2 + $0x20] sm:$0xff]
        %v1025 = vld [vmem:[#allocation2 + $0x28] sm:$0xff]
        %v1026 = vld [vmem:[#allocation2 + $0x30] sm:$0xff]
        %v1027 = vld [vmem:[#allocation2 + $0x38] sm:$0xff]
        %v1028 = vld [vmem:[#allocation2 + $0x40] sm:$0xff]
        %v1029 = vld [vmem:[#allocation2 + $0x48] sm:$0xff]
        %v1030 = vld [vmem:[#allocation2 + $0x50] sm:$0xff]
        %v1031 = vld [vmem:[#allocation2 + $0x58] sm:$0xff]
        %v1032 = vld [vmem:[#allocation2 + $0x60] sm:$0xff]
        %v1033 = vld [vmem:[#allocation2 + $0x68] sm:$0xff]
        %v1034 = vld [vmem:[#allocation2 + $0x70] sm:$0xff]
        %v1035 = vld [vmem:[#allocation2 + $0x78] sm:$0xff]
        %v1036 = vpack.c.bf16 %v1021, %v1020
        %v1037 = vpack.c.bf16 %v1023, %v1022
        %v1038 = vpack.c.bf16 %v1025, %v1024
        %v1039 = vpack.c.bf16 %v1027, %v1026
        %v1040 = vpack.c.bf16 %v1029, %v1028
        %v1041 = vpack.c.bf16 %v1031, %v1030
        %v1042 = vpack.c.bf16 %v1033, %v1032
        %v1043 = vpack.c.bf16 %v1035, %v1034
        %v1044 = vld [vmem:[%s2] sm:$0xf]
        %v1045 = vld [vmem:[%s2 + $0x4] sm:$0xf]
        %v1046 = vld [vmem:[%s2 + $0x8] sm:$0xf]
        %v1047 = vld [vmem:[%s2 + $0xc] sm:$0xf]
        %v1048 = vld [vmem:[%s2 + $0x10] sm:$0xf]
        %v1049 = vld [vmem:[%s2 + $0x14] sm:$0xf]
        %v1050 = vld [vmem:[%s2 + $0x18] sm:$0xf]
        %v1051 = vld [vmem:[%s2 + $0x1c] sm:$0xf]
        %v1052 = vld [vmem:[%s2 + $0x20] sm:$0xf]
        %v1053 = vld [vmem:[%s2 + $0x24] sm:$0xf]
        %v1054 = vld [vmem:[%s2 + $0x28] sm:$0xf]
        %v1055 = vld [vmem:[%s2 + $0x2c] sm:$0xf]
        %v1056 = vld [vmem:[%s2 + $0x30] sm:$0xf]
        %v1057 = vld [vmem:[%s2 + $0x34] sm:$0xf]
        %v1058 = vld [vmem:[%s2 + $0x38] sm:$0xf]
        %v1059 = vld [vmem:[%s2 + $0x3c] sm:$0xf]
        %v1076 = vunpack.c.l.b16 %v1044
        %v1077 = vunpack.c.l.b16 %v1045
        %v1078 = vunpack.c.l.b16 %v1046
        %v1079 = vunpack.c.l.b16 %v1047
        %v1080 = vunpack.c.l.b16 %v1048
        %v1081 = vunpack.c.l.b16 %v1049
        %v1082 = vunpack.c.l.b16 %v1050
        %v1083 = vunpack.c.l.b16 %v1051
        %v1084 = vunpack.c.l.b16 %v1052
        %v1085 = vunpack.c.l.b16 %v1053
        %v1086 = vunpack.c.l.b16 %v1054
        %v1087 = vunpack.c.l.b16 %v1055
        %v1088 = vunpack.c.l.b16 %v1056
        %v1089 = vunpack.c.l.b16 %v1057
        %v1090 = vunpack.c.l.b16 %v1058
        %v1091 = vunpack.c.l.b16 %v1059
        %v1092 = vpack.c.b16 %v1077, %v1076
        %v1093 = vpack.c.b16 %v1079, %v1078
        %v1094 = vpack.c.b16 %v1081, %v1080
        %v1095 = vpack.c.b16 %v1083, %v1082
        %v1096 = vpack.c.b16 %v1085, %v1084
        %v1097 = vpack.c.b16 %v1087, %v1086
        %v1098 = vpack.c.b16 %v1089, %v1088
        %v1099 = vpack.c.b16 %v1091, %v1090
        %1108 = vmatprep.subr.bf16.mxu0 0
        %1109 = vmatpush1.bf16.msra.mxu0 %v1092
        %1110 = vmatprep.subr.bf16.mxu0 0
        %1111 = vmatpush1.bf16.msra.mxu0 %v1093
        %1112 = vmatprep.subr.bf16.mxu0 0
        %1113 = vmatpush1.bf16.msra.mxu0 %v1094
        %1114 = vmatprep.subr.bf16.mxu0 0
        %1115 = vmatpush1.bf16.msra.mxu0 %v1095
        %1116 = vmatprep.subr.bf16.mxu0 0
        %1117 = vmatpush1.bf16.msra.mxu0 %v1096
        %1118 = vmatprep.subr.bf16.mxu0 0
        %1119 = vmatpush1.bf16.msra.mxu0 %v1097
        %1120 = vmatprep.subr.bf16.mxu0 0
        %1121 = vmatpush1.bf16.msra.mxu0 %v1098
        %1122 = vmatprep.subr.bf16.mxu0 0
        %1123 = vmatpush1.bf16.msra.mxu0 %v1099
        %1124 = vmatprep.subr.bf16.mxu0 0
        %1125 = vmatpush1.bf16.msra.mxu0 0
        %1126 = vmatprep.subr.bf16.mxu0 0
        %1127 = vmatpush1.bf16.msra.mxu0 0
        %1128 = vmatprep.subr.bf16.mxu0 0
        %1129 = vmatpush1.bf16.msra.mxu0 0
        %1130 = vmatprep.subr.bf16.mxu0 0
        %1131 = vmatpush1.bf16.msra.mxu0 0
        %1132 = vmatprep.subr.bf16.mxu0 0
        %1133 = vmatpush1.bf16.msra.mxu0 0
        %1134 = vmatprep.subr.bf16.mxu0 0
        %1135 = vmatpush1.bf16.msra.mxu0 0
        %1136 = vmatprep.subr.bf16.mxu0 0
        %1137 = vmatpush1.bf16.msra.mxu0 0
        %1138 = vmatprep.subr.bf16.mxu0 0
        %1139 = vmatpush1.bf16.msra.mxu0 0
        %1140 = vmatprep.mubr.bf16.mxu0 0
        %1141 = vmatmul.mubr.bf16.gmra.mrb[0].mxu0 %v1036
        %v1142 = vpop.f32.mrb[0].mxu0
        %v1143 = vadd.f32 0.0, %v1142
        %v1144 = vpop.f32.mrb[0].mxu0
        %v1145 = vpop.f32.mrb[0].mxu0
        %v1146 = vadd.f32 0.0, %v1145
        %v1147 = vpop.f32.mrb[0].mxu0
        %1148 = vmatprep.mubr.bf16.mxu0 0
        %1149 = vmatmul.mubr.bf16.gmra.mrb[0].mxu0 %v1037
        %v1150 = vpop.f32.mrb[0].mxu0
        %v1151 = vadd.f32 0.0, %v1150
        %v1152 = vpop.f32.mrb[0].mxu0
        %v1153 = vpop.f32.mrb[0].mxu0
        %v1154 = vadd.f32 0.0, %v1153
        %v1155 = vpop.f32.mrb[0].mxu0
        %1156 = vmatprep.mubr.bf16.mxu0 0
        %1157 = vmatmul.mubr.bf16.gmra.mrb[0].mxu0 %v1038
        %v1158 = vpop.f32.mrb[0].mxu0
        %v1159 = vadd.f32 0.0, %v1158
        %v1160 = vpop.f32.mrb[0].mxu0
        %v1161 = vpop.f32.mrb[0].mxu0
        %v1162 = vadd.f32 0.0, %v1161
        %v1163 = vpop.f32.mrb[0].mxu0
        %1164 = vmatprep.mubr.bf16.mxu0 0
        %1165 = vmatmul.mubr.bf16.gmra.mrb[0].mxu0 %v1039
        %v1166 = vpop.f32.mrb[0].mxu0
        %v1167 = vadd.f32 0.0, %v1166
        %v1168 = vpop.f32.mrb[0].mxu0
        %v1169 = vpop.f32.mrb[0].mxu0
        %v1170 = vadd.f32 0.0, %v1169
        %v1171 = vpop.f32.mrb[0].mxu0
        %1172 = vmatprep.mubr.bf16.mxu0 0
        %1173 = vmatmul.mubr.bf16.gmra.mrb[0].mxu0 %v1040
        %v1174 = vpop.f32.mrb[0].mxu0
        %v1175 = vadd.f32 0.0, %v1174
        %v1176 = vpop.f32.mrb[0].mxu0
        %v1177 = vpop.f32.mrb[0].mxu0
        %v1178 = vadd.f32 0.0, %v1177
        %v1179 = vpop.f32.mrb[0].mxu0
        %1180 = vmatprep.mubr.bf16.mxu0 0
        %1181 = vmatmul.mubr.bf16.gmra.mrb[0].mxu0 %v1041
        %v1182 = vpop.f32.mrb[0].mxu0
        %v1183 = vadd.f32 0.0, %v1182
        %v1184 = vpop.f32.mrb[0].mxu0
        %v1185 = vpop.f32.mrb[0].mxu0
        %v1186 = vadd.f32 0.0, %v1185
        %v1187 = vpop.f32.mrb[0].mxu0
        %1188 = vmatprep.mubr.bf16.mxu0 0
        %1189 = vmatmul.mubr.bf16.gmra.mrb[0].mxu0 %v1042
        %v1190 = vpop.f32.mrb[0].mxu0
        %v1191 = vadd.f32 0.0, %v1190
        %v1192 = vpop.f32.mrb[0].mxu0
        %v1193 = vpop.f32.mrb[0].mxu0
        %v1194 = vadd.f32 0.0, %v1193
        %v1195 = vpop.f32.mrb[0].mxu0
        %1196 = vmatprep.mubr.bf16.mxu0 0
        %1197 = vmatmul.mubr.bf16.gmra.mrb[0].mxu0 %v1043
        %v1198 = vpop.f32.mrb[0].mxu0
        %v1199 = vadd.f32 0.0, %v1198
        %v1200 = vpop.f32.mrb[0].mxu0
        %v1201 = vpop.f32.mrb[0].mxu0
        %v1202 = vadd.f32 0.0, %v1201
        %v1203 = vpop.f32.mrb[0].mxu0
        %1204 = vdwg.mxu0
        %1205 = vst [vmem:[#allocation3] sm:$0xff] %v1143
        %1206 = vst [vmem:[#allocation3 + $0x8] sm:$0xff] %v1146
        %1207 = vst [vmem:[#allocation3 + $0x10] sm:$0xff] %v1151
        %1208 = vst [vmem:[#allocation3 + $0x18] sm:$0xff] %v1154
        %1209 = vst [vmem:[#allocation3 + $0x20] sm:$0xff] %v1159
        %1210 = vst [vmem:[#allocation3 + $0x28] sm:$0xff] %v1162
        %1211 = vst [vmem:[#allocation3 + $0x30] sm:$0xff] %v1167
        %1212 = vst [vmem:[#allocation3 + $0x38] sm:$0xff] %v1170
        %1213 = vst [vmem:[#allocation3 + $0x40] sm:$0xff] %v1175
        %1214 = vst [vmem:[#allocation3 + $0x48] sm:$0xff] %v1178
        %1215 = vst [vmem:[#allocation3 + $0x50] sm:$0xff] %v1183
        %1216 = vst [vmem:[#allocation3 + $0x58] sm:$0xff] %v1186
        %1217 = vst [vmem:[#allocation3 + $0x60] sm:$0xff] %v1191
        %1218 = vst [vmem:[#allocation3 + $0x68] sm:$0xff] %v1194
        %1219 = vst [vmem:[#allocation3 + $0x70] sm:$0xff] %v1199
        %1220 = vst [vmem:[#allocation3 + $0x78] sm:$0xff] %v1202
        %v1221 = vld [vmem:[#allocation3] sm:$0xff]
        %v1222 = vrot.slane %v1221, 4
        %v1223 = vadd.f32 %v1221, %v1222
        %v1224 = vrot.slane %v1223, 2
        %v1225 = vadd.f32 %v1223, %v1224
        %v1226 = vrot.slane %v1225, 1
        %v1227 = vadd.f32 %v1225, %v1226
        %v1228 = vmul.f32 %v1227, 0.125
        %v1229 = vmul.f32 %v1221, %v1221
        %v1230 = vrot.slane %v1229, 4
        %v1231 = vadd.f32 %v1229, %v1230
        %v1232 = vrot.slane %v1231, 2
        %v1233 = vadd.f32 %v1231, %v1232
        %v1234 = vrot.slane %v1233, 1
        %v1235 = vadd.f32 %v1233, %v1234
        %v1236 = vmul.f32 %v1235, 0.125
        %v1237 = vmul.f32 %v1228, %v1228
        %v1238 = vsub.f32 %v1236, %v1237
        %v1239 = vmax.f32 %v1238, 0.0
        %v1240 = vadd.f32 %v1239, 1e-05
        %v1241 = vrsqrt.pop %v1240
        %v1242 = vmul.f32 %v198, %v1241
        %v1243 = vmul.f32 %v1228, %v1242
        %v1244 = vsub.f32 %v199, %v1243
        %v1246 = vlaneseq
        %v1247 = vshrl.u32 %v1246, 7
        %v1248 = vsub.s32 0, %v1247
        %v1249 = vrot.slane %v1242, %v1248
        %v1251 = vmul.f32 %v1221, %v1249
        %v1253 = vlaneseq
        %v1254 = vshrl.u32 %v1253, 7
        %v1255 = vsub.s32 0, %v1254
        %v1256 = vrot.slane %v1244, %v1255
        %v1258 = vadd.f32 %v1251, %v1256
        %v1259 = vmax.f32 %v1258, 0.0
        %1260 = vst [vmem:[#allocation3] sm:$0xff] %v1259
        %v1261 = vld [vmem:[#allocation3 + $0x8] sm:$0xff]
        %v1262 = vrot.slane %v1261, 4
        %v1263 = vadd.f32 %v1261, %v1262
        %v1264 = vrot.slane %v1263, 2
        %v1265 = vadd.f32 %v1263, %v1264
        %v1266 = vrot.slane %v1265, 1
        %v1267 = vadd.f32 %v1265, %v1266
        %v1268 = vmul.f32 %v1267, 0.125
        %v1269 = vmul.f32 %v1261, %v1261
        %v1270 = vrot.slane %v1269, 4
        %v1271 = vadd.f32 %v1269, %v1270
        %v1272 = vrot.slane %v1271, 2
        %v1273 = vadd.f32 %v1271, %v1272
        %v1274 = vrot.slane %v1273, 1
        %v1275 = vadd.f32 %v1273, %v1274
        %v1276 = vmul.f32 %v1275, 0.125
        %v1277 = vmul.f32 %v1268, %v1268
        %v1278 = vsub.f32 %v1276, %v1277
        %v1279 = vmax.f32 %v1278, 0.0
        %v1280 = vadd.f32 %v1279, 1e-05
        %v1281 = vrsqrt.pop %v1280
        %v1282 = vmul.f32 %v198, %v1281
        %v1283 = vmul.f32 %v1268, %v1282
        %v1284 = vsub.f32 %v199, %v1283
        %v1286 = vlaneseq
        %v1287 = vshrl.u32 %v1286, 7
        %v1288 = vsub.s32 0, %v1287
        %v1289 = vrot.slane %v1282, %v1288
        %v1291 = vmul.f32 %v1261, %v1289
        %v1293 = vlaneseq
        %v1294 = vshrl.u32 %v1293, 7
        %v1295 = vsub.s32 0, %v1294
        %v1296 = vrot.slane %v1284, %v1295
        %v1298 = vadd.f32 %v1291, %v1296
        %v1299 = vmax.f32 %v1298, 0.0
        %1300 = vst [vmem:[#allocation3 + $0x8] sm:$0xff] %v1299
        %v1301 = vld [vmem:[#allocation3 + $0x10] sm:$0xff]
        %v1302 = vrot.slane %v1301, 4
        %v1303 = vadd.f32 %v1301, %v1302
        %v1304 = vrot.slane %v1303, 2
        %v1305 = vadd.f32 %v1303, %v1304
        %v1306 = vrot.slane %v1305, 1
        %v1307 = vadd.f32 %v1305, %v1306
        %v1308 = vmul.f32 %v1307, 0.125
        %v1309 = vmul.f32 %v1301, %v1301
        %v1310 = vrot.slane %v1309, 4
        %v1311 = vadd.f32 %v1309, %v1310
        %v1312 = vrot.slane %v1311, 2
        %v1313 = vadd.f32 %v1311, %v1312
        %v1314 = vrot.slane %v1313, 1
        %v1315 = vadd.f32 %v1313, %v1314
        %v1316 = vmul.f32 %v1315, 0.125
        %v1317 = vmul.f32 %v1308, %v1308
        %v1318 = vsub.f32 %v1316, %v1317
        %v1319 = vmax.f32 %v1318, 0.0
        %v1320 = vadd.f32 %v1319, 1e-05
        %v1321 = vrsqrt.pop %v1320
        %v1322 = vmul.f32 %v198, %v1321
        %v1323 = vmul.f32 %v1308, %v1322
        %v1324 = vsub.f32 %v199, %v1323
        %v1326 = vlaneseq
        %v1327 = vshrl.u32 %v1326, 7
        %v1328 = vsub.s32 0, %v1327
        %v1329 = vrot.slane %v1322, %v1328
        %v1331 = vmul.f32 %v1301, %v1329
        %v1333 = vlaneseq
        %v1334 = vshrl.u32 %v1333, 7
        %v1335 = vsub.s32 0, %v1334
        %v1336 = vrot.slane %v1324, %v1335
        %v1338 = vadd.f32 %v1331, %v1336
        %v1339 = vmax.f32 %v1338, 0.0
        %1340 = vst [vmem:[#allocation3 + $0x10] sm:$0xff] %v1339
        %v1341 = vld [vmem:[#allocation3 + $0x18] sm:$0xff]
        %v1342 = vrot.slane %v1341, 4
        %v1343 = vadd.f32 %v1341, %v1342
        %v1344 = vrot.slane %v1343, 2
        %v1345 = vadd.f32 %v1343, %v1344
        %v1346 = vrot.slane %v1345, 1
        %v1347 = vadd.f32 %v1345, %v1346
        %v1348 = vmul.f32 %v1347, 0.125
        %v1349 = vmul.f32 %v1341, %v1341
        %v1350 = vrot.slane %v1349, 4
        %v1351 = vadd.f32 %v1349, %v1350
        %v1352 = vrot.slane %v1351, 2
        %v1353 = vadd.f32 %v1351, %v1352
        %v1354 = vrot.slane %v1353, 1
        %v1355 = vadd.f32 %v1353, %v1354
        %v1356 = vmul.f32 %v1355, 0.125
        %v1357 = vmul.f32 %v1348, %v1348
        %v1358 = vsub.f32 %v1356, %v1357
        %v1359 = vmax.f32 %v1358, 0.0
        %v1360 = vadd.f32 %v1359, 1e-05
        %v1361 = vrsqrt.pop %v1360
        %v1362 = vmul.f32 %v198, %v1361
        %v1363 = vmul.f32 %v1348, %v1362
        %v1364 = vsub.f32 %v199, %v1363
        %v1366 = vlaneseq
        %v1367 = vshrl.u32 %v1366, 7
        %v1368 = vsub.s32 0, %v1367
        %v1369 = vrot.slane %v1362, %v1368
        %v1371 = vmul.f32 %v1341, %v1369
        %v1373 = vlaneseq
        %v1374 = vshrl.u32 %v1373, 7
        %v1375 = vsub.s32 0, %v1374
        %v1376 = vrot.slane %v1364, %v1375
        %v1378 = vadd.f32 %v1371, %v1376
        %v1379 = vmax.f32 %v1378, 0.0
        %1380 = vst [vmem:[#allocation3 + $0x18] sm:$0xff] %v1379
        %v1381 = vld [vmem:[#allocation3 + $0x20] sm:$0xff]
        %v1382 = vrot.slane %v1381, 4
        %v1383 = vadd.f32 %v1381, %v1382
        %v1384 = vrot.slane %v1383, 2
        %v1385 = vadd.f32 %v1383, %v1384
        %v1386 = vrot.slane %v1385, 1
        %v1387 = vadd.f32 %v1385, %v1386
        %v1388 = vmul.f32 %v1387, 0.125
        %v1389 = vmul.f32 %v1381, %v1381
        %v1390 = vrot.slane %v1389, 4
        %v1391 = vadd.f32 %v1389, %v1390
        %v1392 = vrot.slane %v1391, 2
        %v1393 = vadd.f32 %v1391, %v1392
        %v1394 = vrot.slane %v1393, 1
        %v1395 = vadd.f32 %v1393, %v1394
        %v1396 = vmul.f32 %v1395, 0.125
        %v1397 = vmul.f32 %v1388, %v1388
        %v1398 = vsub.f32 %v1396, %v1397
        %v1399 = vmax.f32 %v1398, 0.0
        %v1400 = vadd.f32 %v1399, 1e-05
        %v1401 = vrsqrt.pop %v1400
        %v1402 = vmul.f32 %v198, %v1401
        %v1403 = vmul.f32 %v1388, %v1402
        %v1404 = vsub.f32 %v199, %v1403
        %v1406 = vlaneseq
        %v1407 = vshrl.u32 %v1406, 7
        %v1408 = vsub.s32 0, %v1407
        %v1409 = vrot.slane %v1402, %v1408
        %v1411 = vmul.f32 %v1381, %v1409
        %v1413 = vlaneseq
        %v1414 = vshrl.u32 %v1413, 7
        %v1415 = vsub.s32 0, %v1414
        %v1416 = vrot.slane %v1404, %v1415
        %v1418 = vadd.f32 %v1411, %v1416
        %v1419 = vmax.f32 %v1418, 0.0
        %1420 = vst [vmem:[#allocation3 + $0x20] sm:$0xff] %v1419
        %v1421 = vld [vmem:[#allocation3 + $0x28] sm:$0xff]
        %v1422 = vrot.slane %v1421, 4
        %v1423 = vadd.f32 %v1421, %v1422
        %v1424 = vrot.slane %v1423, 2
        %v1425 = vadd.f32 %v1423, %v1424
        %v1426 = vrot.slane %v1425, 1
        %v1427 = vadd.f32 %v1425, %v1426
        %v1428 = vmul.f32 %v1427, 0.125
        %v1429 = vmul.f32 %v1421, %v1421
        %v1430 = vrot.slane %v1429, 4
        %v1431 = vadd.f32 %v1429, %v1430
        %v1432 = vrot.slane %v1431, 2
        %v1433 = vadd.f32 %v1431, %v1432
        %v1434 = vrot.slane %v1433, 1
        %v1435 = vadd.f32 %v1433, %v1434
        %v1436 = vmul.f32 %v1435, 0.125
        %v1437 = vmul.f32 %v1428, %v1428
        %v1438 = vsub.f32 %v1436, %v1437
        %v1439 = vmax.f32 %v1438, 0.0
        %v1440 = vadd.f32 %v1439, 1e-05
        %v1441 = vrsqrt.pop %v1440
        %v1442 = vmul.f32 %v198, %v1441
        %v1443 = vmul.f32 %v1428, %v1442
        %v1444 = vsub.f32 %v199, %v1443
        %v1446 = vlaneseq
        %v1447 = vshrl.u32 %v1446, 7
        %v1448 = vsub.s32 0, %v1447
        %v1449 = vrot.slane %v1442, %v1448
        %v1451 = vmul.f32 %v1421, %v1449
        %v1453 = vlaneseq
        %v1454 = vshrl.u32 %v1453, 7
        %v1455 = vsub.s32 0, %v1454
        %v1456 = vrot.slane %v1444, %v1455
        %v1458 = vadd.f32 %v1451, %v1456
        %v1459 = vmax.f32 %v1458, 0.0
        %1460 = vst [vmem:[#allocation3 + $0x28] sm:$0xff] %v1459
        %v1461 = vld [vmem:[#allocation3 + $0x30] sm:$0xff]
        %v1462 = vrot.slane %v1461, 4
        %v1463 = vadd.f32 %v1461, %v1462
        %v1464 = vrot.slane %v1463, 2
        %v1465 = vadd.f32 %v1463, %v1464
        %v1466 = vrot.slane %v1465, 1
        %v1467 = vadd.f32 %v1465, %v1466
        %v1468 = vmul.f32 %v1467, 0.125
        %v1469 = vmul.f32 %v1461, %v1461
        %v1470 = vrot.slane %v1469, 4
        %v1471 = vadd.f32 %v1469, %v1470
        %v1472 = vrot.slane %v1471, 2
        %v1473 = vadd.f32 %v1471, %v1472
        %v1474 = vrot.slane %v1473, 1
        %v1475 = vadd.f32 %v1473, %v1474
        %v1476 = vmul.f32 %v1475, 0.125
        %v1477 = vmul.f32 %v1468, %v1468
        %v1478 = vsub.f32 %v1476, %v1477
        %v1479 = vmax.f32 %v1478, 0.0
        %v1480 = vadd.f32 %v1479, 1e-05
        %v1481 = vrsqrt.pop %v1480
        %v1482 = vmul.f32 %v198, %v1481
        %v1483 = vmul.f32 %v1468, %v1482
        %v1484 = vsub.f32 %v199, %v1483
        %v1486 = vlaneseq
        %v1487 = vshrl.u32 %v1486, 7
        %v1488 = vsub.s32 0, %v1487
        %v1489 = vrot.slane %v1482, %v1488
        %v1491 = vmul.f32 %v1461, %v1489
        %v1493 = vlaneseq
        %v1494 = vshrl.u32 %v1493, 7
        %v1495 = vsub.s32 0, %v1494
        %v1496 = vrot.slane %v1484, %v1495
        %v1498 = vadd.f32 %v1491, %v1496
        %v1499 = vmax.f32 %v1498, 0.0
        %1500 = vst [vmem:[#allocation3 + $0x30] sm:$0xff] %v1499
        %v1501 = vld [vmem:[#allocation3 + $0x38] sm:$0xff]
        %v1502 = vrot.slane %v1501, 4
        %v1503 = vadd.f32 %v1501, %v1502
        %v1504 = vrot.slane %v1503, 2
        %v1505 = vadd.f32 %v1503, %v1504
        %v1506 = vrot.slane %v1505, 1
        %v1507 = vadd.f32 %v1505, %v1506
        %v1508 = vmul.f32 %v1507, 0.125
        %v1509 = vmul.f32 %v1501, %v1501
        %v1510 = vrot.slane %v1509, 4
        %v1511 = vadd.f32 %v1509, %v1510
        %v1512 = vrot.slane %v1511, 2
        %v1513 = vadd.f32 %v1511, %v1512
        %v1514 = vrot.slane %v1513, 1
        %v1515 = vadd.f32 %v1513, %v1514
        %v1516 = vmul.f32 %v1515, 0.125
        %v1517 = vmul.f32 %v1508, %v1508
        %v1518 = vsub.f32 %v1516, %v1517
        %v1519 = vmax.f32 %v1518, 0.0
        %v1520 = vadd.f32 %v1519, 1e-05
        %v1521 = vrsqrt.pop %v1520
        %v1522 = vmul.f32 %v198, %v1521
        %v1523 = vmul.f32 %v1508, %v1522
        %v1524 = vsub.f32 %v199, %v1523
        %v1526 = vlaneseq
        %v1527 = vshrl.u32 %v1526, 7
        %v1528 = vsub.s32 0, %v1527
        %v1529 = vrot.slane %v1522, %v1528
        %v1531 = vmul.f32 %v1501, %v1529
        %v1533 = vlaneseq
        %v1534 = vshrl.u32 %v1533, 7
        %v1535 = vsub.s32 0, %v1534
        %v1536 = vrot.slane %v1524, %v1535
        %v1538 = vadd.f32 %v1531, %v1536
        %v1539 = vmax.f32 %v1538, 0.0
        %1540 = vst [vmem:[#allocation3 + $0x38] sm:$0xff] %v1539
        %v1541 = vld [vmem:[#allocation3 + $0x40] sm:$0xff]
        %v1542 = vrot.slane %v1541, 4
        %v1543 = vadd.f32 %v1541, %v1542
        %v1544 = vrot.slane %v1543, 2
        %v1545 = vadd.f32 %v1543, %v1544
        %v1546 = vrot.slane %v1545, 1
        %v1547 = vadd.f32 %v1545, %v1546
        %v1548 = vmul.f32 %v1547, 0.125
        %v1549 = vmul.f32 %v1541, %v1541
        %v1550 = vrot.slane %v1549, 4
        %v1551 = vadd.f32 %v1549, %v1550
        %v1552 = vrot.slane %v1551, 2
        %v1553 = vadd.f32 %v1551, %v1552
        %v1554 = vrot.slane %v1553, 1
        %v1555 = vadd.f32 %v1553, %v1554
        %v1556 = vmul.f32 %v1555, 0.125
        %v1557 = vmul.f32 %v1548, %v1548
        %v1558 = vsub.f32 %v1556, %v1557
        %v1559 = vmax.f32 %v1558, 0.0
        %v1560 = vadd.f32 %v1559, 1e-05
        %v1561 = vrsqrt.pop %v1560
        %v1562 = vmul.f32 %v198, %v1561
        %v1563 = vmul.f32 %v1548, %v1562
        %v1564 = vsub.f32 %v199, %v1563
        %v1566 = vlaneseq
        %v1567 = vshrl.u32 %v1566, 7
        %v1568 = vsub.s32 0, %v1567
        %v1569 = vrot.slane %v1562, %v1568
        %v1571 = vmul.f32 %v1541, %v1569
        %v1573 = vlaneseq
        %v1574 = vshrl.u32 %v1573, 7
        %v1575 = vsub.s32 0, %v1574
        %v1576 = vrot.slane %v1564, %v1575
        %v1578 = vadd.f32 %v1571, %v1576
        %v1579 = vmax.f32 %v1578, 0.0
        %1580 = vst [vmem:[#allocation3 + $0x40] sm:$0xff] %v1579
        %v1581 = vld [vmem:[#allocation3 + $0x48] sm:$0xff]
        %v1582 = vrot.slane %v1581, 4
        %v1583 = vadd.f32 %v1581, %v1582
        %v1584 = vrot.slane %v1583, 2
        %v1585 = vadd.f32 %v1583, %v1584
        %v1586 = vrot.slane %v1585, 1
        %v1587 = vadd.f32 %v1585, %v1586
        %v1588 = vmul.f32 %v1587, 0.125
        %v1589 = vmul.f32 %v1581, %v1581
        %v1590 = vrot.slane %v1589, 4
        %v1591 = vadd.f32 %v1589, %v1590
        %v1592 = vrot.slane %v1591, 2
        %v1593 = vadd.f32 %v1591, %v1592
        %v1594 = vrot.slane %v1593, 1
        %v1595 = vadd.f32 %v1593, %v1594
        %v1596 = vmul.f32 %v1595, 0.125
        %v1597 = vmul.f32 %v1588, %v1588
        %v1598 = vsub.f32 %v1596, %v1597
        %v1599 = vmax.f32 %v1598, 0.0
        %v1600 = vadd.f32 %v1599, 1e-05
        %v1601 = vrsqrt.pop %v1600
        %v1602 = vmul.f32 %v198, %v1601
        %v1603 = vmul.f32 %v1588, %v1602
        %v1604 = vsub.f32 %v199, %v1603
        %v1606 = vlaneseq
        %v1607 = vshrl.u32 %v1606, 7
        %v1608 = vsub.s32 0, %v1607
        %v1609 = vrot.slane %v1602, %v1608
        %v1611 = vmul.f32 %v1581, %v1609
        %v1613 = vlaneseq
        %v1614 = vshrl.u32 %v1613, 7
        %v1615 = vsub.s32 0, %v1614
        %v1616 = vrot.slane %v1604, %v1615
        %v1618 = vadd.f32 %v1611, %v1616
        %v1619 = vmax.f32 %v1618, 0.0
        %1620 = vst [vmem:[#allocation3 + $0x48] sm:$0xff] %v1619
        %v1621 = vld [vmem:[#allocation3 + $0x50] sm:$0xff]
        %v1622 = vrot.slane %v1621, 4
        %v1623 = vadd.f32 %v1621, %v1622
        %v1624 = vrot.slane %v1623, 2
        %v1625 = vadd.f32 %v1623, %v1624
        %v1626 = vrot.slane %v1625, 1
        %v1627 = vadd.f32 %v1625, %v1626
        %v1628 = vmul.f32 %v1627, 0.125
        %v1629 = vmul.f32 %v1621, %v1621
        %v1630 = vrot.slane %v1629, 4
        %v1631 = vadd.f32 %v1629, %v1630
        %v1632 = vrot.slane %v1631, 2
        %v1633 = vadd.f32 %v1631, %v1632
        %v1634 = vrot.slane %v1633, 1
        %v1635 = vadd.f32 %v1633, %v1634
        %v1636 = vmul.f32 %v1635, 0.125
        %v1637 = vmul.f32 %v1628, %v1628
        %v1638 = vsub.f32 %v1636, %v1637
        %v1639 = vmax.f32 %v1638, 0.0
        %v1640 = vadd.f32 %v1639, 1e-05
        %v1641 = vrsqrt.pop %v1640
        %v1642 = vmul.f32 %v198, %v1641
        %v1643 = vmul.f32 %v1628, %v1642
        %v1644 = vsub.f32 %v199, %v1643
        %v1646 = vlaneseq
        %v1647 = vshrl.u32 %v1646, 7
        %v1648 = vsub.s32 0, %v1647
        %v1649 = vrot.slane %v1642, %v1648
        %v1651 = vmul.f32 %v1621, %v1649
        %v1653 = vlaneseq
        %v1654 = vshrl.u32 %v1653, 7
        %v1655 = vsub.s32 0, %v1654
        %v1656 = vrot.slane %v1644, %v1655
        %v1658 = vadd.f32 %v1651, %v1656
        %v1659 = vmax.f32 %v1658, 0.0
        %1660 = vst [vmem:[#allocation3 + $0x50] sm:$0xff] %v1659
        %v1661 = vld [vmem:[#allocation3 + $0x58] sm:$0xff]
        %v1662 = vrot.slane %v1661, 4
        %v1663 = vadd.f32 %v1661, %v1662
        %v1664 = vrot.slane %v1663, 2
        %v1665 = vadd.f32 %v1663, %v1664
        %v1666 = vrot.slane %v1665, 1
        %v1667 = vadd.f32 %v1665, %v1666
        %v1668 = vmul.f32 %v1667, 0.125
        %v1669 = vmul.f32 %v1661, %v1661
        %v1670 = vrot.slane %v1669, 4
        %v1671 = vadd.f32 %v1669, %v1670
        %v1672 = vrot.slane %v1671, 2
        %v1673 = vadd.f32 %v1671, %v1672
        %v1674 = vrot.slane %v1673, 1
        %v1675 = vadd.f32 %v1673, %v1674
        %v1676 = vmul.f32 %v1675, 0.125
        %v1677 = vmul.f32 %v1668, %v1668
        %v1678 = vsub.f32 %v1676, %v1677
        %v1679 = vmax.f32 %v1678, 0.0
        %v1680 = vadd.f32 %v1679, 1e-05
        %v1681 = vrsqrt.pop %v1680
        %v1682 = vmul.f32 %v198, %v1681
        %v1683 = vmul.f32 %v1668, %v1682
        %v1684 = vsub.f32 %v199, %v1683
        %v1686 = vlaneseq
        %v1687 = vshrl.u32 %v1686, 7
        %v1688 = vsub.s32 0, %v1687
        %v1689 = vrot.slane %v1682, %v1688
        %v1691 = vmul.f32 %v1661, %v1689
        %v1693 = vlaneseq
        %v1694 = vshrl.u32 %v1693, 7
        %v1695 = vsub.s32 0, %v1694
        %v1696 = vrot.slane %v1684, %v1695
        %v1698 = vadd.f32 %v1691, %v1696
        %v1699 = vmax.f32 %v1698, 0.0
        %1700 = vst [vmem:[#allocation3 + $0x58] sm:$0xff] %v1699
        %v1701 = vld [vmem:[#allocation3 + $0x60] sm:$0xff]
        %v1702 = vrot.slane %v1701, 4
        %v1703 = vadd.f32 %v1701, %v1702
        %v1704 = vrot.slane %v1703, 2
        %v1705 = vadd.f32 %v1703, %v1704
        %v1706 = vrot.slane %v1705, 1
        %v1707 = vadd.f32 %v1705, %v1706
        %v1708 = vmul.f32 %v1707, 0.125
        %v1709 = vmul.f32 %v1701, %v1701
        %v1710 = vrot.slane %v1709, 4
        %v1711 = vadd.f32 %v1709, %v1710
        %v1712 = vrot.slane %v1711, 2
        %v1713 = vadd.f32 %v1711, %v1712
        %v1714 = vrot.slane %v1713, 1
        %v1715 = vadd.f32 %v1713, %v1714
        %v1716 = vmul.f32 %v1715, 0.125
        %v1717 = vmul.f32 %v1708, %v1708
        %v1718 = vsub.f32 %v1716, %v1717
        %v1719 = vmax.f32 %v1718, 0.0
        %v1720 = vadd.f32 %v1719, 1e-05
        %v1721 = vrsqrt.pop %v1720
        %v1722 = vmul.f32 %v198, %v1721
        %v1723 = vmul.f32 %v1708, %v1722
        %v1724 = vsub.f32 %v199, %v1723
        %v1726 = vlaneseq
        %v1727 = vshrl.u32 %v1726, 7
        %v1728 = vsub.s32 0, %v1727
        %v1729 = vrot.slane %v1722, %v1728
        %v1731 = vmul.f32 %v1701, %v1729
        %v1733 = vlaneseq
        %v1734 = vshrl.u32 %v1733, 7
        %v1735 = vsub.s32 0, %v1734
        %v1736 = vrot.slane %v1724, %v1735
        %v1738 = vadd.f32 %v1731, %v1736
        %v1739 = vmax.f32 %v1738, 0.0
        %1740 = vst [vmem:[#allocation3 + $0x60] sm:$0xff] %v1739
        %v1741 = vld [vmem:[#allocation3 + $0x68] sm:$0xff]
        %v1742 = vrot.slane %v1741, 4
        %v1743 = vadd.f32 %v1741, %v1742
        %v1744 = vrot.slane %v1743, 2
        %v1745 = vadd.f32 %v1743, %v1744
        %v1746 = vrot.slane %v1745, 1
        %v1747 = vadd.f32 %v1745, %v1746
        %v1748 = vmul.f32 %v1747, 0.125
        %v1749 = vmul.f32 %v1741, %v1741
        %v1750 = vrot.slane %v1749, 4
        %v1751 = vadd.f32 %v1749, %v1750
        %v1752 = vrot.slane %v1751, 2
        %v1753 = vadd.f32 %v1751, %v1752
        %v1754 = vrot.slane %v1753, 1
        %v1755 = vadd.f32 %v1753, %v1754
        %v1756 = vmul.f32 %v1755, 0.125
        %v1757 = vmul.f32 %v1748, %v1748
        %v1758 = vsub.f32 %v1756, %v1757
        %v1759 = vmax.f32 %v1758, 0.0
        %v1760 = vadd.f32 %v1759, 1e-05
        %v1761 = vrsqrt.pop %v1760
        %v1762 = vmul.f32 %v198, %v1761
        %v1763 = vmul.f32 %v1748, %v1762
        %v1764 = vsub.f32 %v199, %v1763
        %v1766 = vlaneseq
        %v1767 = vshrl.u32 %v1766, 7
        %v1768 = vsub.s32 0, %v1767
        %v1769 = vrot.slane %v1762, %v1768
        %v1771 = vmul.f32 %v1741, %v1769
        %v1773 = vlaneseq
        %v1774 = vshrl.u32 %v1773, 7
        %v1775 = vsub.s32 0, %v1774
        %v1776 = vrot.slane %v1764, %v1775
        %v1778 = vadd.f32 %v1771, %v1776
        %v1779 = vmax.f32 %v1778, 0.0
        %1780 = vst [vmem:[#allocation3 + $0x68] sm:$0xff] %v1779
        %v1781 = vld [vmem:[#allocation3 + $0x70] sm:$0xff]
        %v1782 = vrot.slane %v1781, 4
        %v1783 = vadd.f32 %v1781, %v1782
        %v1784 = vrot.slane %v1783, 2
        %v1785 = vadd.f32 %v1783, %v1784
        %v1786 = vrot.slane %v1785, 1
        %v1787 = vadd.f32 %v1785, %v1786
        %v1788 = vmul.f32 %v1787, 0.125
        %v1789 = vmul.f32 %v1781, %v1781
        %v1790 = vrot.slane %v1789, 4
        %v1791 = vadd.f32 %v1789, %v1790
        %v1792 = vrot.slane %v1791, 2
        %v1793 = vadd.f32 %v1791, %v1792
        %v1794 = vrot.slane %v1793, 1
        %v1795 = vadd.f32 %v1793, %v1794
        %v1796 = vmul.f32 %v1795, 0.125
        %v1797 = vmul.f32 %v1788, %v1788
        %v1798 = vsub.f32 %v1796, %v1797
        %v1799 = vmax.f32 %v1798, 0.0
        %v1800 = vadd.f32 %v1799, 1e-05
        %v1801 = vrsqrt.pop %v1800
        %v1802 = vmul.f32 %v198, %v1801
        %v1803 = vmul.f32 %v1788, %v1802
        %v1804 = vsub.f32 %v199, %v1803
        %v1806 = vlaneseq
        %v1807 = vshrl.u32 %v1806, 7
        %v1808 = vsub.s32 0, %v1807
        %v1809 = vrot.slane %v1802, %v1808
        %v1811 = vmul.f32 %v1781, %v1809
        %v1813 = vlaneseq
        %v1814 = vshrl.u32 %v1813, 7
        %v1815 = vsub.s32 0, %v1814
        %v1816 = vrot.slane %v1804, %v1815
        %v1818 = vadd.f32 %v1811, %v1816
        %v1819 = vmax.f32 %v1818, 0.0
        %1820 = vst [vmem:[#allocation3 + $0x70] sm:$0xff] %v1819
        %v1821 = vld [vmem:[#allocation3 + $0x78] sm:$0xff]
        %v1822 = vrot.slane %v1821, 4
        %v1823 = vadd.f32 %v1821, %v1822
        %v1824 = vrot.slane %v1823, 2
        %v1825 = vadd.f32 %v1823, %v1824
        %v1826 = vrot.slane %v1825, 1
        %v1827 = vadd.f32 %v1825, %v1826
        %v1828 = vmul.f32 %v1827, 0.125
        %v1829 = vmul.f32 %v1821, %v1821
        %v1830 = vrot.slane %v1829, 4
        %v1831 = vadd.f32 %v1829, %v1830
        %v1832 = vrot.slane %v1831, 2
        %v1833 = vadd.f32 %v1831, %v1832
        %v1834 = vrot.slane %v1833, 1
        %v1835 = vadd.f32 %v1833, %v1834
        %v1836 = vmul.f32 %v1835, 0.125
        %v1837 = vmul.f32 %v1828, %v1828
        %v1838 = vsub.f32 %v1836, %v1837
        %v1839 = vmax.f32 %v1838, 0.0
        %v1840 = vadd.f32 %v1839, 1e-05
        %v1841 = vrsqrt.pop %v1840
        %v1842 = vmul.f32 %v198, %v1841
        %v1843 = vmul.f32 %v1828, %v1842
        %v1844 = vsub.f32 %v199, %v1843
        %v1846 = vlaneseq
        %v1847 = vshrl.u32 %v1846, 7
        %v1848 = vsub.s32 0, %v1847
        %v1849 = vrot.slane %v1842, %v1848
        %v1851 = vmul.f32 %v1821, %v1849
        %v1853 = vlaneseq
        %v1854 = vshrl.u32 %v1853, 7
        %v1855 = vsub.s32 0, %v1854
        %v1856 = vrot.slane %v1844, %v1855
        %v1858 = vadd.f32 %v1851, %v1856
        %v1859 = vmax.f32 %v1858, 0.0
        %1860 = vst [vmem:[#allocation3 + $0x78] sm:$0xff] %v1859
        %v1861 = vld [vmem:[#allocation3] sm:$0xff]
        %v1862 = vld [vmem:[#allocation3 + $0x8] sm:$0xff]
        %v1863 = vld [vmem:[#allocation3 + $0x10] sm:$0xff]
        %v1864 = vld [vmem:[#allocation3 + $0x18] sm:$0xff]
        %v1865 = vld [vmem:[#allocation3 + $0x20] sm:$0xff]
        %v1866 = vld [vmem:[#allocation3 + $0x28] sm:$0xff]
        %v1867 = vld [vmem:[#allocation3 + $0x30] sm:$0xff]
        %v1868 = vld [vmem:[#allocation3 + $0x38] sm:$0xff]
        %v1869 = vld [vmem:[#allocation3 + $0x40] sm:$0xff]
        %v1870 = vld [vmem:[#allocation3 + $0x48] sm:$0xff]
        %v1871 = vld [vmem:[#allocation3 + $0x50] sm:$0xff]
        %v1872 = vld [vmem:[#allocation3 + $0x58] sm:$0xff]
        %v1873 = vld [vmem:[#allocation3 + $0x60] sm:$0xff]
        %v1874 = vld [vmem:[#allocation3 + $0x68] sm:$0xff]
        %v1875 = vld [vmem:[#allocation3 + $0x70] sm:$0xff]
        %v1876 = vld [vmem:[#allocation3 + $0x78] sm:$0xff]
        %1878 = vset.pattern.permute.xlu0 0
        %1879 = vperm.xlu0 %1878, %v201
        %v1880 = vpop.permute.xlu0 %1879
        %v1882 = vlaneseq
        %v1883 = vshrl.u32 %v1882, 7
        %v1884 = vsub.s32 0, %v1883
        %v1885 = vrot.slane %v1880, %v1884
        %1886 = vmatprep.subr.mxu0 0.0
        %1887 = vmatpush1.xpose.msra.mxu0 %v1861
        %1888 = vmatprep.subr.mxu0 0.0
        %1889 = vmatpush1.xpose.msra.mxu0 %v1862
        %1890 = vmatprep.subr.mxu0 0.0
        %1891 = vmatpush1.xpose.msra.mxu0 %v1863
        %1892 = vmatprep.subr.mxu0 0.0
        %1893 = vmatpush1.xpose.msra.mxu0 %v1864
        %1894 = vmatprep.subr.mxu0 0.0
        %1895 = vmatpush1.xpose.msra.mxu0 %v1865
        %1896 = vmatprep.subr.mxu0 0.0
        %1897 = vmatpush1.xpose.msra.mxu0 %v1866
        %1898 = vmatprep.subr.mxu0 0.0
        %1899 = vmatpush1.xpose.msra.mxu0 %v1867
        %1900 = vmatprep.subr.mxu0 0.0
        %1901 = vmatpush1.xpose.msra.mxu0 %v1868
        %1902 = vmatprep.subr.mxu0 0.0
        %1903 = vmatpush1.xpose.msra.mxu0 %v1869
        %1904 = vmatprep.subr.mxu0 0.0
        %1905 = vmatpush1.xpose.msra.mxu0 %v1870
        %1906 = vmatprep.subr.mxu0 0.0
        %1907 = vmatpush1.xpose.msra.mxu0 %v1871
        %1908 = vmatprep.subr.mxu0 0.0
        %1909 = vmatpush1.xpose.msra.mxu0 %v1872
        %1910 = vmatprep.subr.mxu0 0.0
        %1911 = vmatpush1.xpose.msra.mxu0 %v1873
        %1912 = vmatprep.subr.mxu0 0.0
        %1913 = vmatpush1.xpose.msra.mxu0 %v1874
        %1914 = vmatprep.subr.mxu0 0.0
        %1915 = vmatpush1.xpose.msra.mxu0 %v1875
        %1916 = vmatprep.subr.mxu0 0.0
        %1917 = vmatpush1.xpose.msra.mxu0 %v1876
        %1918 = vmatprep.subr.mxu0 0.0
        %1919 = vmatpush1.xpose.msra.mxu0 0.0
        %1920 = vmatprep.subr.mxu0 0.0
        %1921 = vmatpush1.xpose.msra.mxu0 0.0
        %1922 = vmatprep.subr.mxu0 0.0
        %1923 = vmatpush1.xpose.msra.mxu0 0.0
        %1924 = vmatprep.subr.mxu0 0.0
        %1925 = vmatpush1.xpose.msra.mxu0 0.0
        %1926 = vmatprep.subr.mxu0 0.0
        %1927 = vmatpush1.xpose.msra.mxu0 0.0
        %1928 = vmatprep.subr.mxu0 0.0
        %1929 = vmatpush1.xpose.msra.mxu0 0.0
        %1930 = vmatprep.subr.mxu0 0.0
        %1931 = vmatpush1.xpose.msra.mxu0 0.0
        %1932 = vmatprep.subr.mxu0 0.0
        %1933 = vmatpush1.xpose.msra.mxu0 0.0
        %1934 = vmatprep.subr.mxu0 0.0
        %1935 = vmatpush1.xpose.msra.mxu0 0.0
        %1936 = vmatprep.subr.mxu0 0.0
        %1937 = vmatpush1.xpose.msra.mxu0 0.0
        %1938 = vmatprep.subr.mxu0 0.0
        %1939 = vmatpush1.xpose.msra.mxu0 0.0
        %1940 = vmatprep.subr.mxu0 0.0
        %1941 = vmatpush1.xpose.msra.mxu0 0.0
        %1942 = vmatprep.subr.mxu0 0.0
        %1943 = vmatpush1.xpose.msra.mxu0 0.0
        %1944 = vmatprep.subr.mxu0 0.0
        %1945 = vmatpush1.xpose.msra.mxu0 0.0
        %1946 = vmatprep.subr.mxu0 0.0
        %1947 = vmatpush1.xpose.msra.mxu0 0.0
        %1948 = vmatprep.subr.mxu0 0.0
        %1949 = vmatpush1.xpose.msra.mxu0 0.0
        %1950 = vmatprep.mubr.f32.mxu0 0.0
        %1951 = vmatmul.mubr.f32.gmra.mrb[0].mxu0 %v200
        %v1952 = vpop.f32.mrb[0].mxu0
        %v1953 = vadd.f32 %v1885, %v1952
        %v1954 = vpop.f32.mrb[0].mxu0
        %1955 = vdwg.mxu0
        %1956 = vst [vmem:[%s189] sm:$0x1] %v1953
        %s1957 = sand.u32 %s115, 1
        %s1958 = scalar_lea.sflag [#allocation5], %s1957
        %s1959 = sand.u32 %s115, 1
        %s1960 = scalar_lea.vmem [#allocation4], %s1959
        // Predicated region
        $region37: #{tpu_custom_call.1} parent=35 // pred_check
          %p1961 = pneg %p125
        $region38: #{tpu_custom_call.1} parent=35 // pred_check_branch
          %1963 = sbr.rel (%p1961) target = $region40
        $region39: #{tpu_custom_call.1} parent=35 // pred_region
          %s1965 = ssub.s32 16, 16
          %1966 = vsyncadd %s1958, %s1965
          %s1967 = smul.addr %s18, 16
          %s1968 = scalar_lea.hbm %s4, %s1967
          %s1970 = sshll.u32 %s1960, 4
          %s1971 = int_to_ptr.vmem [resolvable:$true] %s1970
          %1973 = dma.vmem_to_hbm [thread:$0]  %s1971, 16, %s1968, %s1958
        $region40: #{tpu_custom_call.1} parent=35 // pred_fallthru
          _
      $region36: #{tpu_custom_call.1} parent=5 // pred_fallthru
        _
      %p1974 = scmp.le.s32.totalorder 2, %s13
      // Predicated region
      $region41: #{tpu_custom_call.1} parent=5 // pred_check
        %p1975 = pneg %p1974
      $region42: #{tpu_custom_call.1} parent=5 // pred_check_branch
        %1977 = sbr.rel (%p1975) target = $region44
      $region43: #{tpu_custom_call.1} parent=5 // pred_region
        %s1978 = ssub.s32 %s13, 2
        // Predicated region
        $region45: #{tpu_custom_call.1} parent=43 // pred_check
          %p1979 = pneg %p131
        $region46: #{tpu_custom_call.1} parent=43 // pred_check_branch
          %1981 = sbr.rel (%p1979) target = $region48
        $region47: #{tpu_custom_call.1} parent=43 // pred_region
          %s1982 = sand.u32 %s116, 1
          %s1983 = scalar_lea.sflag [#allocation5], %s1982
          %s1984 = sand.u32 %s116, 1
          %s1985 = scalar_lea.vmem [#allocation4], %s1984
          %1986 = dma.done %s1983, 16
        $region48: #{tpu_custom_call.1} parent=43 // pred_fallthru
          _
      $region44: #{tpu_custom_call.1} parent=5 // pred_fallthru
        _
    $region6: #{tpu_custom_call.1} parent=1 // loop_footer
      %s17 = sadd.s32 1, %s13
    $region7: #{tpu_custom_call.1} parent=1 // loop_footer_branch
      %12 = sbr.rel target = $region3
    $region8: #{tpu_custom_call.1} parent=1 // loop_exit
      _
    %1987 = vsyncpa [#allocation5], 1
    %s1988 = scalar_lea.sflag [#allocation5], 1
    %1989 = vsyncpa %s1988, 1

</llo_original>
